<compile_context>
chip_gen: v7x
topology: tpu7x:2x2x1
jax: 0.10.0
libtpu: 0.0.40
codegen_flags: <defaults>
</compile_context>

<pallas_src>
import jax
import jax.numpy as jnp
from jax.experimental import pallas as pl
from jax.experimental.pallas import tpu as pltpu

# ----------------------------- configuration --------------------------------
EMBED_DIM = 128          # embed_dim (kept small; real VIMA uses 768)
N_HEAD = 4               # n_head
HEAD_DIM = EMBED_DIM // N_HEAD
N_LAYER = 2              # n_layer (kept small; real VIMA uses 12)
H_MLP = 4 * EMBED_DIM    # GEGLU inner width
N_POSITIONS = 64         # n_positions (learned positional embedding table)

Q_OBJ = 4                # _obj_xf_num_queries (synthetic; real = img_patch_len)
L_OBS = 2
L_ACTION = 2             # must equal L_OBS for the interleaving to be dense
L_PROMPT = 5
BATCH = 2
L_TOTAL = L_OBS * Q_OBJ + L_ACTION + L_PROMPT + 1  # = 16

LN_EPS = 1e-5
NEG_INF = -1e9


# ------------------------------ Pallas kernel --------------------------------
def _layer_norm(x, gamma, beta):
    mu = jnp.mean(x, axis=-1, keepdims=True)
    var = jnp.mean(jnp.square(x - mu), axis=-1, keepdims=True)
    return (x - mu) * jax.lax.rsqrt(var + LN_EPS) * gamma + beta


def gpt_kernel(x_ref, keymask_ref,
               ln1g_ref, ln1b_ref, wqkv_ref, bqkv_ref, wo_ref, bo_ref,
               ln2g_ref, ln2b_ref, wfc_ref, bfc_ref, wpr_ref, bpr_ref,
               lnfg_ref, lnfb_ref,
               out_ref,
               x_sc, bias_sc):
    """Grid = (batch, layer).  One batch element's (L, E) slab per step."""
    l_idx = pl.program_id(1)
    n_layers = pl.num_programs(1)
    L, E = x_sc.shape                      # static python ints
    bf16, f32 = jnp.bfloat16, jnp.float32

    # ---- per-batch-element init (first layer step) ----
    @pl.when(l_idx == 0)
    def _():
        x_sc[...] = x_ref[0]               # (L, E) f32 hidden-state carry
        # Additive attention bias: causal AND key-validity (built in-kernel,
        # no (L, L) f32 bias streamed from HBM).  NEG_INF (finite) keeps a
        # hypothetical all-masked row NaN-free.
        keymask = keymask_ref[0]           # (1, L) 1.0 = valid key
        rows = jax.lax.broadcasted_iota(jnp.int32, (L, L), 0)
        cols = jax.lax.broadcasted_iota(jnp.int32, (L, L), 1)
        allowed = jnp.logical_and(cols <= rows, keymask > 0.5)
        bias_sc[...] = jnp.where(allowed, 0.0, NEG_INF).astype(f32)

    x = x_sc[...]                          # (L, E) f32
    bias = bias_sc[...]                    # (L, L) f32

    # ---- attention block (pre-LN); bf16 MXU operands, f32 accumulation ----
    xn = _layer_norm(x, ln1g_ref[0], ln1b_ref[0])
    qkv = jnp.dot(xn.astype(bf16), wqkv_ref[0],
                  preferred_element_type=f32) + bqkv_ref[0]          # (L, 3E)
    # NOTE: 1/sqrt(HEAD_DIM) is pre-folded into the Q columns of w_qkv/b_qkv.
    q = qkv[:, :E].reshape(L, N_HEAD, HEAD_DIM)
    k = qkv[:, E:2 * E].reshape(L, N_HEAD, HEAD_DIM)
    v = qkv[:, 2 * E:].reshape(L, N_HEAD, HEAD_DIM)

    qh = jnp.swapaxes(q, 0, 1).astype(bf16)        # (H, L, D)
    kh = jnp.swapaxes(k, 0, 1).astype(bf16)
    vh = jnp.swapaxes(v, 0, 1).astype(bf16)

    s = jnp.einsum('hqd,hkd->hqk', qh, kh,
                   preferred_element_type=f32) + bias[None, :, :]    # (H, L, L)
    m = jnp.max(s, axis=-1, keepdims=True)
    p = jnp.exp(s - m)
    p = p * pl.reciprocal(jnp.sum(p, axis=-1, keepdims=True), approx=True)
    o = jnp.einsum('hqk,hkd->hqd', p.astype(bf16), vh,
                   preferred_element_type=f32)                       # (H, L, D)

    # Single full-width output projection: (L,128) x (128,128) on the MXU.
    attn = jnp.dot(jnp.swapaxes(o, 0, 1).reshape(L, E).astype(bf16),
                   wo_ref[0], preferred_element_type=f32) + bo_ref[0]
    x = x + attn                            # dropout is identity in eval mode

    # ---- GEGLU MLP block (pre-LN) ----
    xn2 = _layer_norm(x, ln2g_ref[0], ln2b_ref[0])
    hh = jnp.dot(xn2.astype(bf16), wfc_ref[0],
                 preferred_element_type=f32) + bfc_ref[0]            # (L, 2H)
    a = hh[:, :H_MLP]
    g = hh[:, H_MLP:]
    hidden = a * jax.nn.gelu(g, approximate=True)    # == HF "gelu_new"
    mlp = jnp.dot(hidden.astype(bf16), wpr_ref[0],
                  preferred_element_type=f32) + bpr_ref[0]
    x = x + mlp

    x_sc[...] = x                           # carry to next layer step

    # ---- final LayerNorm + store (last layer step) ----
    @pl.when(l_idx == n_layers - 1)
    def _():
        out_ref[0] = _layer_norm(x, lnfg_ref[...], lnfb_ref[...])


def run_gpt(hidden_ble, keymask_bl, params):
    """hidden_ble: (B, L, E) f32.  keymask_bl: (B, L) f32 key-validity mask."""
    B, L, E = hidden_ble.shape
    H = H_MLP
    keymask_b1l = keymask_bl[:, None, :]            # (B, 1, L)

    layer_spec = lambda shape: pl.BlockSpec(shape, lambda b, l: (l, 0, 0))

    return pl.pallas_call(
        gpt_kernel,
        out_shape=jax.ShapeDtypeStruct((B, L, E), jnp.float32),
        grid_spec=pltpu.PrefetchScalarGridSpec(
            num_scalar_prefetch=0,
            grid=(B, N_LAYER),
            in_specs=[
                pl.BlockSpec((1, L, E), lambda b, l: (b, 0, 0)),     # x
                pl.BlockSpec((1, 1, L), lambda b, l: (b, 0, 0)),     # keymask
                layer_spec((1, 1, E)),                               # ln1_g
                layer_spec((1, 1, E)),                               # ln1_b
                layer_spec((1, E, 3 * E)),                           # w_qkv
                layer_spec((1, 1, 3 * E)),                           # b_qkv
                layer_spec((1, E, E)),                               # w_o
                layer_spec((1, 1, E)),                               # b_o
                layer_spec((1, 1, E)),                               # ln2_g
                layer_spec((1, 1, E)),                               # ln2_b
                layer_spec((1, E, 2 * H)),                           # w_fc
                layer_spec((1, 1, 2 * H)),                           # b_fc
                layer_spec((1, H, E)),                               # w_pr
                layer_spec((1, 1, E)),                               # b_pr
                pl.BlockSpec((1, E), lambda b, l: (0, 0)),           # lnf_g
                pl.BlockSpec((1, E), lambda b, l: (0, 0)),           # lnf_b
            ],
            out_specs=pl.BlockSpec((1, L, E), lambda b, l: (b, 0, 0)),
            scratch_shapes=[
                pltpu.VMEM((L, E), jnp.float32),    # hidden-state carry
                pltpu.VMEM((L, L), jnp.float32),    # attention bias
            ]),
        compiler_params=pltpu.CompilerParams(
            dimension_semantics=("parallel", "arbitrary")),
    )(hidden_ble, keymask_b1l,
      params["ln1_g"], params["ln1_b"], params["w_qkv"], params["b_qkv"],
      params["w_o"], params["b_o"], params["ln2_g"], params["ln2_b"],
      params["w_fc"], params["b_fc"], params["w_pr"], params["b_pr"],
      params["lnf_g"], params["lnf_b"])


# --------------------------- parameter construction --------------------------
def init_params(key):
    ks = jax.random.split(key, 8)
    scale = 0.02
    E, H = EMBED_DIM, H_MLP
    f32, bf16 = jnp.float32, jnp.bfloat16

    # Fold the 1/sqrt(head_dim) attention scale into the Q projection
    # (columns [:E] of w_qkv and b_qkv) -> mathematically identical to
    # scaling the score matrix, but free at init time.
    attn_scale = 1.0 / (HEAD_DIM ** 0.5)
    w_qkv = scale * jax.random.normal(ks[1], (N_LAYER, E, 3 * E), f32)
    w_qkv = w_qkv.at[:, :, :E].multiply(attn_scale)
    b_qkv = jnp.zeros((N_LAYER, 1, 3 * E), f32)
    b_qkv = b_qkv.at[:, :, :E].multiply(attn_scale)

    params = {
        "wpe": scale * jax.random.normal(ks[0], (N_POSITIONS, E), f32),
        "prompt_sep_token": jnp.zeros((E,), f32),   # nn.Parameter(zeros)
        "ln1_g": jnp.ones((N_LAYER, 1, E), f32),
        "ln1_b": jnp.zeros((N_LAYER, 1, E), f32),
        # projection weights kept in bf16 (MXU dtype); accumulation is f32.
        "w_qkv": w_qkv.astype(bf16),
        "b_qkv": b_qkv,
        "w_o": (scale * jax.random.normal(ks[2], (N_LAYER, E, E),
                                          f32)).astype(bf16),
        "b_o": jnp.zeros((N_LAYER, 1, E), f32),
        "ln2_g": jnp.ones((N_LAYER, 1, E), f32),
        "ln2_b": jnp.zeros((N_LAYER, 1, E), f32),
        "w_fc": (scale * jax.random.normal(ks[3], (N_LAYER, E, 2 * H),
                                           f32)).astype(bf16),
        "b_fc": jnp.zeros((N_LAYER, 1, 2 * H), f32),
        "w_pr": (scale * jax.random.normal(ks[4], (N_LAYER, H, E),
                                           f32)).astype(bf16),
        "b_pr": jnp.zeros((N_LAYER, 1, E), f32),
        "lnf_g": jnp.ones((1, E), f32),
        "lnf_b": jnp.zeros((1, E), f32),
    }
    return params


# ------------------------------- forward glue --------------------------------
@jax.jit
def vima_gato_policy_forward(params, obs_token, action_token, prompt_token,
                             prompt_token_mask):
    """Mirrors VIMAGatoPolicy.forward.

    obs_token:         (L_obs, B, Q, E) f32
    action_token:      (L_action, B, E) f32
    prompt_token:      (L_prompt, B, E) f32
    prompt_token_mask: (B, L_prompt) bool
    returns predicted_action_tokens: (L_obs, B, E) f32
    """
    L_obs, B, Q, E = obs_token.shape
    L_prompt = prompt_token.shape[0]
    L = L_obs * Q + action_token.shape[0] + L_prompt + 1

    # --- token interleaving (prompt | sep | [q0..qQ-1, action] per step) ---
    obs_lqbe = jnp.transpose(obs_token, (0, 2, 1, 3))          # (L_obs,Q,B,E)
    act_l1be = action_token[:, None, :, :]                     # (L_obs,1,B,E)
    body = jnp.concatenate([obs_lqbe, act_l1be], axis=1)       # (L_obs,Q+1,B,E)
    body = body.reshape(L_obs * (Q + 1), B, E)
    sep = jnp.broadcast_to(params["prompt_sep_token"][None, None, :],
                           (1, B, E))
    tokens = jnp.concatenate([prompt_token, sep, body], axis=0)  # (L, B, E)

    # --- key-validity mask (B, L); causal + padding bias built in-kernel ---
    keymask = jnp.concatenate(
        [prompt_token_mask.astype(jnp.float32),
         jnp.ones((B, L - L_prompt), jnp.float32)], axis=1)      # (B, L)

    # --- position ids (padding positions clamped to n_valid - 1) ---
    n_valid = jnp.sum(prompt_token_mask.astype(jnp.int32), axis=1)  # (B,)
    prompt_pos = jnp.minimum(jnp.arange(L_prompt, dtype=jnp.int32)[None, :],
                             (n_valid - 1)[:, None])
    seq_pos = n_valid[:, None] + jnp.arange(L - L_prompt,
                                            dtype=jnp.int32)[None, :]
    position_ids = jnp.concatenate([prompt_pos, seq_pos], axis=1)   # (B, L)

    # --- learned positional embedding gather + transformer kernel ---
    hidden = jnp.transpose(tokens, (1, 0, 2)) + params["wpe"][position_ids]
    out_ble = run_gpt(hidden, keymask, params)                   # (B, L, E)
    tokens_out = jnp.transpose(out_ble, (1, 0, 2))               # (L, B, E)

    # predicted action tokens: last obs-query slot of every step
    predicted = tokens_out[L_prompt + 1 + Q - 1::Q + 1]          # (L_obs, B, E)
    return predicted


# ----------------------------------- main ------------------------------------
if __name__ == "__main__":
    key = jax.random.PRNGKey(0)
    k_params, k_obs, k_act, k_prompt = jax.random.split(key, 4)

    params = init_params(k_params)

    obs_token = jax.random.normal(
        k_obs, (L_OBS, BATCH, Q_OBJ, EMBED_DIM), jnp.float32)
    action_token = jax.random.normal(
        k_act, (L_ACTION, BATCH, EMBED_DIM), jnp.float32)
    prompt_token = jax.random.normal(
        k_prompt, (L_PROMPT, BATCH, EMBED_DIM), jnp.float32)
    # batch 0: all 5 prompt tokens valid; batch 1: first 3 valid, 2 padded.
    prompt_token_mask = jnp.array(
        [[True, True, True, True, True],
         [True, True, True, False, False]], dtype=jnp.bool_)

    predicted = vima_gato_policy_forward(
        params, obs_token, action_token, prompt_token, prompt_token_mask)
    predicted = jax.block_until_ready(predicted)

    assert predicted.shape == (L_OBS, BATCH, EMBED_DIM)
    assert bool(jnp.all(jnp.isfinite(predicted)))
    print("KERNEL_OK")
</pallas_src>

<mosaic_0001>
module attributes {stable_mosaic.version = 11 : i64} {
  func.func @gpt_kernel(%arg0: i32, %arg1: i32, %arg2: memref<1x16x128xf32, #tpu.memory_space<vmem>>, %arg3: memref<1x1x16xf32, #tpu.memory_space<vmem>>, %arg4: memref<1x1x128xf32, #tpu.memory_space<vmem>>, %arg5: memref<1x1x128xf32, #tpu.memory_space<vmem>>, %arg6: memref<1x128x384xbf16, #tpu.memory_space<vmem>>, %arg7: memref<1x1x384xf32, #tpu.memory_space<vmem>>, %arg8: memref<1x128x128xbf16, #tpu.memory_space<vmem>>, %arg9: memref<1x1x128xf32, #tpu.memory_space<vmem>>, %arg10: memref<1x1x128xf32, #tpu.memory_space<vmem>>, %arg11: memref<1x1x128xf32, #tpu.memory_space<vmem>>, %arg12: memref<1x128x1024xbf16, #tpu.memory_space<vmem>>, %arg13: memref<1x1x1024xf32, #tpu.memory_space<vmem>>, %arg14: memref<1x512x128xbf16, #tpu.memory_space<vmem>>, %arg15: memref<1x1x128xf32, #tpu.memory_space<vmem>>, %arg16: memref<1x128xf32, #tpu.memory_space<vmem>>, %arg17: memref<1x128xf32, #tpu.memory_space<vmem>>, %arg18: memref<1x16x128xf32, #tpu.memory_space<vmem>>, %arg19: memref<16x128xf32, #tpu.memory_space<vmem>>, %arg20: memref<16x16xf32, #tpu.memory_space<vmem>>) attributes {dimension_semantics = [#tpu.dimension_semantics<parallel>, #tpu.dimension_semantics<arbitrary>], iteration_bounds = array<i64: 2, 2>, scalar_prefetch = 0 : i64, scratch_operands = 2 : i64, tpu.core_type = #tpu.core_type<tc>, window_params = [{transform_indices = @transform_0, window_bounds = array<i64: 1, 16, 128>}, {transform_indices = @transform_1, window_bounds = array<i64: 1, 1, 16>}, {transform_indices = @transform_2, window_bounds = array<i64: 1, 1, 128>}, {transform_indices = @transform_3, window_bounds = array<i64: 1, 1, 128>}, {transform_indices = @transform_4, window_bounds = array<i64: 1, 128, 384>}, {transform_indices = @transform_5, window_bounds = array<i64: 1, 1, 384>}, {transform_indices = @transform_6, window_bounds = array<i64: 1, 128, 128>}, {transform_indices = @transform_7, window_bounds = array<i64: 1, 1, 128>}, {transform_indices = @transform_8, window_bounds = array<i64: 1, 1, 128>}, {transform_indices = @transform_9, window_bounds = array<i64: 1, 1, 128>}, {transform_indices = @transform_10, window_bounds = array<i64: 1, 128, 1024>}, {transform_indices = @transform_11, window_bounds = array<i64: 1, 1, 1024>}, {transform_indices = @transform_12, window_bounds = array<i64: 1, 512, 128>}, {transform_indices = @transform_13, window_bounds = array<i64: 1, 1, 128>}, {pipeline_mode = #tpu.pipeline_mode<synchronous>, transform_indices = @transform_14, window_bounds = array<i64: 1, 128>}, {pipeline_mode = #tpu.pipeline_mode<synchronous>, transform_indices = @transform_15, window_bounds = array<i64: 1, 128>}, {transform_indices = @transform_16, window_bounds = array<i64: 1, 16, 128>}]} {
    %c0_i32 = arith.constant 0 : i32
    %0 = arith.cmpi eq, %arg1, %c0_i32 : i32
    %1 = arith.extui %0 : i1 to i32
    %c0_i32_0 = arith.constant 0 : i32
    %2 = arith.cmpi ne, %1, %c0_i32_0 : i32
    scf.if %2 {
      %c0_64 = arith.constant 0 : index
      %c0_65 = arith.constant 0 : index
      %c0_66 = arith.constant 0 : index
      %141 = vector.load %arg2[%c0_64, %c0_65, %c0_66] : memref<1x16x128xf32, #tpu.memory_space<vmem>>, vector<1x16x128xf32>
      %142 = vector.shape_cast %141 : vector<1x16x128xf32> to vector<16x128xf32>
      %c0_67 = arith.constant 0 : index
      %c0_68 = arith.constant 0 : index
      %143 = vector.load %arg19[%c0_67, %c0_68] : memref<16x128xf32, #tpu.memory_space<vmem>>, vector<16x128xf32>
      tpu.vector_store %arg19[%c0_67, %c0_68], %142 {strides = array<i32>} : memref<16x128xf32, #tpu.memory_space<vmem>>, vector<16x128xf32>,
      %c0_69 = arith.constant 0 : index
      %c0_70 = arith.constant 0 : index
      %c0_71 = arith.constant 0 : index
      %144 = vector.load %arg3[%c0_69, %c0_70, %c0_71] : memref<1x1x16xf32, #tpu.memory_space<vmem>>, vector<1x1x16xf32>
      %145 = vector.shape_cast %144 : vector<1x1x16xf32> to vector<1x16xf32>
      %146 = tpu.iota {dimensions = array<i32: 0>} : vector<16x16xi32>
      %147 = tpu.iota {dimensions = array<i32: 1>} : vector<16x16xi32>
      %148 = arith.cmpi sle, %147, %146 : vector<16x16xi32>
      %cst_72 = arith.constant 5.000000e-01 : f32
      %149 = vector.broadcast %cst_72 : f32 to vector<1x16xf32>
      %150 = arith.cmpf ogt, %145, %149 : vector<1x16xf32>
      %151 = vector.broadcast %150 : vector<1x16xi1> to vector<16x16xi1>
      %152 = arith.andi %148, %151 : vector<16x16xi1>
      %cst_73 = arith.constant 0.000000e+00 : f32
      %cst_74 = arith.constant -1.000000e+09 : f32
      %153 = vector.broadcast %cst_73 : f32 to vector<16x16xf32>
      %154 = vector.broadcast %cst_74 : f32 to vector<16x16xf32>
      %155 = arith.select %152, %153, %154 : vector<16x16xi1>, vector<16x16xf32>
      %c0_75 = arith.constant 0 : index
      %c0_76 = arith.constant 0 : index
      %156 = vector.load %arg20[%c0_75, %c0_76] : memref<16x16xf32, #tpu.memory_space<vmem>>, vector<16x16xf32>
      tpu.vector_store %arg20[%c0_75, %c0_76], %155 {strides = array<i32>} : memref<16x16xf32, #tpu.memory_space<vmem>>, vector<16x16xf32>,
    } else {
    }
    %c0 = arith.constant 0 : index
    %c0_1 = arith.constant 0 : index
    %3 = vector.load %arg19[%c0, %c0_1] : memref<16x128xf32, #tpu.memory_space<vmem>>, vector<16x128xf32>
    %c0_2 = arith.constant 0 : index
    %c0_3 = arith.constant 0 : index
    %4 = vector.load %arg20[%c0_2, %c0_3] : memref<16x16xf32, #tpu.memory_space<vmem>>, vector<16x16xf32>
    %c0_4 = arith.constant 0 : index
    %c0_5 = arith.constant 0 : index
    %c0_6 = arith.constant 0 : index
    %5 = vector.load %arg4[%c0_4, %c0_5, %c0_6] : memref<1x1x128xf32, #tpu.memory_space<vmem>>, vector<1x1x128xf32>
    %6 = vector.shape_cast %5 : vector<1x1x128xf32> to vector<1x128xf32>
    %c0_7 = arith.constant 0 : index
    %c0_8 = arith.constant 0 : index
    %c0_9 = arith.constant 0 : index
    %7 = vector.load %arg5[%c0_7, %c0_8, %c0_9] : memref<1x1x128xf32, #tpu.memory_space<vmem>>, vector<1x1x128xf32>
    %8 = vector.shape_cast %7 : vector<1x1x128xf32> to vector<1x128xf32>
    %cst = arith.constant dense<0.000000e+00> : vector<16xf32>
    %9 = vector.multi_reduction <add>, %3, %cst [1] : vector<16x128xf32> to vector<16xf32>
    %10 = vector.shape_cast %9 : vector<16xf32> to vector<16x1xf32>
    %cst_10 = arith.constant 1.280000e+02 : f32
    %11 = vector.broadcast %cst_10 : f32 to vector<16x1xf32>
    %12 = arith.divf %10, %11 : vector<16x1xf32>
    %13 = vector.broadcast %12 : vector<16x1xf32> to vector<16x128xf32>
    %14 = arith.subf %3, %13 : vector<16x128xf32>
    %15 = arith.mulf %14, %14 : vector<16x128xf32>
    %cst_11 = arith.constant dense<0.000000e+00> : vector<16xf32>
    %16 = vector.multi_reduction <add>, %15, %cst_11 [1] : vector<16x128xf32> to vector<16xf32>
    %17 = vector.shape_cast %16 : vector<16xf32> to vector<16x1xf32>
    %cst_12 = arith.constant 1.280000e+02 : f32
    %18 = vector.broadcast %cst_12 : f32 to vector<16x1xf32>
    %19 = arith.divf %17, %18 : vector<16x1xf32>
    %20 = vector.broadcast %12 : vector<16x1xf32> to vector<16x128xf32>
    %21 = arith.subf %3, %20 : vector<16x128xf32>
    %cst_13 = arith.constant 9.99999974E-6 : f32
    %22 = vector.broadcast %cst_13 : f32 to vector<16x1xf32>
    %23 = arith.addf %19, %22 : vector<16x1xf32>
    %24 = math.rsqrt %23 : vector<16x1xf32>
    %25 = vector.broadcast %24 : vector<16x1xf32> to vector<16x128xf32>
    %26 = arith.mulf %21, %25 : vector<16x128xf32>
    %27 = vector.broadcast %6 : vector<1x128xf32> to vector<16x128xf32>
    %28 = arith.mulf %26, %27 : vector<16x128xf32>
    %29 = vector.broadcast %8 : vector<1x128xf32> to vector<16x128xf32>
    %30 = arith.addf %28, %29 : vector<16x128xf32>
    %31 = arith.truncf %30 : vector<16x128xf32> to vector<16x128xbf16>
    %c0_14 = arith.constant 0 : index
    %c0_15 = arith.constant 0 : index
    %c0_16 = arith.constant 0 : index
    %32 = vector.load %arg6[%c0_14, %c0_15, %c0_16] : memref<1x128x384xbf16, #tpu.memory_space<vmem>>, vector<1x128x384xbf16>
    %33 = vector.shape_cast %32 : vector<1x128x384xbf16> to vector<128x384xbf16>
    %cst_17 = arith.constant dense<0.000000e+00> : vector<16x384xf32>
    %34 = tpu.matmul %31, %33, %cst_17 {dimension_numbers = #tpu.dot_dimension_numbers<[1], [0], [0], [1], [0, 0, 1, 1], [], []>} : vector<16x128xbf16>, vector<128x384xbf16>, vector<16x384xf32> -> vector<16x384xf32>
    %c0_18 = arith.constant 0 : index
    %c0_19 = arith.constant 0 : index
    %c0_20 = arith.constant 0 : index
    %35 = vector.load %arg7[%c0_18, %c0_19, %c0_20] : memref<1x1x384xf32, #tpu.memory_space<vmem>>, vector<1x1x384xf32>
    %36 = vector.shape_cast %35 : vector<1x1x384xf32> to vector<1x384xf32>
    %37 = vector.broadcast %36 : vector<1x384xf32> to vector<16x384xf32>
    %38 = arith.addf %34, %37 : vector<16x384xf32>
    %39 = vector.extract_strided_slice %38 {offsets = [0, 0], sizes = [16, 128], strides = [1, 1]} : vector<16x384xf32> to vector<16x128xf32>
    %40 = vector.shape_cast %39 : vector<16x128xf32> to vector<16x4x32xf32>
    %41 = vector.extract_strided_slice %38 {offsets = [0, 128], sizes = [16, 128], strides = [1, 1]} : vector<16x384xf32> to vector<16x128xf32>
    %42 = vector.shape_cast %41 : vector<16x128xf32> to vector<16x4x32xf32>
    %43 = vector.extract_strided_slice %38 {offsets = [0, 256], sizes = [16, 128], strides = [1, 1]} : vector<16x384xf32> to vector<16x128xf32>
    %44 = vector.shape_cast %43 : vector<16x128xf32> to vector<16x4x32xf32>
    %45 = tpu.transpose %40, [1, 0, 2] : vector<16x4x32xf32> -> vector<4x16x32xf32>
    %46 = arith.truncf %45 : vector<4x16x32xf32> to vector<4x16x32xbf16>
    %47 = tpu.transpose %42, [1, 0, 2] : vector<16x4x32xf32> -> vector<4x16x32xf32>
    %48 = arith.truncf %47 : vector<4x16x32xf32> to vector<4x16x32xbf16>
    %49 = tpu.transpose %44, [1, 0, 2] : vector<16x4x32xf32> -> vector<4x16x32xf32>
    %50 = arith.truncf %49 : vector<4x16x32xf32> to vector<4x16x32xbf16>
    "tpu.trace_start"() <{level = 10 : i32, message = "hqd,hkd->hqk"}> : () -> ()
    %cst_21 = arith.constant dense<0.000000e+00> : vector<4x16x16xf32>
    %51 = tpu.matmul %46, %48, %cst_21 {dimension_numbers = #tpu.dot_dimension_numbers<[2], [2], [1], [1], [0, 0, 0, 1, 1, 1], [0], [0]>} : vector<4x16x32xbf16>, vector<4x16x32xbf16>, vector<4x16x16xf32> -> vector<4x16x16xf32>
    "tpu.trace_stop"() : () -> ()
    %52 = vector.shape_cast %4 : vector<16x16xf32> to vector<1x16x16xf32>
    %53 = vector.broadcast %52 : vector<1x16x16xf32> to vector<4x16x16xf32>
    %54 = arith.addf %51, %53 : vector<4x16x16xf32>
    %cst_22 = arith.constant dense<0xFF800000> : vector<4x16xf32>
    %55 = vector.multi_reduction <maximumf>, %54, %cst_22 [2] : vector<4x16x16xf32> to vector<4x16xf32>
    %56 = vector.shape_cast %55 : vector<4x16xf32> to vector<4x16x1xf32>
    %57 = vector.broadcast %56 : vector<4x16x1xf32> to vector<4x16x16xf32>
    %58 = arith.subf %54, %57 : vector<4x16x16xf32>
    %59 = math.exp %58 : vector<4x16x16xf32>
    %cst_23 = arith.constant dense<0.000000e+00> : vector<4x16xf32>
    %60 = vector.multi_reduction <add>, %59, %cst_23 [2] : vector<4x16x16xf32> to vector<4x16xf32>
    %61 = vector.shape_cast %60 : vector<4x16xf32> to vector<4x16x1xf32>
    %62 = tpu.reciprocal %61 {approx = true} : vector<4x16x1xf32> -> vector<4x16x1xf32>
    %63 = vector.broadcast %62 : vector<4x16x1xf32> to vector<4x16x16xf32>
    %64 = arith.mulf %59, %63 : vector<4x16x16xf32>
    %65 = arith.truncf %64 : vector<4x16x16xf32> to vector<4x16x16xbf16>
    "tpu.trace_start"() <{level = 10 : i32, message = "hqk,hkd->hqd"}> : () -> ()
    %cst_24 = arith.constant dense<0.000000e+00> : vector<4x16x32xf32>
    %66 = tpu.matmul %65, %50, %cst_24 {dimension_numbers = #tpu.dot_dimension_numbers<[2], [1], [1], [2], [0, 0, 0, 1, 1, 2], [0], [0]>} : vector<4x16x16xbf16>, vector<4x16x32xbf16>, vector<4x16x32xf32> -> vector<4x16x32xf32>
    "tpu.trace_stop"() : () -> ()
    %67 = tpu.transpose %66, [1, 0, 2] : vector<4x16x32xf32> -> vector<16x4x32xf32>
    %68 = vector.shape_cast %67 : vector<16x4x32xf32> to vector<16x128xf32>
    %69 = arith.truncf %68 : vector<16x128xf32> to vector<16x128xbf16>
    %c0_25 = arith.constant 0 : index
    %c0_26 = arith.constant 0 : index
    %c0_27 = arith.constant 0 : index
    %70 = vector.load %arg8[%c0_25, %c0_26, %c0_27] : memref<1x128x128xbf16, #tpu.memory_space<vmem>>, vector<1x128x128xbf16>
    %71 = vector.shape_cast %70 : vector<1x128x128xbf16> to vector<128x128xbf16>
    %cst_28 = arith.constant dense<0.000000e+00> : vector<16x128xf32>
    %72 = tpu.matmul %69, %71, %cst_28 {dimension_numbers = #tpu.dot_dimension_numbers<[1], [0], [0], [1], [0, 0, 1, 1], [], []>} : vector<16x128xbf16>, vector<128x128xbf16>, vector<16x128xf32> -> vector<16x128xf32>
    %c0_29 = arith.constant 0 : index
    %c0_30 = arith.constant 0 : index
    %c0_31 = arith.constant 0 : index
    %73 = vector.load %arg9[%c0_29, %c0_30, %c0_31] : memref<1x1x128xf32, #tpu.memory_space<vmem>>, vector<1x1x128xf32>
    %74 = vector.shape_cast %73 : vector<1x1x128xf32> to vector<1x128xf32>
    %75 = vector.broadcast %74 : vector<1x128xf32> to vector<16x128xf32>
    %76 = arith.addf %72, %75 : vector<16x128xf32>
    %77 = arith.addf %3, %76 : vector<16x128xf32>
    %c0_32 = arith.constant 0 : index
    %c0_33 = arith.constant 0 : index
    %c0_34 = arith.constant 0 : index
    %78 = vector.load %arg10[%c0_32, %c0_33, %c0_34] : memref<1x1x128xf32, #tpu.memory_space<vmem>>, vector<1x1x128xf32>
    %79 = vector.shape_cast %78 : vector<1x1x128xf32> to vector<1x128xf32>
    %c0_35 = arith.constant 0 : index
    %c0_36 = arith.constant 0 : index
    %c0_37 = arith.constant 0 : index
    %80 = vector.load %arg11[%c0_35, %c0_36, %c0_37] : memref<1x1x128xf32, #tpu.memory_space<vmem>>, vector<1x1x128xf32>
    %81 = vector.shape_cast %80 : vector<1x1x128xf32> to vector<1x128xf32>
    %cst_38 = arith.constant dense<0.000000e+00> : vector<16xf32>
    %82 = vector.multi_reduction <add>, %77, %cst_38 [1] : vector<16x128xf32> to vector<16xf32>
    %83 = vector.shape_cast %82 : vector<16xf32> to vector<16x1xf32>
    %cst_39 = arith.constant 1.280000e+02 : f32
    %84 = vector.broadcast %cst_39 : f32 to vector<16x1xf32>
    %85 = arith.divf %83, %84 : vector<16x1xf32>
    %86 = vector.broadcast %85 : vector<16x1xf32> to vector<16x128xf32>
    %87 = arith.subf %77, %86 : vector<16x128xf32>
    %88 = arith.mulf %87, %87 : vector<16x128xf32>
    %cst_40 = arith.constant dense<0.000000e+00> : vector<16xf32>
    %89 = vector.multi_reduction <add>, %88, %cst_40 [1] : vector<16x128xf32> to vector<16xf32>
    %90 = vector.shape_cast %89 : vector<16xf32> to vector<16x1xf32>
    %cst_41 = arith.constant 1.280000e+02 : f32
    %91 = vector.broadcast %cst_41 : f32 to vector<16x1xf32>
    %92 = arith.divf %90, %91 : vector<16x1xf32>
    %93 = vector.broadcast %85 : vector<16x1xf32> to vector<16x128xf32>
    %94 = arith.subf %77, %93 : vector<16x128xf32>
    %cst_42 = arith.constant 9.99999974E-6 : f32
    %95 = vector.broadcast %cst_42 : f32 to vector<16x1xf32>
    %96 = arith.addf %92, %95 : vector<16x1xf32>
    %97 = math.rsqrt %96 : vector<16x1xf32>
    %98 = vector.broadcast %97 : vector<16x1xf32> to vector<16x128xf32>
    %99 = arith.mulf %94, %98 : vector<16x128xf32>
    %100 = vector.broadcast %79 : vector<1x128xf32> to vector<16x128xf32>
    %101 = arith.mulf %99, %100 : vector<16x128xf32>
    %102 = vector.broadcast %81 : vector<1x128xf32> to vector<16x128xf32>
    %103 = arith.addf %101, %102 : vector<16x128xf32>
    %104 = arith.truncf %103 : vector<16x128xf32> to vector<16x128xbf16>
    %c0_43 = arith.constant 0 : index
    %c0_44 = arith.constant 0 : index
    %c0_45 = arith.constant 0 : index
    %105 = vector.load %arg12[%c0_43, %c0_44, %c0_45] : memref<1x128x1024xbf16, #tpu.memory_space<vmem>>, vector<1x128x1024xbf16>
    %106 = vector.shape_cast %105 : vector<1x128x1024xbf16> to vector<128x1024xbf16>
    %cst_46 = arith.constant dense<0.000000e+00> : vector<16x1024xf32>
    %107 = tpu.matmul %104, %106, %cst_46 {dimension_numbers = #tpu.dot_dimension_numbers<[1], [0], [0], [1], [0, 0, 1, 1], [], []>} : vector<16x128xbf16>, vector<128x1024xbf16>, vector<16x1024xf32> -> vector<16x1024xf32>
    %c0_47 = arith.constant 0 : index
    %c0_48 = arith.constant 0 : index
    %c0_49 = arith.constant 0 : index
    %108 = vector.load %arg13[%c0_47, %c0_48, %c0_49] : memref<1x1x1024xf32, #tpu.memory_space<vmem>>, vector<1x1x1024xf32>
    %109 = vector.shape_cast %108 : vector<1x1x1024xf32> to vector<1x1024xf32>
    %110 = vector.broadcast %109 : vector<1x1024xf32> to vector<16x1024xf32>
    %111 = arith.addf %107, %110 : vector<16x1024xf32>
    %112 = vector.extract_strided_slice %111 {offsets = [0, 0], sizes = [16, 512], strides = [1, 1]} : vector<16x1024xf32> to vector<16x512xf32>
    %113 = vector.extract_strided_slice %111 {offsets = [0, 512], sizes = [16, 512], strides = [1, 1]} : vector<16x1024xf32> to vector<16x512xf32>
    %114 = arith.mulf %113, %113 : vector<16x512xf32>
    %115 = arith.mulf %113, %114 : vector<16x512xf32>
    %cst_50 = arith.constant 4.471500e-02 : f32
    %116 = vector.broadcast %cst_50 : f32 to vector<16x512xf32>
    %117 = arith.mulf %116, %115 : vector<16x512xf32>
    %118 = arith.addf %113, %117 : vector<16x512xf32>
    %cst_51 = arith.constant 0.797884583 : f32
    %119 = vector.broadcast %cst_51 : f32 to vector<16x512xf32>
    %120 = arith.mulf %119, %118 : vector<16x512xf32>
    %121 = math.tanh %120 : vector<16x512xf32>
    %cst_52 = arith.constant 1.000000e+00 : f32
    %122 = vector.broadcast %cst_52 : f32 to vector<16x512xf32>
    %123 = arith.addf %122, %121 : vector<16x512xf32>
    %cst_53 = arith.constant 5.000000e-01 : f32
    %124 = vector.broadcast %cst_53 : f32 to vector<16x512xf32>
    %125 = arith.mulf %124, %123 : vector<16x512xf32>
    %126 = arith.mulf %113, %125 : vector<16x512xf32>
    %127 = arith.mulf %112, %126 : vector<16x512xf32>
    %128 = arith.truncf %127 : vector<16x512xf32> to vector<16x512xbf16>
    %c0_54 = arith.constant 0 : index
    %c0_55 = arith.constant 0 : index
    %c0_56 = arith.constant 0 : index
    %129 = vector.load %arg14[%c0_54, %c0_55, %c0_56] : memref<1x512x128xbf16, #tpu.memory_space<vmem>>, vector<1x512x128xbf16>
    %130 = vector.shape_cast %129 : vector<1x512x128xbf16> to vector<512x128xbf16>
    %cst_57 = arith.constant dense<0.000000e+00> : vector<16x128xf32>
    %131 = tpu.matmul %128, %130, %cst_57 {dimension_numbers = #tpu.dot_dimension_numbers<[1], [0], [0], [1], [0, 0, 1, 1], [], []>} : vector<16x512xbf16>, vector<512x128xbf16>, vector<16x128xf32> -> vector<16x128xf32>
    %c0_58 = arith.constant 0 : index
    %c0_59 = arith.constant 0 : index
    %c0_60 = arith.constant 0 : index
    %132 = vector.load %arg15[%c0_58, %c0_59, %c0_60] : memref<1x1x128xf32, #tpu.memory_space<vmem>>, vector<1x1x128xf32>
    %133 = vector.shape_cast %132 : vector<1x1x128xf32> to vector<1x128xf32>
    %134 = vector.broadcast %133 : vector<1x128xf32> to vector<16x128xf32>
    %135 = arith.addf %131, %134 : vector<16x128xf32>
    %136 = arith.addf %77, %135 : vector<16x128xf32>
    %c0_61 = arith.constant 0 : index
    %c0_62 = arith.constant 0 : index
    %137 = vector.load %arg19[%c0_61, %c0_62] : memref<16x128xf32, #tpu.memory_space<vmem>>, vector<16x128xf32>
    tpu.vector_store %arg19[%c0_61, %c0_62], %136 {strides = array<i32>} : memref<16x128xf32, #tpu.memory_space<vmem>>, vector<16x128xf32>,
    %c1_i32 = arith.constant 1 : i32
    %138 = arith.cmpi eq, %arg1, %c1_i32 : i32
    %139 = arith.extui %138 : i1 to i32
    %c0_i32_63 = arith.constant 0 : i32
    %140 = arith.cmpi ne, %139, %c0_i32_63 : i32
    scf.if %140 {
      %c0_64 = arith.constant 0 : index
      %c0_65 = arith.constant 0 : index
      %141 = vector.load %arg16[%c0_64, %c0_65] : memref<1x128xf32, #tpu.memory_space<vmem>>, vector<1x128xf32>
      %c0_66 = arith.constant 0 : index
      %c0_67 = arith.constant 0 : index
      %142 = vector.load %arg17[%c0_66, %c0_67] : memref<1x128xf32, #tpu.memory_space<vmem>>, vector<1x128xf32>
      %cst_68 = arith.constant dense<0.000000e+00> : vector<16xf32>
      %143 = vector.multi_reduction <add>, %136, %cst_68 [1] : vector<16x128xf32> to vector<16xf32>
      %144 = vector.shape_cast %143 : vector<16xf32> to vector<16x1xf32>
      %cst_69 = arith.constant 1.280000e+02 : f32
      %145 = vector.broadcast %cst_69 : f32 to vector<16x1xf32>
      %146 = arith.divf %144, %145 : vector<16x1xf32>
      %147 = vector.broadcast %146 : vector<16x1xf32> to vector<16x128xf32>
      %148 = arith.subf %136, %147 : vector<16x128xf32>
      %149 = arith.mulf %148, %148 : vector<16x128xf32>
      %cst_70 = arith.constant dense<0.000000e+00> : vector<16xf32>
      %150 = vector.multi_reduction <add>, %149, %cst_70 [1] : vector<16x128xf32> to vector<16xf32>
      %151 = vector.shape_cast %150 : vector<16xf32> to vector<16x1xf32>
      %cst_71 = arith.constant 1.280000e+02 : f32
      %152 = vector.broadcast %cst_71 : f32 to vector<16x1xf32>
      %153 = arith.divf %151, %152 : vector<16x1xf32>
      %154 = vector.broadcast %146 : vector<16x1xf32> to vector<16x128xf32>
      %155 = arith.subf %136, %154 : vector<16x128xf32>
      %cst_72 = arith.constant 9.99999974E-6 : f32
      %156 = vector.broadcast %cst_72 : f32 to vector<16x1xf32>
      %157 = arith.addf %153, %156 : vector<16x1xf32>
      %158 = math.rsqrt %157 : vector<16x1xf32>
      %159 = vector.broadcast %158 : vector<16x1xf32> to vector<16x128xf32>
      %160 = arith.mulf %155, %159 : vector<16x128xf32>
      %161 = vector.broadcast %141 : vector<1x128xf32> to vector<16x128xf32>
      %162 = arith.mulf %160, %161 : vector<16x128xf32>
      %163 = vector.broadcast %142 : vector<1x128xf32> to vector<16x128xf32>
      %164 = arith.addf %162, %163 : vector<16x128xf32>
      %c0_73 = arith.constant 0 : index
      %c0_74 = arith.constant 0 : index
      %c0_75 = arith.constant 0 : index
      %165 = vector.load %arg18[%c0_73, %c0_74, %c0_75] : memref<1x16x128xf32, #tpu.memory_space<vmem>>, vector<1x16x128xf32>
      %166 = vector.shape_cast %165 : vector<1x16x128xf32> to vector<16x128xf32>
      %167 = vector.shape_cast %164 : vector<16x128xf32> to vector<1x16x128xf32>
      tpu.vector_store %arg18[%c0_73, %c0_74, %c0_75], %167 {strides = array<i32>} : memref<1x16x128xf32, #tpu.memory_space<vmem>>, vector<1x16x128xf32>,
    } else {
    }
    return
  }
  func.func @transform_0(%arg0: i32, %arg1: i32) -> (i32, i32, i32) {
    %c0_i32 = arith.constant 0 : i32
    %c0_i32_0 = arith.constant 0 : i32
    %c0_i32_1 = arith.constant 0 : i32
    return %arg0, %c0_i32, %c0_i32_0 : i32, i32, i32
  }
  func.func @transform_1(%arg0: i32, %arg1: i32) -> (i32, i32, i32) {
    %c0_i32 = arith.constant 0 : i32
    %c0_i32_0 = arith.constant 0 : i32
    %c0_i32_1 = arith.constant 0 : i32
    return %arg0, %c0_i32, %c0_i32_0 : i32, i32, i32
  }
  func.func @transform_2(%arg0: i32, %arg1: i32) -> (i32, i32, i32) {
    %c0_i32 = arith.constant 0 : i32
    %c0_i32_0 = arith.constant 0 : i32
    %c0_i32_1 = arith.constant 0 : i32
    return %arg1, %c0_i32, %c0_i32_0 : i32, i32, i32
  }
  func.func @transform_3(%arg0: i32, %arg1: i32) -> (i32, i32, i32) {
    %c0_i32 = arith.constant 0 : i32
    %c0_i32_0 = arith.constant 0 : i32
    %c0_i32_1 = arith.constant 0 : i32
    return %arg1, %c0_i32, %c0_i32_0 : i32, i32, i32
  }
  func.func @transform_4(%arg0: i32, %arg1: i32) -> (i32, i32, i32) {
    %c0_i32 = arith.constant 0 : i32
    %c0_i32_0 = arith.constant 0 : i32
    %c0_i32_1 = arith.constant 0 : i32
    return %arg1, %c0_i32, %c0_i32_0 : i32, i32, i32
  }
  func.func @transform_5(%arg0: i32, %arg1: i32) -> (i32, i32, i32) {
    %c0_i32 = arith.constant 0 : i32
    %c0_i32_0 = arith.constant 0 : i32
    %c0_i32_1 = arith.constant 0 : i32
    return %arg1, %c0_i32, %c0_i32_0 : i32, i32, i32
  }
  func.func @transform_6(%arg0: i32, %arg1: i32) -> (i32, i32, i32) {
    %c0_i32 = arith.constant 0 : i32
    %c0_i32_0 = arith.constant 0 : i32
    %c0_i32_1 = arith.constant 0 : i32
    return %arg1, %c0_i32, %c0_i32_0 : i32, i32, i32
  }
  func.func @transform_7(%arg0: i32, %arg1: i32) -> (i32, i32, i32) {
    %c0_i32 = arith.constant 0 : i32
    %c0_i32_0 = arith.constant 0 : i32
    %c0_i32_1 = arith.constant 0 : i32
    return %arg1, %c0_i32, %c0_i32_0 : i32, i32, i32
  }
  func.func @transform_8(%arg0: i32, %arg1: i32) -> (i32, i32, i32) {
    %c0_i32 = arith.constant 0 : i32
    %c0_i32_0 = arith.constant 0 : i32
    %c0_i32_1 = arith.constant 0 : i32
    return %arg1, %c0_i32, %c0_i32_0 : i32, i32, i32
  }
  func.func @transform_9(%arg0: i32, %arg1: i32) -> (i32, i32, i32) {
    %c0_i32 = arith.constant 0 : i32
    %c0_i32_0 = arith.constant 0 : i32
    %c0_i32_1 = arith.constant 0 : i32
    return %arg1, %c0_i32, %c0_i32_0 : i32, i32, i32
  }
  func.func @transform_10(%arg0: i32, %arg1: i32) -> (i32, i32, i32) {
    %c0_i32 = arith.constant 0 : i32
    %c0_i32_0 = arith.constant 0 : i32
    %c0_i32_1 = arith.constant 0 : i32
    return %arg1, %c0_i32, %c0_i32_0 : i32, i32, i32
  }
  func.func @transform_11(%arg0: i32, %arg1: i32) -> (i32, i32, i32) {
    %c0_i32 = arith.constant 0 : i32
    %c0_i32_0 = arith.constant 0 : i32
    %c0_i32_1 = arith.constant 0 : i32
    return %arg1, %c0_i32, %c0_i32_0 : i32, i32, i32
  }
  func.func @transform_12(%arg0: i32, %arg1: i32) -> (i32, i32, i32) {
    %c0_i32 = arith.constant 0 : i32
    %c0_i32_0 = arith.constant 0 : i32
    %c0_i32_1 = arith.constant 0 : i32
    return %arg1, %c0_i32, %c0_i32_0 : i32, i32, i32
  }
  func.func @transform_13(%arg0: i32, %arg1: i32) -> (i32, i32, i32) {
    %c0_i32 = arith.constant 0 : i32
    %c0_i32_0 = arith.constant 0 : i32
    %c0_i32_1 = arith.constant 0 : i32
    return %arg1, %c0_i32, %c0_i32_0 : i32, i32, i32
  }
  func.func @transform_14(%arg0: i32, %arg1: i32) -> (i32, i32) {
    %c0_i32 = arith.constant 0 : i32
    %c0_i32_0 = arith.constant 0 : i32
    %c0_i32_1 = arith.constant 0 : i32
    return %c0_i32, %c0_i32_0 : i32, i32
  }
  func.func @transform_15(%arg0: i32, %arg1: i32) -> (i32, i32) {
    %c0_i32 = arith.constant 0 : i32
    %c0_i32_0 = arith.constant 0 : i32
    %c0_i32_1 = arith.constant 0 : i32
    return %c0_i32, %c0_i32_0 : i32, i32
  }
  func.func @transform_16(%arg0: i32, %arg1: i32) -> (i32, i32, i32) {
    %c0_i32 = arith.constant 0 : i32
    %c0_i32_0 = arith.constant 0 : i32
    %c0_i32_1 = arith.constant 0 : i32
    return %arg0, %c0_i32, %c0_i32_0 : i32, i32, i32
  }
}

</mosaic_0001>

<llo_original>
// kernel: vima_gato_policy_forward.1
$region0: #{vima_gato_policy_forward.1}
  #allocation0 [shape = 'u32[]', space=smem, size = 0x4, offset = 0x4, fixed_abs, tag = 'smem constant byte address 0x4 - core index']
  #allocation1 [shape = 'u32[144,128]{1,0:T(1,128)}', space=vmem, size = 0x12000, scoped, tag = 'internal scratch']
  #allocation2 [shape = 'f32[16,128]{1,0:T(8,128)}', space=vmem, size = 0x2000, scoped, tag = 'scratch operand']
  #allocation3 [shape = 'f32[16,16]{1,0:T(8,128)}', space=vmem, size = 0x2000, scoped, tag = 'scratch operand']
  %s0 = inlined_call_operand.vmem [shape: f32[2,16,128], index: 0, kind: input, shape index: {}]
  %s1 = inlined_call_operand.vmem [shape: f32[2,1,16], index: 1, kind: input, shape index: {}]
  %s2 = inlined_call_operand.vmem [shape: f32[2,1,128], index: 2, kind: input, shape index: {}]
  %s3 = inlined_call_operand.hbm [shape: f32[2,1,128], index: 3, kind: input, shape index: {}]
  %s4 = inlined_call_operand.hbm [shape: bf16[2,128,384], index: 4, kind: input, shape index: {}]
  %s5 = inlined_call_operand.hbm [shape: f32[2,1,384], index: 5, kind: input, shape index: {}]
  %s6 = inlined_call_operand.vmem [shape: bf16[2,128,128], index: 6, kind: input, shape index: {}]
  %s7 = inlined_call_operand.vmem [shape: f32[2,1,128], index: 7, kind: input, shape index: {}]
  %s8 = inlined_call_operand.hbm [shape: f32[2,1,128], index: 8, kind: input, shape index: {}]
  %s9 = inlined_call_operand.hbm [shape: f32[2,1,128], index: 9, kind: input, shape index: {}]
  %s10 = inlined_call_operand.hbm [shape: bf16[2,128,1024], index: 10, kind: input, shape index: {}]
  %s11 = inlined_call_operand.vmem [shape: f32[2,1,1024], index: 11, kind: input, shape index: {}]
  %s12 = inlined_call_operand.vmem [shape: bf16[2,512,128], index: 12, kind: input, shape index: {}]
  %s13 = inlined_call_operand.hbm [shape: f32[2,1,128], index: 13, kind: input, shape index: {}]
  %s14 = inlined_call_operand.hbm [shape: f32[1,128], index: 14, kind: input, shape index: {}]
  %s15 = inlined_call_operand.hbm [shape: f32[1,128], index: 15, kind: input, shape index: {}]
  %s16 = inlined_call_operand.vmem [shape: f32[2,16,128], index: 16, kind: output, shape index: {}]
  %s17 = sld [smem:[#allocation0]]
  $region141: #{vima_gato_policy_forward.1} parent=0
    _
  %s19 = ssub.s32 1, %s17
  %s20 = scalar_select 0, %s19, %s17
  $region1: #{vima_gato_policy_forward.1} parent=0
    #allocation4 [shape = 'u8[1024]{0}', space=vmem, size = 0x400, scoped, tag = 'input window, operand 3']
    #allocation5 [shape = 's32[2]{0}', space=sflag, size = 0x8, scoped, tag = 'scoped memory for vima_gato_policy_forward.1']
    #allocation6 [shape = 'u8[196608]{0}', space=vmem, size = 0x30000, scoped, tag = 'input window, operand 4']
    #allocation7 [shape = 's32[2]{0}', space=sflag, size = 0x8, scoped, tag = 'scoped memory for vima_gato_policy_forward.1']
    #allocation8 [shape = 'u8[3072]{0}', space=vmem, size = 0xc00, scoped, tag = 'input window, operand 5']
    #allocation9 [shape = 'u8[1024]{0}', space=vmem, size = 0x400, scoped, tag = 'input window, operand 8']
    #allocation10 [shape = 's32[2]{0}', space=sflag, size = 0x8, scoped, tag = 'scoped memory for vima_gato_policy_forward.1']
    #allocation11 [shape = 'u8[1024]{0}', space=vmem, size = 0x400, scoped, tag = 'input window, operand 9']
    #allocation12 [shape = 'u8[524288]{0}', space=vmem, size = 0x80000, scoped, tag = 'input window, operand 10']
    #allocation13 [shape = 's32[2]{0}', space=sflag, size = 0x8, scoped, tag = 'scoped memory for vima_gato_policy_forward.1']
    #allocation14 [shape = 'u8[1024]{0}', space=vmem, size = 0x400, scoped, tag = 'input window, operand 13']
    #allocation15 [shape = 'u8[512]{0}', space=vmem, size = 0x400, scoped, tag = 'input window, operand 14, single buffered']
    #allocation16 [shape = 's32[1]{0}', space=sflag, size = 0x4, scoped, tag = 'scoped memory for vima_gato_policy_forward.1']
    #allocation17 [shape = 'u8[512]{0}', space=vmem, size = 0x400, scoped, tag = 'input window, operand 15, single buffered']
    %21 = vsyncpa [#allocation5], 0
    %s22 = scalar_lea.sflag [#allocation5], 1
    %23 = vsyncpa %s22, 0
    %24 = vsyncpa [#allocation7], 0
    %s25 = scalar_lea.sflag [#allocation7], 1
    %26 = vsyncpa %s25, 0
    %27 = vsyncpa [#allocation10], 0
    %s28 = scalar_lea.sflag [#allocation10], 1
    %29 = vsyncpa %s28, 0
    %30 = vsyncpa [#allocation13], 0
    %s31 = scalar_lea.sflag [#allocation13], 1
    %32 = vsyncpa %s31, 0
    %33 = vsyncpa [#allocation16], 0
    loop: start=0, step=1, limit=6
    $region2: #{vima_gato_policy_forward.1} parent=1 // loop_pre_header
      _
    $region3: #{vima_gato_policy_forward.1} parent=1 // loop_header
      %s35 = sphi 0, %s39
      %p36 = scmp.ge.s32.totalorder %s35, 6
      %s42 = sphi 0, %s54
      %s43 = sphi 0, %s50
      %s44 = sphi 0, %s42
      %s45 = sphi 0, %s43
      %s46 = sphi 0, %s44
      %s47 = sphi 0, %s45
      %s57 = sphi 0, %s59
      %s60 = sphi 0, %s57
      %s61 = sphi 0, %s60
      %s77 = sphi 0, %s61
      %s83 = sphi 0, %s85
      %s86 = sphi 0, %s83
      %s87 = sphi 0, %s86
      %s103 = sphi 0, %s87
      %s109 = sphi 0, %s111
      %s112 = sphi 0, %s109
      %s113 = sphi 0, %s112
      %s129 = sphi 0, %s113
      %s135 = sphi 0, %s137
      %s138 = sphi 0, %s135
      %s139 = sphi 0, %s138
      %s155 = sphi 0, %s139
      %s161 = sphi 0, %s163
      %s164 = sphi 0, %s161
      %s165 = sphi 0, %s164
      %s181 = sphi 0, %s165
      %s187 = sphi 0, %s189
      %s190 = sphi 0, %s187
      %s191 = sphi 0, %s190
      %s207 = sphi 0, %s191
      %s213 = sphi 0, %s215
      %s216 = sphi 0, %s213
      %s217 = sphi 0, %s216
      %s233 = sphi 0, %s217
      %s239 = sphi 0, %s241
      %s242 = sphi 0, %s239
      %s243 = sphi 0, %s242
      %s259 = sphi 0, %s243
      %s265 = sphi 0, %s267
      %s268 = sphi 0, %s265
      %s269 = sphi 0, %s268
      %s285 = sphi 0, %s269
      %s291 = sphi 0, %s293
      %s294 = sphi 0, %s291
      %s295 = sphi 0, %s294
      %s311 = sphi 0, %s295
      %s317 = sphi 0, %s319
      %s320 = sphi 0, %s317
      %s321 = sphi 0, %s320
      %s337 = sphi 0, %s321
      %s343 = sphi 0, %s345
      %s346 = sphi 0, %s343
      %s347 = sphi 0, %s346
      %s363 = sphi 0, %s347
      %s369 = sphi 0, %s371
      %s372 = sphi 0, %s369
      %s373 = sphi 0, %s372
      %s389 = sphi 0, %s373
      %s395 = sphi 0, %s397
      %s398 = sphi 0, %s395
      %s399 = sphi 0, %s398
      %s415 = sphi 0, %s399
      %s419 = sphi 0, %s419
      %s421 = sphi 0, %s419
      %s422 = sphi 0, %s421
      %s436 = sphi 0, %s422
      %s440 = sphi 0, %s440
      %s442 = sphi 0, %s440
      %s443 = sphi 0, %s442
      %s457 = sphi 0, %s443
      %s463 = sphi 0, %s465
      %s466 = sphi 0, %s463
      %s467 = sphi 0, %s466
      %s483 = sphi 0, %s467
    $region4: #{vima_gato_policy_forward.1} parent=1 // loop_header_branch
      %38 = sbr.rel (%p36) target = $region8
    $region5: #{vima_gato_policy_forward.1} parent=1 // loop_body
      %s40 = ssub.s32 %s35, 1
      %s41 = ssub.s32 %s35, 2
      %s48 = sadd.s32 1, %s43
      %p49 = scmp.ge.s32.totalorder %s48, 2
      %s50 = scalar_select %p49, 0, %s48
      %s51 = sadd.s32 1, %s42
      %s52 = scalar_select %p49, %s51, %s42
      %p53 = scmp.ge.s32.totalorder %s52, 2
      %s54 = scalar_select %p53, 0, %s52
      %s55 = ssub.s32 %s42, %s54
      %p56 = scmp.eq.s32.totalorder %s55, 0
      %s58 = sadd.s32 %s57, 1
      %s59 = scalar_select %p56, %s57, %s58
      %p62 = pneg %p56
      %p63 = scmp.eq.s32.totalorder %s35, 3
      %p64 = por %p62, %p63
      %p65 = scmp.ne.s32.totalorder %s57, %s60
      %p66 = scmp.eq.s32.totalorder %s35, 0
      %p67 = por %p65, %p66
      %p68 = scmp.ne.s32.totalorder %s57, %s60
      %p69 = scmp.eq.s32.totalorder %s40, 3
      %p70 = por %p68, %p69
      %p71 = scmp.ne.s32.totalorder %s60, %s61
      %p72 = scmp.eq.s32.totalorder %s40, 0
      %p73 = por %p71, %p72
      %p74 = scmp.ne.s32.totalorder %s60, %s61
      %p75 = scmp.eq.s32.totalorder %s41, 3
      %p76 = por %p74, %p75
      %p78 = scmp.ne.s32.totalorder %s61, %s77
      %p79 = scmp.eq.s32.totalorder %s41, 0
      %p80 = por %p78, %p79
      %s81 = ssub.s32 %s42, %s54
      %p82 = scmp.eq.s32.totalorder %s81, 0
      %s84 = sadd.s32 %s83, 1
      %s85 = scalar_select %p82, %s83, %s84
      %p88 = pneg %p82
      %p89 = scmp.eq.s32.totalorder %s35, 3
      %p90 = por %p88, %p89
      %p91 = scmp.ne.s32.totalorder %s83, %s86
      %p92 = scmp.eq.s32.totalorder %s35, 0
      %p93 = por %p91, %p92
      %p94 = scmp.ne.s32.totalorder %s83, %s86
      %p95 = scmp.eq.s32.totalorder %s40, 3
      %p96 = por %p94, %p95
      %p97 = scmp.ne.s32.totalorder %s86, %s87
      %p98 = scmp.eq.s32.totalorder %s40, 0
      %p99 = por %p97, %p98
      %p100 = scmp.ne.s32.totalorder %s86, %s87
      %p101 = scmp.eq.s32.totalorder %s41, 3
      %p102 = por %p100, %p101
      %p104 = scmp.ne.s32.totalorder %s87, %s103
      %p105 = scmp.eq.s32.totalorder %s41, 0
      %p106 = por %p104, %p105
      %s107 = ssub.s32 %s43, %s50
      %p108 = scmp.eq.s32.totalorder %s107, 0
      %s110 = sadd.s32 %s109, 1
      %s111 = scalar_select %p108, %s109, %s110
      %p114 = pneg %p108
      %p115 = scmp.eq.s32.totalorder %s35, 3
      %p116 = por %p114, %p115
      %p117 = scmp.ne.s32.totalorder %s109, %s112
      %p118 = scmp.eq.s32.totalorder %s35, 0
      %p119 = por %p117, %p118
      %p120 = scmp.ne.s32.totalorder %s109, %s112
      %p121 = scmp.eq.s32.totalorder %s40, 3
      %p122 = por %p120, %p121
      %p123 = scmp.ne.s32.totalorder %s112, %s113
      %p124 = scmp.eq.s32.totalorder %s40, 0
      %p125 = por %p123, %p124
      %p126 = scmp.ne.s32.totalorder %s112, %s113
      %p127 = scmp.eq.s32.totalorder %s41, 3
      %p128 = por %p126, %p127
      %p130 = scmp.ne.s32.totalorder %s113, %s129
      %p131 = scmp.eq.s32.totalorder %s41, 0
      %p132 = por %p130, %p131
      %s133 = ssub.s32 %s43, %s50
      %p134 = scmp.eq.s32.totalorder %s133, 0
      %s136 = sadd.s32 %s135, 1
      %s137 = scalar_select %p134, %s135, %s136
      %p140 = pneg %p134
      %p141 = scmp.eq.s32.totalorder %s35, 3
      %p142 = por %p140, %p141
      %p143 = scmp.ne.s32.totalorder %s135, %s138
      %p144 = scmp.eq.s32.totalorder %s35, 0
      %p145 = por %p143, %p144
      %p146 = scmp.ne.s32.totalorder %s135, %s138
      %p147 = scmp.eq.s32.totalorder %s40, 3
      %p148 = por %p146, %p147
      %p149 = scmp.ne.s32.totalorder %s138, %s139
      %p150 = scmp.eq.s32.totalorder %s40, 0
      %p151 = por %p149, %p150
      %p152 = scmp.ne.s32.totalorder %s138, %s139
      %p153 = scmp.eq.s32.totalorder %s41, 3
      %p154 = por %p152, %p153
      %p156 = scmp.ne.s32.totalorder %s139, %s155
      %p157 = scmp.eq.s32.totalorder %s41, 0
      %p158 = por %p156, %p157
      %s159 = ssub.s32 %s43, %s50
      %p160 = scmp.eq.s32.totalorder %s159, 0
      %s162 = sadd.s32 %s161, 1
      %s163 = scalar_select %p160, %s161, %s162
      %p166 = pneg %p160
      %p167 = scmp.eq.s32.totalorder %s35, 3
      %p168 = por %p166, %p167
      %p169 = scmp.ne.s32.totalorder %s161, %s164
      %p170 = scmp.eq.s32.totalorder %s35, 0
      %p171 = por %p169, %p170
      %p172 = scmp.ne.s32.totalorder %s161, %s164
      %p173 = scmp.eq.s32.totalorder %s40, 3
      %p174 = por %p172, %p173
      %p175 = scmp.ne.s32.totalorder %s164, %s165
      %p176 = scmp.eq.s32.totalorder %s40, 0
      %p177 = por %p175, %p176
      %p178 = scmp.ne.s32.totalorder %s164, %s165
      %p179 = scmp.eq.s32.totalorder %s41, 3
      %p180 = por %p178, %p179
      %p182 = scmp.ne.s32.totalorder %s165, %s181
      %p183 = scmp.eq.s32.totalorder %s41, 0
      %p184 = por %p182, %p183
      %s185 = ssub.s32 %s43, %s50
      %p186 = scmp.eq.s32.totalorder %s185, 0
      %s188 = sadd.s32 %s187, 1
      %s189 = scalar_select %p186, %s187, %s188
      %p192 = pneg %p186
      %p193 = scmp.eq.s32.totalorder %s35, 3
      %p194 = por %p192, %p193
      %p195 = scmp.ne.s32.totalorder %s187, %s190
      %p196 = scmp.eq.s32.totalorder %s35, 0
      %p197 = por %p195, %p196
      %p198 = scmp.ne.s32.totalorder %s187, %s190
      %p199 = scmp.eq.s32.totalorder %s40, 3
      %p200 = por %p198, %p199
      %p201 = scmp.ne.s32.totalorder %s190, %s191
      %p202 = scmp.eq.s32.totalorder %s40, 0
      %p203 = por %p201, %p202
      %p204 = scmp.ne.s32.totalorder %s190, %s191
      %p205 = scmp.eq.s32.totalorder %s41, 3
      %p206 = por %p204, %p205
      %p208 = scmp.ne.s32.totalorder %s191, %s207
      %p209 = scmp.eq.s32.totalorder %s41, 0
      %p210 = por %p208, %p209
      %s211 = ssub.s32 %s43, %s50
      %p212 = scmp.eq.s32.totalorder %s211, 0
      %s214 = sadd.s32 %s213, 1
      %s215 = scalar_select %p212, %s213, %s214
      %p218 = pneg %p212
      %p219 = scmp.eq.s32.totalorder %s35, 3
      %p220 = por %p218, %p219
      %p221 = scmp.ne.s32.totalorder %s213, %s216
      %p222 = scmp.eq.s32.totalorder %s35, 0
      %p223 = por %p221, %p222
      %p224 = scmp.ne.s32.totalorder %s213, %s216
      %p225 = scmp.eq.s32.totalorder %s40, 3
      %p226 = por %p224, %p225
      %p227 = scmp.ne.s32.totalorder %s216, %s217
      %p228 = scmp.eq.s32.totalorder %s40, 0
      %p229 = por %p227, %p228
      %p230 = scmp.ne.s32.totalorder %s216, %s217
      %p231 = scmp.eq.s32.totalorder %s41, 3
      %p232 = por %p230, %p231
      %p234 = scmp.ne.s32.totalorder %s217, %s233
      %p235 = scmp.eq.s32.totalorder %s41, 0
      %p236 = por %p234, %p235
      %s237 = ssub.s32 %s43, %s50
      %p238 = scmp.eq.s32.totalorder %s237, 0
      %s240 = sadd.s32 %s239, 1
      %s241 = scalar_select %p238, %s239, %s240
      %p244 = pneg %p238
      %p245 = scmp.eq.s32.totalorder %s35, 3
      %p246 = por %p244, %p245
      %p247 = scmp.ne.s32.totalorder %s239, %s242
      %p248 = scmp.eq.s32.totalorder %s35, 0
      %p249 = por %p247, %p248
      %p250 = scmp.ne.s32.totalorder %s239, %s242
      %p251 = scmp.eq.s32.totalorder %s40, 3
      %p252 = por %p250, %p251
      %p253 = scmp.ne.s32.totalorder %s242, %s243
      %p254 = scmp.eq.s32.totalorder %s40, 0
      %p255 = por %p253, %p254
      %p256 = scmp.ne.s32.totalorder %s242, %s243
      %p257 = scmp.eq.s32.totalorder %s41, 3
      %p258 = por %p256, %p257
      %p260 = scmp.ne.s32.totalorder %s243, %s259
      %p261 = scmp.eq.s32.totalorder %s41, 0
      %p262 = por %p260, %p261
      %s263 = ssub.s32 %s43, %s50
      %p264 = scmp.eq.s32.totalorder %s263, 0
      %s266 = sadd.s32 %s265, 1
      %s267 = scalar_select %p264, %s265, %s266
      %p270 = pneg %p264
      %p271 = scmp.eq.s32.totalorder %s35, 3
      %p272 = por %p270, %p271
      %p273 = scmp.ne.s32.totalorder %s265, %s268
      %p274 = scmp.eq.s32.totalorder %s35, 0
      %p275 = por %p273, %p274
      %p276 = scmp.ne.s32.totalorder %s265, %s268
      %p277 = scmp.eq.s32.totalorder %s40, 3
      %p278 = por %p276, %p277
      %p279 = scmp.ne.s32.totalorder %s268, %s269
      %p280 = scmp.eq.s32.totalorder %s40, 0
      %p281 = por %p279, %p280
      %p282 = scmp.ne.s32.totalorder %s268, %s269
      %p283 = scmp.eq.s32.totalorder %s41, 3
      %p284 = por %p282, %p283
      %p286 = scmp.ne.s32.totalorder %s269, %s285
      %p287 = scmp.eq.s32.totalorder %s41, 0
      %p288 = por %p286, %p287
      %s289 = ssub.s32 %s43, %s50
      %p290 = scmp.eq.s32.totalorder %s289, 0
      %s292 = sadd.s32 %s291, 1
      %s293 = scalar_select %p290, %s291, %s292
      %p296 = pneg %p290
      %p297 = scmp.eq.s32.totalorder %s35, 3
      %p298 = por %p296, %p297
      %p299 = scmp.ne.s32.totalorder %s291, %s294
      %p300 = scmp.eq.s32.totalorder %s35, 0
      %p301 = por %p299, %p300
      %p302 = scmp.ne.s32.totalorder %s291, %s294
      %p303 = scmp.eq.s32.totalorder %s40, 3
      %p304 = por %p302, %p303
      %p305 = scmp.ne.s32.totalorder %s294, %s295
      %p306 = scmp.eq.s32.totalorder %s40, 0
      %p307 = por %p305, %p306
      %p308 = scmp.ne.s32.totalorder %s294, %s295
      %p309 = scmp.eq.s32.totalorder %s41, 3
      %p310 = por %p308, %p309
      %p312 = scmp.ne.s32.totalorder %s295, %s311
      %p313 = scmp.eq.s32.totalorder %s41, 0
      %p314 = por %p312, %p313
      %s315 = ssub.s32 %s43, %s50
      %p316 = scmp.eq.s32.totalorder %s315, 0
      %s318 = sadd.s32 %s317, 1
      %s319 = scalar_select %p316, %s317, %s318
      %p322 = pneg %p316
      %p323 = scmp.eq.s32.totalorder %s35, 3
      %p324 = por %p322, %p323
      %p325 = scmp.ne.s32.totalorder %s317, %s320
      %p326 = scmp.eq.s32.totalorder %s35, 0
      %p327 = por %p325, %p326
      %p328 = scmp.ne.s32.totalorder %s317, %s320
      %p329 = scmp.eq.s32.totalorder %s40, 3
      %p330 = por %p328, %p329
      %p331 = scmp.ne.s32.totalorder %s320, %s321
      %p332 = scmp.eq.s32.totalorder %s40, 0
      %p333 = por %p331, %p332
      %p334 = scmp.ne.s32.totalorder %s320, %s321
      %p335 = scmp.eq.s32.totalorder %s41, 3
      %p336 = por %p334, %p335
      %p338 = scmp.ne.s32.totalorder %s321, %s337
      %p339 = scmp.eq.s32.totalorder %s41, 0
      %p340 = por %p338, %p339
      %s341 = ssub.s32 %s43, %s50
      %p342 = scmp.eq.s32.totalorder %s341, 0
      %s344 = sadd.s32 %s343, 1
      %s345 = scalar_select %p342, %s343, %s344
      %p348 = pneg %p342
      %p349 = scmp.eq.s32.totalorder %s35, 3
      %p350 = por %p348, %p349
      %p351 = scmp.ne.s32.totalorder %s343, %s346
      %p352 = scmp.eq.s32.totalorder %s35, 0
      %p353 = por %p351, %p352
      %p354 = scmp.ne.s32.totalorder %s343, %s346
      %p355 = scmp.eq.s32.totalorder %s40, 3
      %p356 = por %p354, %p355
      %p357 = scmp.ne.s32.totalorder %s346, %s347
      %p358 = scmp.eq.s32.totalorder %s40, 0
      %p359 = por %p357, %p358
      %p360 = scmp.ne.s32.totalorder %s346, %s347
      %p361 = scmp.eq.s32.totalorder %s41, 3
      %p362 = por %p360, %p361
      %p364 = scmp.ne.s32.totalorder %s347, %s363
      %p365 = scmp.eq.s32.totalorder %s41, 0
      %p366 = por %p364, %p365
      %s367 = ssub.s32 %s43, %s50
      %p368 = scmp.eq.s32.totalorder %s367, 0
      %s370 = sadd.s32 %s369, 1
      %s371 = scalar_select %p368, %s369, %s370
      %p374 = pneg %p368
      %p375 = scmp.eq.s32.totalorder %s35, 3
      %p376 = por %p374, %p375
      %p377 = scmp.ne.s32.totalorder %s369, %s372
      %p378 = scmp.eq.s32.totalorder %s35, 0
      %p379 = por %p377, %p378
      %p380 = scmp.ne.s32.totalorder %s369, %s372
      %p381 = scmp.eq.s32.totalorder %s40, 3
      %p382 = por %p380, %p381
      %p383 = scmp.ne.s32.totalorder %s372, %s373
      %p384 = scmp.eq.s32.totalorder %s40, 0
      %p385 = por %p383, %p384
      %p386 = scmp.ne.s32.totalorder %s372, %s373
      %p387 = scmp.eq.s32.totalorder %s41, 3
      %p388 = por %p386, %p387
      %p390 = scmp.ne.s32.totalorder %s373, %s389
      %p391 = scmp.eq.s32.totalorder %s41, 0
      %p392 = por %p390, %p391
      %s393 = ssub.s32 %s43, %s50
      %p394 = scmp.eq.s32.totalorder %s393, 0
      %s396 = sadd.s32 %s395, 1
      %s397 = scalar_select %p394, %s395, %s396
      %p400 = pneg %p394
      %p401 = scmp.eq.s32.totalorder %s35, 3
      %p402 = por %p400, %p401
      %p403 = scmp.ne.s32.totalorder %s395, %s398
      %p404 = scmp.eq.s32.totalorder %s35, 0
      %p405 = por %p403, %p404
      %p406 = scmp.ne.s32.totalorder %s395, %s398
      %p407 = scmp.eq.s32.totalorder %s40, 3
      %p408 = por %p406, %p407
      %p409 = scmp.ne.s32.totalorder %s398, %s399
      %p410 = scmp.eq.s32.totalorder %s40, 0
      %p411 = por %p409, %p410
      %p412 = scmp.ne.s32.totalorder %s398, %s399
      %p413 = scmp.eq.s32.totalorder %s41, 3
      %p414 = por %p412, %p413
      %p416 = scmp.ne.s32.totalorder %s399, %s415
      %p417 = scmp.eq.s32.totalorder %s41, 0
      %p418 = por %p416, %p417
      %s420 = sadd.s32 %s419, 1
      %p423 = scmp.eq.s32.totalorder %s35, 3
      %p424 = scmp.ne.s32.totalorder %s419, %s421
      %p425 = scmp.eq.s32.totalorder %s35, 0
      %p426 = por %p424, %p425
      %p427 = scmp.ne.s32.totalorder %s419, %s421
      %p428 = scmp.eq.s32.totalorder %s40, 3
      %p429 = por %p427, %p428
      %p430 = scmp.ne.s32.totalorder %s421, %s422
      %p431 = scmp.eq.s32.totalorder %s40, 0
      %p432 = por %p430, %p431
      %p433 = scmp.ne.s32.totalorder %s421, %s422
      %p434 = scmp.eq.s32.totalorder %s41, 3
      %p435 = por %p433, %p434
      %p437 = scmp.ne.s32.totalorder %s422, %s436
      %p438 = scmp.eq.s32.totalorder %s41, 0
      %p439 = por %p437, %p438
      %s441 = sadd.s32 %s440, 1
      %p444 = scmp.eq.s32.totalorder %s35, 3
      %p445 = scmp.ne.s32.totalorder %s440, %s442
      %p446 = scmp.eq.s32.totalorder %s35, 0
      %p447 = por %p445, %p446
      %p448 = scmp.ne.s32.totalorder %s440, %s442
      %p449 = scmp.eq.s32.totalorder %s40, 3
      %p450 = por %p448, %p449
      %p451 = scmp.ne.s32.totalorder %s442, %s443
      %p452 = scmp.eq.s32.totalorder %s40, 0
      %p453 = por %p451, %p452
      %p454 = scmp.ne.s32.totalorder %s442, %s443
      %p455 = scmp.eq.s32.totalorder %s41, 3
      %p456 = por %p454, %p455
      %p458 = scmp.ne.s32.totalorder %s443, %s457
      %p459 = scmp.eq.s32.totalorder %s41, 0
      %p460 = por %p458, %p459
      %s461 = ssub.s32 %s42, %s54
      %p462 = scmp.eq.s32.totalorder %s461, 0
      %s464 = sadd.s32 %s463, 1
      %s465 = scalar_select %p462, %s463, %s464
      %p468 = pneg %p462
      %p469 = scmp.eq.s32.totalorder %s35, 3
      %p470 = por %p468, %p469
      %p471 = scmp.ne.s32.totalorder %s463, %s466
      %p472 = scmp.eq.s32.totalorder %s35, 0
      %p473 = por %p471, %p472
      %p474 = scmp.ne.s32.totalorder %s463, %s466
      %p475 = scmp.eq.s32.totalorder %s40, 3
      %p476 = por %p474, %p475
      %p477 = scmp.ne.s32.totalorder %s466, %s467
      %p478 = scmp.eq.s32.totalorder %s40, 0
      %p479 = por %p477, %p478
      %p480 = scmp.ne.s32.totalorder %s466, %s467
      %p481 = scmp.eq.s32.totalorder %s41, 3
      %p482 = por %p480, %p481
      %p484 = scmp.ne.s32.totalorder %s467, %s483
      %p485 = scmp.eq.s32.totalorder %s41, 0
      %p486 = por %p484, %p485
      %p487 = scmp.le.s32.totalorder 1, %s35
      %p488 = scmp.lt.s32.totalorder %s35, 5
      %p489 = pnand %p487, %p488
      %p490 = pneg %p489
      // Predicated region
      $region9: #{vima_gato_policy_forward.1} parent=5 // pred_check
        _
      $region10: #{vima_gato_policy_forward.1} parent=5 // pred_check_branch
        %492 = sbr.rel (%p489) target = $region12
      $region11: #{vima_gato_policy_forward.1} parent=5 // pred_region
        %s493 = ssub.s32 %s35, 1
        // Predicated region
        $region13: #{vima_gato_policy_forward.1} parent=11 // pred_check
          %p494 = pneg %p432
        $region14: #{vima_gato_policy_forward.1} parent=11 // pred_check_branch
          %496 = sbr.rel (%p494) target = $region16
        $region15: #{vima_gato_policy_forward.1} parent=11 // pred_region
          %s498 = ssub.s32 16, 16
          %499 = vsyncadd [#allocation16], %s498
          %s501 = sshll.u32 [#allocation15], 4
          %s502 = int_to_ptr.vmem [resolvable:$true] %s501
          %504 = dma.hbm_to_vmem [thread:$0]  %s14, 16, %s502, [#allocation16]
        $region16: #{vima_gato_policy_forward.1} parent=11 // pred_fallthru
          _
        // Predicated region
        $region17: #{vima_gato_policy_forward.1} parent=11 // pred_check
          %p505 = pneg %p453
        $region18: #{vima_gato_policy_forward.1} parent=11 // pred_check_branch
          %507 = sbr.rel (%p505) target = $region20
        $region19: #{vima_gato_policy_forward.1} parent=11 // pred_region
          %s509 = ssub.s32 16, 16
          %510 = vsyncadd [#allocation16], %s509
          %s512 = sshll.u32 [#allocation17], 4
          %s513 = int_to_ptr.vmem [resolvable:$true] %s512
          %515 = dma.hbm_to_vmem [thread:$0]  %s15, 16, %s513, [#allocation16]
        $region20: #{vima_gato_policy_forward.1} parent=11 // pred_fallthru
          _
      $region12: #{vima_gato_policy_forward.1} parent=5 // pred_fallthru
        _
      %p516 = scmp.lt.s32.totalorder %s35, 4
      // Predicated region
      $region21: #{vima_gato_policy_forward.1} parent=5 // pred_check
        %p517 = pneg %p516
      $region22: #{vima_gato_policy_forward.1} parent=5 // pred_check_branch
        %519 = sbr.rel (%p517) target = $region24
      $region23: #{vima_gato_policy_forward.1} parent=5 // pred_region
        // Predicated region
        $region25: #{vima_gato_policy_forward.1} parent=23 // pred_check
          %p520 = pneg %p67
        $region26: #{vima_gato_policy_forward.1} parent=23 // pred_check_branch
          %522 = sbr.rel (%p520) target = $region28
        $region27: #{vima_gato_policy_forward.1} parent=23 // pred_region
          %p523 = scmp.lt.s32.totalorder %s42, 1
          %s524 = scalar_select %p523, %s42, 1
          %s525 = smul.addr %s524, 2
          %s526 = smul.addr %s525, 8
          %s527 = scalar_lea.vmem %s0, %s526
        $region28: #{vima_gato_policy_forward.1} parent=23 // pred_fallthru
          _
        // Predicated region
        $region29: #{vima_gato_policy_forward.1} parent=23 // pred_check
          %p528 = pneg %p93
        $region30: #{vima_gato_policy_forward.1} parent=23 // pred_check_branch
          %530 = sbr.rel (%p528) target = $region32
        $region31: #{vima_gato_policy_forward.1} parent=23 // pred_region
          %p531 = scmp.lt.s32.totalorder %s42, 1
          %s532 = scalar_select %p531, %s42, 1
          %s533 = scalar_lea.vmem %s1, %s532
        $region32: #{vima_gato_policy_forward.1} parent=23 // pred_fallthru
          _
        // Predicated region
        $region33: #{vima_gato_policy_forward.1} parent=23 // pred_check
          %p534 = pneg %p119
        $region34: #{vima_gato_policy_forward.1} parent=23 // pred_check_branch
          %536 = sbr.rel (%p534) target = $region36
        $region35: #{vima_gato_policy_forward.1} parent=23 // pred_region
          %p537 = scmp.lt.s32.totalorder %s43, 1
          %s538 = scalar_select %p537, %s43, 1
          %s539 = scalar_lea.vmem %s2, %s538
        $region36: #{vima_gato_policy_forward.1} parent=23 // pred_fallthru
          _
        // Predicated region
        $region37: #{vima_gato_policy_forward.1} parent=23 // pred_check
          %p540 = pneg %p145
        $region38: #{vima_gato_policy_forward.1} parent=23 // pred_check_branch
          %542 = sbr.rel (%p540) target = $region40
        $region39: #{vima_gato_policy_forward.1} parent=23 // pred_region
          %s543 = sand.u32 %s135, 1
          %s544 = scalar_lea.sflag [#allocation5], %s543
          %s545 = sand.u32 %s135, 1
          %s546 = scalar_lea.vmem [#allocation4], %s545
          %s548 = ssub.s32 16, 16
          %549 = vsyncadd %s544, %s548
          %s550 = smul.addr %s43, 16
          %s551 = scalar_lea.hbm %s3, %s550
          %s553 = sshll.u32 %s546, 4
          %s554 = int_to_ptr.vmem [resolvable:$true] %s553
          %556 = dma.hbm_to_vmem [thread:$0]  %s551, 16, %s554, %s544
        $region40: #{vima_gato_policy_forward.1} parent=23 // pred_fallthru
          _
        // Predicated region
        $region41: #{vima_gato_policy_forward.1} parent=23 // pred_check
          %p557 = pneg %p171
        $region42: #{vima_gato_policy_forward.1} parent=23 // pred_check_branch
          %559 = sbr.rel (%p557) target = $region44
        $region43: #{vima_gato_policy_forward.1} parent=23 // pred_region
          %s560 = sand.u32 %s35, 1
          %s561 = scalar_lea.sflag [#allocation7], %s560
          %s562 = sand.u32 %s161, 1
          %s563 = smul.addr %s562, 192
          %s564 = scalar_lea.vmem [#allocation6], %s563
          %s566 = ssub.s32 3072, 3072
          %567 = vsyncadd %s561, %s566
          %s568 = smul.addr %s43, 48
          %s569 = smul.addr %s568, 64
          %s570 = scalar_lea.hbm %s4, %s569
          %s571 = sshll.u32 %s564, 4
          %s572 = int_to_ptr.vmem [resolvable:$true] %s571
          %577 = dma.hbm_to_vmem [thread:$0]  %s570, 3072, %s572, %s561, 192, 192, 12
        $region44: #{vima_gato_policy_forward.1} parent=23 // pred_fallthru
          _
        // Predicated region
        $region45: #{vima_gato_policy_forward.1} parent=23 // pred_check
          %p578 = pneg %p197
        $region46: #{vima_gato_policy_forward.1} parent=23 // pred_check_branch
          %580 = sbr.rel (%p578) target = $region48
        $region47: #{vima_gato_policy_forward.1} parent=23 // pred_region
          %s581 = sand.u32 %s35, 1
          %s582 = scalar_lea.sflag [#allocation7], %s581
          %s583 = sand.u32 %s187, 1
          %s584 = smul.addr %s583, 3
          %s585 = scalar_lea.vmem [#allocation8], %s584
          %s587 = ssub.s32 48, 48
          %588 = vsyncadd %s582, %s587
          %s589 = smul.addr %s43, 3
          %s590 = smul.addr %s589, 16
          %s591 = scalar_lea.hbm %s5, %s590
          %s593 = sshll.u32 %s585, 4
          %s594 = int_to_ptr.vmem [resolvable:$true] %s593
          %596 = dma.hbm_to_vmem [thread:$0]  %s591, 48, %s594, %s582
        $region48: #{vima_gato_policy_forward.1} parent=23 // pred_fallthru
          _
        // Predicated region
        $region49: #{vima_gato_policy_forward.1} parent=23 // pred_check
          %p597 = pneg %p223
        $region50: #{vima_gato_policy_forward.1} parent=23 // pred_check_branch
          %599 = sbr.rel (%p597) target = $region52
        $region51: #{vima_gato_policy_forward.1} parent=23 // pred_region
          %p600 = scmp.lt.s32.totalorder %s43, 1
          %s601 = scalar_select %p600, %s43, 1
          %s602 = smul.addr %s601, 16
          %s603 = smul.addr %s602, 4
          %s604 = scalar_lea.vmem %s6, %s603
        $region52: #{vima_gato_policy_forward.1} parent=23 // pred_fallthru
          _
        // Predicated region
        $region53: #{vima_gato_policy_forward.1} parent=23 // pred_check
          %p605 = pneg %p249
        $region54: #{vima_gato_policy_forward.1} parent=23 // pred_check_branch
          %607 = sbr.rel (%p605) target = $region56
        $region55: #{vima_gato_policy_forward.1} parent=23 // pred_region
          %p608 = scmp.lt.s32.totalorder %s43, 1
          %s609 = scalar_select %p608, %s43, 1
          %s610 = scalar_lea.vmem %s7, %s609
        $region56: #{vima_gato_policy_forward.1} parent=23 // pred_fallthru
          _
        // Predicated region
        $region57: #{vima_gato_policy_forward.1} parent=23 // pred_check
          %p611 = pneg %p275
        $region58: #{vima_gato_policy_forward.1} parent=23 // pred_check_branch
          %613 = sbr.rel (%p611) target = $region60
        $region59: #{vima_gato_policy_forward.1} parent=23 // pred_region
          %s614 = sand.u32 %s35, 1
          %s615 = scalar_lea.sflag [#allocation10], %s614
          %s616 = sand.u32 %s265, 1
          %s617 = scalar_lea.vmem [#allocation9], %s616
          %s619 = ssub.s32 16, 16
          %620 = vsyncadd %s615, %s619
          %s621 = smul.addr %s43, 16
          %s622 = scalar_lea.hbm %s8, %s621
          %s624 = sshll.u32 %s617, 4
          %s625 = int_to_ptr.vmem [resolvable:$true] %s624
          %627 = dma.hbm_to_vmem [thread:$0]  %s622, 16, %s625, %s615
        $region60: #{vima_gato_policy_forward.1} parent=23 // pred_fallthru
          _
        // Predicated region
        $region61: #{vima_gato_policy_forward.1} parent=23 // pred_check
          %p628 = pneg %p301
        $region62: #{vima_gato_policy_forward.1} parent=23 // pred_check_branch
          %630 = sbr.rel (%p628) target = $region64
        $region63: #{vima_gato_policy_forward.1} parent=23 // pred_region
          %s631 = sand.u32 %s35, 1
          %s632 = scalar_lea.sflag [#allocation10], %s631
          %s633 = sand.u32 %s291, 1
          %s634 = scalar_lea.vmem [#allocation11], %s633
          %s636 = ssub.s32 16, 16
          %637 = vsyncadd %s632, %s636
          %s638 = smul.addr %s43, 16
          %s639 = scalar_lea.hbm %s9, %s638
          %s641 = sshll.u32 %s634, 4
          %s642 = int_to_ptr.vmem [resolvable:$true] %s641
          %644 = dma.hbm_to_vmem [thread:$0]  %s639, 16, %s642, %s632
        $region64: #{vima_gato_policy_forward.1} parent=23 // pred_fallthru
          _
        // Predicated region
        $region65: #{vima_gato_policy_forward.1} parent=23 // pred_check
          %p645 = pneg %p327
        $region66: #{vima_gato_policy_forward.1} parent=23 // pred_check_branch
          %647 = sbr.rel (%p645) target = $region68
        $region67: #{vima_gato_policy_forward.1} parent=23 // pred_region
          %s648 = sand.u32 %s35, 1
          %s649 = scalar_lea.sflag [#allocation13], %s648
          %s650 = sand.u32 %s317, 1
          %s651 = smul.addr %s650, 512
          %s652 = scalar_lea.vmem [#allocation12], %s651
          %s654 = ssub.s32 8192, 8192
          %655 = vsyncadd %s649, %s654
          %s656 = smul.addr %s43, 128
          %s657 = smul.addr %s656, 64
          %s658 = scalar_lea.hbm %s10, %s657
          %s659 = sshll.u32 %s652, 4
          %s660 = int_to_ptr.vmem [resolvable:$true] %s659
          %665 = dma.hbm_to_vmem [thread:$0]  %s658, 8192, %s660, %s649, 512, 512, 32
        $region68: #{vima_gato_policy_forward.1} parent=23 // pred_fallthru
          _
        // Predicated region
        $region69: #{vima_gato_policy_forward.1} parent=23 // pred_check
          %p666 = pneg %p353
        $region70: #{vima_gato_policy_forward.1} parent=23 // pred_check_branch
          %668 = sbr.rel (%p666) target = $region72
        $region71: #{vima_gato_policy_forward.1} parent=23 // pred_region
          %p669 = scmp.lt.s32.totalorder %s43, 1
          %s670 = scalar_select %p669, %s43, 1
          %s671 = smul.addr %s670, 8
          %s672 = scalar_lea.vmem %s11, %s671
        $region72: #{vima_gato_policy_forward.1} parent=23 // pred_fallthru
          _
        // Predicated region
        $region73: #{vima_gato_policy_forward.1} parent=23 // pred_check
          %p673 = pneg %p379
        $region74: #{vima_gato_policy_forward.1} parent=23 // pred_check_branch
          %675 = sbr.rel (%p673) target = $region76
        $region75: #{vima_gato_policy_forward.1} parent=23 // pred_region
          %p676 = scmp.lt.s32.totalorder %s43, 1
          %s677 = scalar_select %p676, %s43, 1
          %s678 = smul.addr %s677, 64
          %s679 = smul.addr %s678, 4
          %s680 = scalar_lea.vmem %s12, %s679
        $region76: #{vima_gato_policy_forward.1} parent=23 // pred_fallthru
          _
        // Predicated region
        $region77: #{vima_gato_policy_forward.1} parent=23 // pred_check
          %p681 = pneg %p405
        $region78: #{vima_gato_policy_forward.1} parent=23 // pred_check_branch
          %683 = sbr.rel (%p681) target = $region80
        $region79: #{vima_gato_policy_forward.1} parent=23 // pred_region
          %s684 = sand.u32 %s35, 1
          %s685 = scalar_lea.sflag [#allocation13], %s684
          %s686 = sand.u32 %s395, 1
          %s687 = scalar_lea.vmem [#allocation14], %s686
          %s689 = ssub.s32 16, 16
          %690 = vsyncadd %s685, %s689
          %s691 = smul.addr %s43, 16
          %s692 = scalar_lea.hbm %s13, %s691
          %s694 = sshll.u32 %s687, 4
          %s695 = int_to_ptr.vmem [resolvable:$true] %s694
          %697 = dma.hbm_to_vmem [thread:$0]  %s692, 16, %s695, %s685
        $region80: #{vima_gato_policy_forward.1} parent=23 // pred_fallthru
          _
      $region24: #{vima_gato_policy_forward.1} parent=5 // pred_fallthru
        _
      %p698 = scmp.le.s32.totalorder 1, %s35
      %p699 = scmp.lt.s32.totalorder %s35, 5
      %p700 = pnand %p698, %p699
      %p701 = pneg %p700
      // Predicated region
      $region81: #{vima_gato_policy_forward.1} parent=5 // pred_check
        _
      $region82: #{vima_gato_policy_forward.1} parent=5 // pred_check_branch
        %703 = sbr.rel (%p700) target = $region84
      $region83: #{vima_gato_policy_forward.1} parent=5 // pred_region
        %s704 = ssub.s32 %s35, 1
        %s705 = sand.u32 %s138, 1
        %s706 = scalar_lea.sflag [#allocation5], %s705
        %s707 = sand.u32 %s138, 1
        %s708 = scalar_lea.vmem [#allocation4], %s707
        // Predicated region
        $region85: #{vima_gato_policy_forward.1} parent=83 // pred_check
          %p709 = pneg %p151
        $region86: #{vima_gato_policy_forward.1} parent=83 // pred_check_branch
          %711 = sbr.rel (%p709) target = $region88
        $region87: #{vima_gato_policy_forward.1} parent=83 // pred_region
          %712 = dma.done %s706, 16
        $region88: #{vima_gato_policy_forward.1} parent=83 // pred_fallthru
          _
        %s713 = sand.u32 %s40, 1
        %s714 = scalar_lea.sflag [#allocation7], %s713
        %s715 = sand.u32 %s164, 1
        %s716 = smul.addr %s715, 192
        %s717 = scalar_lea.vmem [#allocation6], %s716
        // Predicated region
        $region89: #{vima_gato_policy_forward.1} parent=83 // pred_check
          %p718 = pneg %p177
        $region90: #{vima_gato_policy_forward.1} parent=83 // pred_check_branch
          %720 = sbr.rel (%p718) target = $region92
        $region91: #{vima_gato_policy_forward.1} parent=83 // pred_region
          %721 = dma.done %s714, 3072
        $region92: #{vima_gato_policy_forward.1} parent=83 // pred_fallthru
          _
        %s722 = sand.u32 %s40, 1
        %s723 = scalar_lea.sflag [#allocation7], %s722
        %s724 = sand.u32 %s190, 1
        %s725 = smul.addr %s724, 3
        %s726 = scalar_lea.vmem [#allocation8], %s725
        // Predicated region
        $region93: #{vima_gato_policy_forward.1} parent=83 // pred_check
          %p727 = pneg %p203
        $region94: #{vima_gato_policy_forward.1} parent=83 // pred_check_branch
          %729 = sbr.rel (%p727) target = $region96
        $region95: #{vima_gato_policy_forward.1} parent=83 // pred_region
          %730 = dma.done %s723, 48
        $region96: #{vima_gato_policy_forward.1} parent=83 // pred_fallthru
          _
        %s731 = sand.u32 %s40, 1
        %s732 = scalar_lea.sflag [#allocation10], %s731
        %s733 = sand.u32 %s268, 1
        %s734 = scalar_lea.vmem [#allocation9], %s733
        // Predicated region
        $region97: #{vima_gato_policy_forward.1} parent=83 // pred_check
          %p735 = pneg %p281
        $region98: #{vima_gato_policy_forward.1} parent=83 // pred_check_branch
          %737 = sbr.rel (%p735) target = $region100
        $region99: #{vima_gato_policy_forward.1} parent=83 // pred_region
          %738 = dma.done %s732, 16
        $region100: #{vima_gato_policy_forward.1} parent=83 // pred_fallthru
          _
        %s739 = sand.u32 %s40, 1
        %s740 = scalar_lea.sflag [#allocation10], %s739
        %s741 = sand.u32 %s294, 1
        %s742 = scalar_lea.vmem [#allocation11], %s741
        // Predicated region
        $region101: #{vima_gato_policy_forward.1} parent=83 // pred_check
          %p743 = pneg %p307
        $region102: #{vima_gato_policy_forward.1} parent=83 // pred_check_branch
          %745 = sbr.rel (%p743) target = $region104
        $region103: #{vima_gato_policy_forward.1} parent=83 // pred_region
          %746 = dma.done %s740, 16
        $region104: #{vima_gato_policy_forward.1} parent=83 // pred_fallthru
          _
        %s747 = sand.u32 %s40, 1
        %s748 = scalar_lea.sflag [#allocation13], %s747
        %s749 = sand.u32 %s320, 1
        %s750 = smul.addr %s749, 512
        %s751 = scalar_lea.vmem [#allocation12], %s750
        // Predicated region
        $region105: #{vima_gato_policy_forward.1} parent=83 // pred_check
          %p752 = pneg %p333
        $region106: #{vima_gato_policy_forward.1} parent=83 // pred_check_branch
          %754 = sbr.rel (%p752) target = $region108
        $region107: #{vima_gato_policy_forward.1} parent=83 // pred_region
          %755 = dma.done %s748, 8192
        $region108: #{vima_gato_policy_forward.1} parent=83 // pred_fallthru
          _
        %s756 = sand.u32 %s40, 1
        %s757 = scalar_lea.sflag [#allocation13], %s756
        %s758 = sand.u32 %s398, 1
        %s759 = scalar_lea.vmem [#allocation14], %s758
        // Predicated region
        $region109: #{vima_gato_policy_forward.1} parent=83 // pred_check
          %p760 = pneg %p411
        $region110: #{vima_gato_policy_forward.1} parent=83 // pred_check_branch
          %762 = sbr.rel (%p760) target = $region112
        $region111: #{vima_gato_policy_forward.1} parent=83 // pred_region
          %763 = dma.done %s757, 16
        $region112: #{vima_gato_policy_forward.1} parent=83 // pred_fallthru
          _
        // Predicated region
        $region113: #{vima_gato_policy_forward.1} parent=83 // pred_check
          %p764 = pneg %p432
        $region114: #{vima_gato_policy_forward.1} parent=83 // pred_check_branch
          %766 = sbr.rel (%p764) target = $region116
        $region115: #{vima_gato_policy_forward.1} parent=83 // pred_region
          %767 = dma.done [#allocation16], 16
        $region116: #{vima_gato_policy_forward.1} parent=83 // pred_fallthru
          _
        // Predicated region
        $region117: #{vima_gato_policy_forward.1} parent=83 // pred_check
          %p768 = pneg %p453
        $region118: #{vima_gato_policy_forward.1} parent=83 // pred_check_branch
          %770 = sbr.rel (%p768) target = $region120
        $region119: #{vima_gato_policy_forward.1} parent=83 // pred_region
          %771 = dma.done [#allocation16], 16
        $region120: #{vima_gato_policy_forward.1} parent=83 // pred_fallthru
          _
        %p772 = scmp.lt.s32.totalorder %s44, 1
        %s773 = scalar_select %p772, %s44, 1
        %s774 = smul.addr %s773, 2
        %s775 = smul.addr %s774, 8
        %s776 = scalar_lea.vmem %s0, %s775
        %p777 = pneg %p73
        %p778 = pneg %p70
        %p779 = scmp.lt.s32.totalorder %s44, 1
        %s780 = scalar_select %p779, %s44, 1
        %s781 = scalar_lea.vmem %s1, %s780
        %p782 = pneg %p99
        %p783 = pneg %p96
        %p784 = scmp.lt.s32.totalorder %s45, 1
        %s785 = scalar_select %p784, %s45, 1
        %s786 = scalar_lea.vmem %s2, %s785
        %p787 = pneg %p125
        %p788 = pneg %p122
        %s789 = sand.u32 %s138, 1
        %s790 = scalar_lea.sflag [#allocation5], %s789
        %s791 = sand.u32 %s138, 1
        %s792 = scalar_lea.vmem [#allocation4], %s791
        %p793 = pneg %p151
        %p794 = pneg %p148
        %s795 = sand.u32 %s40, 1
        %s796 = scalar_lea.sflag [#allocation7], %s795
        %s797 = sand.u32 %s164, 1
        %s798 = smul.addr %s797, 192
        %s799 = scalar_lea.vmem [#allocation6], %s798
        %p800 = pneg %p177
        %p801 = pneg %p174
        %s802 = sand.u32 %s40, 1
        %s803 = scalar_lea.sflag [#allocation7], %s802
        %s804 = sand.u32 %s190, 1
        %s805 = smul.addr %s804, 3
        %s806 = scalar_lea.vmem [#allocation8], %s805
        %p807 = pneg %p203
        %p808 = pneg %p200
        %p809 = scmp.lt.s32.totalorder %s45, 1
        %s810 = scalar_select %p809, %s45, 1
        %s811 = smul.addr %s810, 16
        %s812 = smul.addr %s811, 4
        %s813 = scalar_lea.vmem %s6, %s812
        %p814 = pneg %p229
        %p815 = pneg %p226
        %p816 = scmp.lt.s32.totalorder %s45, 1
        %s817 = scalar_select %p816, %s45, 1
        %s818 = scalar_lea.vmem %s7, %s817
        %p819 = pneg %p255
        %p820 = pneg %p252
        %s821 = sand.u32 %s40, 1
        %s822 = scalar_lea.sflag [#allocation10], %s821
        %s823 = sand.u32 %s268, 1
        %s824 = scalar_lea.vmem [#allocation9], %s823
        %p825 = pneg %p281
        %p826 = pneg %p278
        %s827 = sand.u32 %s40, 1
        %s828 = scalar_lea.sflag [#allocation10], %s827
        %s829 = sand.u32 %s294, 1
        %s830 = scalar_lea.vmem [#allocation11], %s829
        %p831 = pneg %p307
        %p832 = pneg %p304
        %s833 = sand.u32 %s40, 1
        %s834 = scalar_lea.sflag [#allocation13], %s833
        %s835 = sand.u32 %s320, 1
        %s836 = smul.addr %s835, 512
        %s837 = scalar_lea.vmem [#allocation12], %s836
        %p838 = pneg %p333
        %p839 = pneg %p330
        %p840 = scmp.lt.s32.totalorder %s45, 1
        %s841 = scalar_select %p840, %s45, 1
        %s842 = smul.addr %s841, 8
        %s843 = scalar_lea.vmem %s11, %s842
        %p844 = pneg %p359
        %p845 = pneg %p356
        %p846 = scmp.lt.s32.totalorder %s45, 1
        %s847 = scalar_select %p846, %s45, 1
        %s848 = smul.addr %s847, 64
        %s849 = smul.addr %s848, 4
        %s850 = scalar_lea.vmem %s12, %s849
        %p851 = pneg %p385
        %p852 = pneg %p382
        %s853 = sand.u32 %s40, 1
        %s854 = scalar_lea.sflag [#allocation13], %s853
        %s855 = sand.u32 %s398, 1
        %s856 = scalar_lea.vmem [#allocation14], %s855
        %p857 = pneg %p411
        %p858 = pneg %p408
        %p859 = pneg %p432
        %p860 = pneg %p429
        %p861 = pneg %p453
        %p862 = pneg %p450
        %p863 = pneg %p479
        %p864 = pneg %p476
        %p865 = scmp.lt.s32.totalorder %s44, 1
        %s866 = scalar_select %p865, %s44, 1
        %s867 = smul.addr %s866, 2
        %s868 = smul.addr %s867, 8
        %s869 = scalar_lea.vmem %s16, %s868
        %p870 = scmp.lt.s32.totalorder %s44, 1
        %s871 = scalar_select %p870, %s44, 1
        %s872 = smul.addr %s871, 2
        %s873 = smul.addr %s872, 8
        %s874 = scalar_lea.vmem %s0, %s873
        %p875 = scmp.lt.s32.totalorder %s44, 1
        %s876 = scalar_select %p875, %s44, 1
        %s877 = scalar_lea.vmem %s1, %s876
        %p878 = scmp.lt.s32.totalorder %s45, 1
        %s879 = scalar_select %p878, %s45, 1
        %s880 = scalar_lea.vmem %s2, %s879
        %p881 = scmp.lt.s32.totalorder %s45, 1
        %s882 = scalar_select %p881, %s45, 1
        %s883 = smul.addr %s882, 16
        %s884 = smul.addr %s883, 4
        %s885 = scalar_lea.vmem %s6, %s884
        %p886 = scmp.lt.s32.totalorder %s45, 1
        %s887 = scalar_select %p886, %s45, 1
        %s888 = scalar_lea.vmem %s7, %s887
        %p889 = scmp.lt.s32.totalorder %s45, 1
        %s890 = scalar_select %p889, %s45, 1
        %s891 = smul.addr %s890, 8
        %s892 = scalar_lea.vmem %s11, %s891
        %p893 = scmp.lt.s32.totalorder %s45, 1
        %s894 = scalar_select %p893, %s45, 1
        %s895 = smul.addr %s894, 64
        %s896 = smul.addr %s895, 4
        %s897 = scalar_lea.vmem %s12, %s896
        %p898 = scmp.lt.s32.totalorder %s44, 1
        %s899 = scalar_select %p898, %s44, 1
        %s900 = smul.addr %s899, 2
        %s901 = smul.addr %s900, 8
        %s902 = scalar_lea.vmem %s16, %s901
        %p904 = scmp.eq.s32.totalorder %s45, 0
        // Predicated region
        $region121: #{vima_gato_policy_forward.1} parent=83 // pred_check
          %p905 = pneg %p904
        $region122: #{vima_gato_policy_forward.1} parent=83 // pred_check_branch
          %907 = sbr.rel (%p905) target = $region124
        $region123: #{vima_gato_policy_forward.1} parent=83 // pred_region
          %v908 = vld [vmem:[%s874] sm:$0xff]
          %v909 = vld [vmem:[%s874 + $0x8] sm:$0xff]
          %910 = vst [vmem:[#allocation2] sm:$0xff] %v908
          %911 = vst [vmem:[#allocation2 + $0x8] sm:$0xff] %v909
          %v912 = vld [vmem:[%s877] sm:$0x1]
          %v913 = vlaneseq
          %v914 = vshrl.u32 %v913, 7
          %v915 = vadd.s32 %v914, 8
          %v916 = vlaneseq
          %v917 = vand.u32 %v916, 127
          %vm918 = vcmp.le.s32.totalorder %v917, %v914
          %vm919 = vcmp.le.s32.totalorder %v917, %v915
          %vm920 = vcmp.gt.f32.partialorder %v912, 0.5
          %v921 = vsel %vm920, 1, 0
          %v922 = vlaneseq
          %v923 = vshrl.u32 %v922, 7
          %v924 = vsub.s32 0, %v923
          %v925 = vrot.slane %v921, %v924
          %vm926 = vcmp.eq.s32.totalorder %v925, 1
          %vm927 = vmand %vm918, %vm926
          %vm928 = vmand %vm919, %vm926
          %v929 = vsel %vm927, 0.0, -1e+09
          %v930 = vsel %vm928, 0.0, -1e+09
          %vm931 = vcmask 130048
          %932 = vst.msk [vmem:[#allocation3] sm:$0xff] %vm931, %v929
          %933 = vst.msk [vmem:[#allocation3 + $0x8] sm:$0xff] %vm931, %v930
        $region124: #{vima_gato_policy_forward.1} parent=83 // pred_fallthru
          _
        %v934 = vld [vmem:[#allocation2] sm:$0xff]
        %v935 = vld [vmem:[#allocation2 + $0x8] sm:$0xff]
        %v936 = vld [vmem:[#allocation3] sm:$0xff]
        %v937 = vld [vmem:[#allocation3 + $0x8] sm:$0xff]
        %v938 = vld [vmem:[%s880] sm:$0x1]
        %v939 = vld [vmem:[%s708] sm:$0x1]
        %940 = vadd.xlane.f32.xlu0 %v934
        %v941 = vpop.xlane.xlu0 %940
        %942 = vadd.xlane.f32.xlu0 %v935
        %v943 = vpop.xlane.xlu0 %942
        %v944 = vrcp.pop 128.0
        %v945 = vmul.f32 %v941, %v944
        %v946 = vmul.f32 %v943, %v944
        %v947 = vsub.f32 %v934, %v945
        %v948 = vsub.f32 %v935, %v946
        %v949 = vmul.f32 %v947, %v947
        %v950 = vmul.f32 %v948, %v948
        %951 = vadd.xlane.f32.xlu0 %v949
        %v952 = vpop.xlane.xlu0 %951
        %953 = vadd.xlane.f32.xlu0 %v950
        %v954 = vpop.xlane.xlu0 %953
        %v955 = vmul.f32 %v952, %v944
        %v956 = vmul.f32 %v954, %v944
        %v957 = vadd.f32 %v955, 1e-05
        %v958 = vadd.f32 %v956, 1e-05
        %v959 = vrsqrt.pop %v957
        %v960 = vrsqrt.pop %v958
        %v961 = vmul.f32 %v947, %v959
        %v962 = vmul.f32 %v948, %v960
        %v964 = vlaneseq
        %v965 = vshrl.u32 %v964, 7
        %v966 = vsub.s32 0, %v965
        %v967 = vrot.slane %v938, %v966
        %v969 = vmul.f32 %v961, %v967
        %v970 = vmul.f32 %v962, %v967
        %v972 = vlaneseq
        %v973 = vshrl.u32 %v972, 7
        %v974 = vsub.s32 0, %v973
        %v975 = vrot.slane %v939, %v974
        %v977 = vadd.f32 %v969, %v975
        %v978 = vadd.f32 %v970, %v975
        %v979 = vpack.c.bf16 %v978, %v977
        %v980 = vld [vmem:[%s717] sm:$0xff]
        %v981 = vld [vmem:[%s717 + $0x8] sm:$0xf]
        %v982 = vld [vmem:[%s717 + $0xc] sm:$0xff]
        %v983 = vld [vmem:[%s717 + $0x14] sm:$0xf]
        %v984 = vld [vmem:[%s717 + $0x18] sm:$0xff]
        %v985 = vld [vmem:[%s717 + $0x20] sm:$0xf]
        %v986 = vld [vmem:[%s717 + $0x24] sm:$0xff]
        %v987 = vld [vmem:[%s717 + $0x2c] sm:$0xf]
        %v988 = vld [vmem:[%s717 + $0x30] sm:$0xff]
        %v989 = vld [vmem:[%s717 + $0x38] sm:$0xf]
        %v990 = vld [vmem:[%s717 + $0x3c] sm:$0xff]
        %v991 = vld [vmem:[%s717 + $0x44] sm:$0xf]
        %v992 = vld [vmem:[%s717 + $0x48] sm:$0xff]
        %v993 = vld [vmem:[%s717 + $0x50] sm:$0xf]
        %v994 = vld [vmem:[%s717 + $0x54] sm:$0xff]
        %v995 = vld [vmem:[%s717 + $0x5c] sm:$0xf]
        %v996 = vld [vmem:[%s717 + $0x60] sm:$0xff]
        %v997 = vld [vmem:[%s717 + $0x68] sm:$0xf]
        %v998 = vld [vmem:[%s717 + $0x6c] sm:$0xff]
        %v999 = vld [vmem:[%s717 + $0x74] sm:$0xf]
        %v1000 = vld [vmem:[%s717 + $0x78] sm:$0xff]
        %v1001 = vld [vmem:[%s717 + $0x80] sm:$0xf]
        %v1002 = vld [vmem:[%s717 + $0x84] sm:$0xff]
        %v1003 = vld [vmem:[%s717 + $0x8c] sm:$0xf]
        %v1004 = vld [vmem:[%s717 + $0x90] sm:$0xff]
        %v1005 = vld [vmem:[%s717 + $0x98] sm:$0xf]
        %v1006 = vld [vmem:[%s717 + $0x9c] sm:$0xff]
        %v1007 = vld [vmem:[%s717 + $0xa4] sm:$0xf]
        %v1008 = vld [vmem:[%s717 + $0xa8] sm:$0xff]
        %v1009 = vld [vmem:[%s717 + $0xb0] sm:$0xf]
        %v1010 = vld [vmem:[%s717 + $0xb4] sm:$0xff]
        %v1011 = vld [vmem:[%s717 + $0xbc] sm:$0xf]
        %v1012 = vld [vmem:[%s726] sm:$0x7]
        %v1014 = vlaneseq
        %v1015 = vshrl.u32 %v1014, 7
        %v1016 = vsub.s32 0, %v1015
        %v1017 = vrot.slane %v1012, %v1016
        %v1018 = vlaneseq
        %v1019 = vshrl.u32 %v1018, 7
        %v1020 = vsub.s32 1, %v1019
        %v1021 = vrot.slane %v1012, %v1020
        %v1022 = vlaneseq
        %v1023 = vshrl.u32 %v1022, 7
        %v1024 = vsub.s32 2, %v1023
        %v1025 = vrot.slane %v1012, %v1024
        %v1061 = vunpack.c.l.b16 %v980
        %v1062 = vunpack.c.h.b16 %v980
        %v1063 = vunpack.c.l.b16 %v981
        %v1064 = vunpack.c.l.b16 %v982
        %v1065 = vunpack.c.h.b16 %v982
        %v1066 = vunpack.c.l.b16 %v983
        %v1067 = vunpack.c.l.b16 %v984
        %v1068 = vunpack.c.h.b16 %v984
        %v1069 = vunpack.c.l.b16 %v985
        %v1070 = vunpack.c.l.b16 %v986
        %v1071 = vunpack.c.h.b16 %v986
        %v1072 = vunpack.c.l.b16 %v987
        %v1073 = vunpack.c.l.b16 %v988
        %v1074 = vunpack.c.h.b16 %v988
        %v1075 = vunpack.c.l.b16 %v989
        %v1076 = vunpack.c.l.b16 %v990
        %v1077 = vunpack.c.h.b16 %v990
        %v1078 = vunpack.c.l.b16 %v991
        %v1079 = vunpack.c.l.b16 %v992
        %v1080 = vunpack.c.h.b16 %v992
        %v1081 = vunpack.c.l.b16 %v993
        %v1082 = vunpack.c.l.b16 %v994
        %v1083 = vunpack.c.h.b16 %v994
        %v1084 = vunpack.c.l.b16 %v995
        %v1085 = vunpack.c.l.b16 %v996
        %v1086 = vunpack.c.h.b16 %v996
        %v1087 = vunpack.c.l.b16 %v997
        %v1088 = vunpack.c.l.b16 %v998
        %v1089 = vunpack.c.h.b16 %v998
        %v1090 = vunpack.c.l.b16 %v999
        %v1091 = vunpack.c.l.b16 %v1000
        %v1092 = vunpack.c.h.b16 %v1000
        %v1093 = vunpack.c.l.b16 %v1001
        %v1094 = vunpack.c.l.b16 %v1002
        %v1095 = vunpack.c.h.b16 %v1002
        %v1096 = vunpack.c.l.b16 %v1003
        %v1097 = vunpack.c.l.b16 %v1004
        %v1098 = vunpack.c.h.b16 %v1004
        %v1099 = vunpack.c.l.b16 %v1005
        %v1100 = vunpack.c.l.b16 %v1006
        %v1101 = vunpack.c.h.b16 %v1006
        %v1102 = vunpack.c.l.b16 %v1007
        %v1103 = vunpack.c.l.b16 %v1008
        %v1104 = vunpack.c.h.b16 %v1008
        %v1105 = vunpack.c.l.b16 %v1009
        %v1106 = vunpack.c.l.b16 %v1010
        %v1107 = vunpack.c.h.b16 %v1010
        %v1108 = vunpack.c.l.b16 %v1011
        %v1109 = vpack.c.b16 %v1064, %v1061
        %v1110 = vpack.c.b16 %v1065, %v1062
        %v1111 = vpack.c.b16 %v1066, %v1063
        %v1112 = vpack.c.b16 %v1070, %v1067
        %v1113 = vpack.c.b16 %v1071, %v1068
        %v1114 = vpack.c.b16 %v1072, %v1069
        %v1115 = vpack.c.b16 %v1076, %v1073
        %v1116 = vpack.c.b16 %v1077, %v1074
        %v1117 = vpack.c.b16 %v1078, %v1075
        %v1118 = vpack.c.b16 %v1082, %v1079
        %v1119 = vpack.c.b16 %v1083, %v1080
        %v1120 = vpack.c.b16 %v1084, %v1081
        %v1121 = vpack.c.b16 %v1088, %v1085
        %v1122 = vpack.c.b16 %v1089, %v1086
        %v1123 = vpack.c.b16 %v1090, %v1087
        %v1124 = vpack.c.b16 %v1094, %v1091
        %v1125 = vpack.c.b16 %v1095, %v1092
        %v1126 = vpack.c.b16 %v1096, %v1093
        %v1127 = vpack.c.b16 %v1100, %v1097
        %v1128 = vpack.c.b16 %v1101, %v1098
        %v1129 = vpack.c.b16 %v1102, %v1099
        %v1130 = vpack.c.b16 %v1106, %v1103
        %v1131 = vpack.c.b16 %v1107, %v1104
        %v1132 = vpack.c.b16 %v1108, %v1105
        %1157 = vmatprep.subr.bf16.mxu0 %v1110
        %1158 = vmatpush1.bf16.msra.mxu0 %v1109
        %1159 = vmatprep.subr.bf16.mxu0 %v1113
        %1160 = vmatpush1.bf16.msra.mxu0 %v1112
        %1161 = vmatprep.subr.bf16.mxu0 %v1116
        %1162 = vmatpush1.bf16.msra.mxu0 %v1115
        %1163 = vmatprep.subr.bf16.mxu0 %v1119
        %1164 = vmatpush1.bf16.msra.mxu0 %v1118
        %1165 = vmatprep.subr.bf16.mxu0 %v1122
        %1166 = vmatpush1.bf16.msra.mxu0 %v1121
        %1167 = vmatprep.subr.bf16.mxu0 %v1125
        %1168 = vmatpush1.bf16.msra.mxu0 %v1124
        %1169 = vmatprep.subr.bf16.mxu0 %v1128
        %1170 = vmatpush1.bf16.msra.mxu0 %v1127
        %1171 = vmatprep.subr.bf16.mxu0 %v1131
        %1172 = vmatpush1.bf16.msra.mxu0 %v1130
        %1173 = vmatprep.subr.bf16.mxu0 0
        %1174 = vmatpush1.bf16.msra.mxu0 0
        %1175 = vmatprep.subr.bf16.mxu0 0
        %1176 = vmatpush1.bf16.msra.mxu0 0
        %1177 = vmatprep.subr.bf16.mxu0 0
        %1178 = vmatpush1.bf16.msra.mxu0 0
        %1179 = vmatprep.subr.bf16.mxu0 0
        %1180 = vmatpush1.bf16.msra.mxu0 0
        %1181 = vmatprep.subr.bf16.mxu0 0
        %1182 = vmatpush1.bf16.msra.mxu0 0
        %1183 = vmatprep.subr.bf16.mxu0 0
        %1184 = vmatpush1.bf16.msra.mxu0 0
        %1185 = vmatprep.subr.bf16.mxu0 0
        %1186 = vmatpush1.bf16.msra.mxu0 0
        %1187 = vmatprep.subr.bf16.mxu0 0
        %1188 = vmatpush1.bf16.msra.mxu0 0
        %1189 = vmatprep.mubr.bf16.mxu0 0
        %1190 = vmatmul.mubr.bf16.gmra.mrb[0].mxu0 %v979
        %v1191 = vpop.f32.mrb[0].mxu0
        %v1192 = vadd.f32 %v1017, %v1191
        %v1193 = vpop.f32.mrb[0].mxu0
        %v1194 = vadd.f32 %v1021, %v1193
        %v1195 = vpop.f32.mrb[0].mxu0
        %v1196 = vadd.f32 %v1017, %v1195
        %v1197 = vpop.f32.mrb[0].mxu0
        %v1198 = vadd.f32 %v1021, %v1197
        %1199 = vdwg.mxu0
        %1200 = vmatprep.subr.bf16.mxu0 0
        %1201 = vmatpush1.bf16.msra.mxu0 %v1111
        %1202 = vmatprep.subr.bf16.mxu0 0
        %1203 = vmatpush1.bf16.msra.mxu0 %v1114
        %1204 = vmatprep.subr.bf16.mxu0 0
        %1205 = vmatpush1.bf16.msra.mxu0 %v1117
        %1206 = vmatprep.subr.bf16.mxu0 0
        %1207 = vmatpush1.bf16.msra.mxu0 %v1120
        %1208 = vmatprep.subr.bf16.mxu0 0
        %1209 = vmatpush1.bf16.msra.mxu0 %v1123
        %1210 = vmatprep.subr.bf16.mxu0 0
        %1211 = vmatpush1.bf16.msra.mxu0 %v1126
        %1212 = vmatprep.subr.bf16.mxu0 0
        %1213 = vmatpush1.bf16.msra.mxu0 %v1129
        %1214 = vmatprep.subr.bf16.mxu0 0
        %1215 = vmatpush1.bf16.msra.mxu0 %v1132
        %1216 = vmatprep.subr.bf16.mxu0 0
        %1217 = vmatpush1.bf16.msra.mxu0 0
        %1218 = vmatprep.subr.bf16.mxu0 0
        %1219 = vmatpush1.bf16.msra.mxu0 0
        %1220 = vmatprep.subr.bf16.mxu0 0
        %1221 = vmatpush1.bf16.msra.mxu0 0
        %1222 = vmatprep.subr.bf16.mxu0 0
        %1223 = vmatpush1.bf16.msra.mxu0 0
        %1224 = vmatprep.subr.bf16.mxu0 0
        %1225 = vmatpush1.bf16.msra.mxu0 0
        %1226 = vmatprep.subr.bf16.mxu0 0
        %1227 = vmatpush1.bf16.msra.mxu0 0
        %1228 = vmatprep.subr.bf16.mxu0 0
        %1229 = vmatpush1.bf16.msra.mxu0 0
        %1230 = vmatprep.subr.bf16.mxu0 0
        %1231 = vmatpush1.bf16.msra.mxu0 0
        %1232 = vmatprep.mubr.bf16.mxu0 0
        %1233 = vmatmul.mubr.bf16.gmra.mrb[0].mxu0 %v979
        %v1234 = vpop.f32.mrb[0].mxu0
        %v1235 = vadd.f32 %v1025, %v1234
        %v1236 = vpop.f32.mrb[0].mxu0
        %v1237 = vpop.f32.mrb[0].mxu0
        %v1238 = vadd.f32 %v1025, %v1237
        %v1239 = vpop.f32.mrb[0].mxu0
        %1240 = vdwg.mxu0
        %1243 = vrot.lane.b32.xlu0 %v1192, 96
        %v1244 = vpop.permute.xlu0 %1243
        %1245 = vrot.lane.b32.xlu0 %v1196, 96
        %v1246 = vpop.permute.xlu0 %1245
        %1249 = vrot.lane.b32.xlu0 %v1192, 64
        %v1250 = vpop.permute.xlu0 %1249
        %1251 = vrot.lane.b32.xlu0 %v1196, 64
        %v1252 = vpop.permute.xlu0 %1251
        %1255 = vrot.lane.b32.xlu0 %v1192, 32
        %v1256 = vpop.permute.xlu0 %1255
        %1257 = vrot.lane.b32.xlu0 %v1196, 32
        %v1258 = vpop.permute.xlu0 %1257
        %v1261 = vcombine.low %v1192, %v1250
        %v1262 = vcombine.high %v1192, %v1250
        %v1264 = vunpack.c.l.s4 1983009808
        %v1265 = vunpack.c.0.s8 %v1264
        %v1266 = vlaneseq
        %v1267 = vshrl.u32 %v1266, 7
        %v1268 = vsub.s32 %v1265, %v1267
        %v1269 = vrot.slane %v1261, %v1268
        %v1271 = vunpack.c.l.s4 1983009808
        %v1272 = vunpack.c.0.s8 %v1271
        %v1273 = vlaneseq
        %v1274 = vshrl.u32 %v1273, 7
        %v1275 = vsub.s32 %v1272, %v1274
        %v1276 = vrot.slane %v1262, %v1275
        %v1277 = vcombine.low %v1244, %v1256
        %v1278 = vcombine.high %v1244, %v1256
        %v1280 = vunpack.c.l.s4 1983009808
        %v1281 = vunpack.c.0.s8 %v1280
        %v1282 = vlaneseq
        %v1283 = vshrl.u32 %v1282, 7
        %v1284 = vsub.s32 %v1281, %v1283
        %v1285 = vrot.slane %v1277, %v1284
        %v1287 = vunpack.c.l.s4 1983009808
        %v1288 = vunpack.c.0.s8 %v1287
        %v1289 = vlaneseq
        %v1290 = vshrl.u32 %v1289, 7
        %v1291 = vsub.s32 %v1288, %v1290
        %v1292 = vrot.slane %v1278, %v1291
        %v1293 = vcombine.low %v1269, %v1285
        %v1294 = vcombine.high %v1269, %v1285
        %v1296 = vunpack.c.l.s4 1934713408
        %v1297 = vunpack.c.0.s8 %v1296
        %v1298 = vlaneseq
        %v1299 = vshrl.u32 %v1298, 7
        %v1300 = vsub.s32 %v1297, %v1299
        %v1301 = vrot.slane %v1293, %v1300
        %v1303 = vunpack.c.l.s4 1934713408
        %v1304 = vunpack.c.0.s8 %v1303
        %v1305 = vlaneseq
        %v1306 = vshrl.u32 %v1305, 7
        %v1307 = vsub.s32 %v1304, %v1306
        %v1308 = vrot.slane %v1294, %v1307
        %v1309 = vcombine.low %v1276, %v1292
        %v1310 = vcombine.high %v1276, %v1292
        %v1312 = vunpack.c.l.s4 1934713408
        %v1313 = vunpack.c.0.s8 %v1312
        %v1314 = vlaneseq
        %v1315 = vshrl.u32 %v1314, 7
        %v1316 = vsub.s32 %v1313, %v1315
        %v1317 = vrot.slane %v1309, %v1316
        %v1319 = vunpack.c.l.s4 1934713408
        %v1320 = vunpack.c.0.s8 %v1319
        %v1321 = vlaneseq
        %v1322 = vshrl.u32 %v1321, 7
        %v1323 = vsub.s32 %v1320, %v1322
        %v1324 = vrot.slane %v1310, %v1323
        %v1325 = vcombine.high %v1301, 0.0
        %v1326 = vcombine.high %v1308, 0.0
        %v1327 = vcombine.high %v1317, 0.0
        %v1328 = vcombine.high %v1324, 0.0
        %v1329 = vcombine.low %v1196, %v1252
        %v1330 = vcombine.high %v1196, %v1252
        %v1332 = vunpack.c.l.s4 1983009808
        %v1333 = vunpack.c.0.s8 %v1332
        %v1334 = vlaneseq
        %v1335 = vshrl.u32 %v1334, 7
        %v1336 = vsub.s32 %v1333, %v1335
        %v1337 = vrot.slane %v1329, %v1336
        %v1339 = vunpack.c.l.s4 1983009808
        %v1340 = vunpack.c.0.s8 %v1339
        %v1341 = vlaneseq
        %v1342 = vshrl.u32 %v1341, 7
        %v1343 = vsub.s32 %v1340, %v1342
        %v1344 = vrot.slane %v1330, %v1343
        %v1345 = vcombine.low %v1246, %v1258
        %v1346 = vcombine.high %v1246, %v1258
        %v1348 = vunpack.c.l.s4 1983009808
        %v1349 = vunpack.c.0.s8 %v1348
        %v1350 = vlaneseq
        %v1351 = vshrl.u32 %v1350, 7
        %v1352 = vsub.s32 %v1349, %v1351
        %v1353 = vrot.slane %v1345, %v1352
        %v1355 = vunpack.c.l.s4 1983009808
        %v1356 = vunpack.c.0.s8 %v1355
        %v1357 = vlaneseq
        %v1358 = vshrl.u32 %v1357, 7
        %v1359 = vsub.s32 %v1356, %v1358
        %v1360 = vrot.slane %v1346, %v1359
        %v1361 = vcombine.low %v1337, %v1353
        %v1362 = vcombine.high %v1337, %v1353
        %v1364 = vunpack.c.l.s4 1934713408
        %v1365 = vunpack.c.0.s8 %v1364
        %v1366 = vlaneseq
        %v1367 = vshrl.u32 %v1366, 7
        %v1368 = vsub.s32 %v1365, %v1367
        %v1369 = vrot.slane %v1361, %v1368
        %v1371 = vunpack.c.l.s4 1934713408
        %v1372 = vunpack.c.0.s8 %v1371
        %v1373 = vlaneseq
        %v1374 = vshrl.u32 %v1373, 7
        %v1375 = vsub.s32 %v1372, %v1374
        %v1376 = vrot.slane %v1362, %v1375
        %v1377 = vcombine.low %v1344, %v1360
        %v1378 = vcombine.high %v1344, %v1360
        %v1380 = vunpack.c.l.s4 1934713408
        %v1381 = vunpack.c.0.s8 %v1380
        %v1382 = vlaneseq
        %v1383 = vshrl.u32 %v1382, 7
        %v1384 = vsub.s32 %v1381, %v1383
        %v1385 = vrot.slane %v1377, %v1384
        %v1387 = vunpack.c.l.s4 1934713408
        %v1388 = vunpack.c.0.s8 %v1387
        %v1389 = vlaneseq
        %v1390 = vshrl.u32 %v1389, 7
        %v1391 = vsub.s32 %v1388, %v1390
        %v1392 = vrot.slane %v1378, %v1391
        %v1393 = vcombine.high %v1369, 0.0
        %v1394 = vcombine.high %v1376, 0.0
        %v1395 = vcombine.high %v1385, 0.0
        %v1396 = vcombine.high %v1392, 0.0
        %1399 = vrot.lane.b32.xlu0 %v1194, 96
        %v1400 = vpop.permute.xlu0 %1399
        %1401 = vrot.lane.b32.xlu0 %v1198, 96
        %v1402 = vpop.permute.xlu0 %1401
        %1405 = vrot.lane.b32.xlu0 %v1194, 64
        %v1406 = vpop.permute.xlu0 %1405
        %1407 = vrot.lane.b32.xlu0 %v1198, 64
        %v1408 = vpop.permute.xlu0 %1407
        %1411 = vrot.lane.b32.xlu0 %v1194, 32
        %v1412 = vpop.permute.xlu0 %1411
        %1413 = vrot.lane.b32.xlu0 %v1198, 32
        %v1414 = vpop.permute.xlu0 %1413
        %v1417 = vcombine.low %v1194, %v1406
        %v1418 = vcombine.high %v1194, %v1406
        %v1420 = vunpack.c.l.s4 1983009808
        %v1421 = vunpack.c.0.s8 %v1420
        %v1422 = vlaneseq
        %v1423 = vshrl.u32 %v1422, 7
        %v1424 = vsub.s32 %v1421, %v1423
        %v1425 = vrot.slane %v1417, %v1424
        %v1427 = vunpack.c.l.s4 1983009808
        %v1428 = vunpack.c.0.s8 %v1427
        %v1429 = vlaneseq
        %v1430 = vshrl.u32 %v1429, 7
        %v1431 = vsub.s32 %v1428, %v1430
        %v1432 = vrot.slane %v1418, %v1431
        %v1433 = vcombine.low %v1400, %v1412
        %v1434 = vcombine.high %v1400, %v1412
        %v1436 = vunpack.c.l.s4 1983009808
        %v1437 = vunpack.c.0.s8 %v1436
        %v1438 = vlaneseq
        %v1439 = vshrl.u32 %v1438, 7
        %v1440 = vsub.s32 %v1437, %v1439
        %v1441 = vrot.slane %v1433, %v1440
        %v1443 = vunpack.c.l.s4 1983009808
        %v1444 = vunpack.c.0.s8 %v1443
        %v1445 = vlaneseq
        %v1446 = vshrl.u32 %v1445, 7
        %v1447 = vsub.s32 %v1444, %v1446
        %v1448 = vrot.slane %v1434, %v1447
        %v1449 = vcombine.low %v1425, %v1441
        %v1450 = vcombine.high %v1425, %v1441
        %v1452 = vunpack.c.l.s4 1934713408
        %v1453 = vunpack.c.0.s8 %v1452
        %v1454 = vlaneseq
        %v1455 = vshrl.u32 %v1454, 7
        %v1456 = vsub.s32 %v1453, %v1455
        %v1457 = vrot.slane %v1449, %v1456
        %v1459 = vunpack.c.l.s4 1934713408
        %v1460 = vunpack.c.0.s8 %v1459
        %v1461 = vlaneseq
        %v1462 = vshrl.u32 %v1461, 7
        %v1463 = vsub.s32 %v1460, %v1462
        %v1464 = vrot.slane %v1450, %v1463
        %v1465 = vcombine.low %v1432, %v1448
        %v1466 = vcombine.high %v1432, %v1448
        %v1468 = vunpack.c.l.s4 1934713408
        %v1469 = vunpack.c.0.s8 %v1468
        %v1470 = vlaneseq
        %v1471 = vshrl.u32 %v1470, 7
        %v1472 = vsub.s32 %v1469, %v1471
        %v1473 = vrot.slane %v1465, %v1472
        %v1475 = vunpack.c.l.s4 1934713408
        %v1476 = vunpack.c.0.s8 %v1475
        %v1477 = vlaneseq
        %v1478 = vshrl.u32 %v1477, 7
        %v1479 = vsub.s32 %v1476, %v1478
        %v1480 = vrot.slane %v1466, %v1479
        %v1481 = vcombine.high %v1457, 0.0
        %v1482 = vcombine.high %v1464, 0.0
        %v1483 = vcombine.high %v1473, 0.0
        %v1484 = vcombine.high %v1480, 0.0
        %v1485 = vcombine.low %v1198, %v1408
        %v1486 = vcombine.high %v1198, %v1408
        %v1488 = vunpack.c.l.s4 1983009808
        %v1489 = vunpack.c.0.s8 %v1488
        %v1490 = vlaneseq
        %v1491 = vshrl.u32 %v1490, 7
        %v1492 = vsub.s32 %v1489, %v1491
        %v1493 = vrot.slane %v1485, %v1492
        %v1495 = vunpack.c.l.s4 1983009808
        %v1496 = vunpack.c.0.s8 %v1495
        %v1497 = vlaneseq
        %v1498 = vshrl.u32 %v1497, 7
        %v1499 = vsub.s32 %v1496, %v1498
        %v1500 = vrot.slane %v1486, %v1499
        %v1501 = vcombine.low %v1402, %v1414
        %v1502 = vcombine.high %v1402, %v1414
        %v1504 = vunpack.c.l.s4 1983009808
        %v1505 = vunpack.c.0.s8 %v1504
        %v1506 = vlaneseq
        %v1507 = vshrl.u32 %v1506, 7
        %v1508 = vsub.s32 %v1505, %v1507
        %v1509 = vrot.slane %v1501, %v1508
        %v1511 = vunpack.c.l.s4 1983009808
        %v1512 = vunpack.c.0.s8 %v1511
        %v1513 = vlaneseq
        %v1514 = vshrl.u32 %v1513, 7
        %v1515 = vsub.s32 %v1512, %v1514
        %v1516 = vrot.slane %v1502, %v1515
        %v1517 = vcombine.low %v1493, %v1509
        %v1518 = vcombine.high %v1493, %v1509
        %v1520 = vunpack.c.l.s4 1934713408
        %v1521 = vunpack.c.0.s8 %v1520
        %v1522 = vlaneseq
        %v1523 = vshrl.u32 %v1522, 7
        %v1524 = vsub.s32 %v1521, %v1523
        %v1525 = vrot.slane %v1517, %v1524
        %v1527 = vunpack.c.l.s4 1934713408
        %v1528 = vunpack.c.0.s8 %v1527
        %v1529 = vlaneseq
        %v1530 = vshrl.u32 %v1529, 7
        %v1531 = vsub.s32 %v1528, %v1530
        %v1532 = vrot.slane %v1518, %v1531
        %v1533 = vcombine.low %v1500, %v1516
        %v1534 = vcombine.high %v1500, %v1516
        %v1536 = vunpack.c.l.s4 1934713408
        %v1537 = vunpack.c.0.s8 %v1536
        %v1538 = vlaneseq
        %v1539 = vshrl.u32 %v1538, 7
        %v1540 = vsub.s32 %v1537, %v1539
        %v1541 = vrot.slane %v1533, %v1540
        %v1543 = vunpack.c.l.s4 1934713408
        %v1544 = vunpack.c.0.s8 %v1543
        %v1545 = vlaneseq
        %v1546 = vshrl.u32 %v1545, 7
        %v1547 = vsub.s32 %v1544, %v1546
        %v1548 = vrot.slane %v1534, %v1547
        %v1549 = vcombine.high %v1525, 0.0
        %v1550 = vcombine.high %v1532, 0.0
        %v1551 = vcombine.high %v1541, 0.0
        %v1552 = vcombine.high %v1548, 0.0
        %1555 = vrot.lane.b32.xlu0 %v1235, 96
        %v1556 = vpop.permute.xlu0 %1555
        %1557 = vrot.lane.b32.xlu0 %v1238, 96
        %v1558 = vpop.permute.xlu0 %1557
        %1561 = vrot.lane.b32.xlu0 %v1235, 64
        %v1562 = vpop.permute.xlu0 %1561
        %1563 = vrot.lane.b32.xlu0 %v1238, 64
        %v1564 = vpop.permute.xlu0 %1563
        %1567 = vrot.lane.b32.xlu0 %v1235, 32
        %v1568 = vpop.permute.xlu0 %1567
        %1569 = vrot.lane.b32.xlu0 %v1238, 32
        %v1570 = vpop.permute.xlu0 %1569
        %v1573 = vcombine.low %v1235, %v1562
        %v1574 = vcombine.high %v1235, %v1562
        %v1576 = vunpack.c.l.s4 1983009808
        %v1577 = vunpack.c.0.s8 %v1576
        %v1578 = vlaneseq
        %v1579 = vshrl.u32 %v1578, 7
        %v1580 = vsub.s32 %v1577, %v1579
        %v1581 = vrot.slane %v1573, %v1580
        %v1583 = vunpack.c.l.s4 1983009808
        %v1584 = vunpack.c.0.s8 %v1583
        %v1585 = vlaneseq
        %v1586 = vshrl.u32 %v1585, 7
        %v1587 = vsub.s32 %v1584, %v1586
        %v1588 = vrot.slane %v1574, %v1587
        %v1589 = vcombine.low %v1556, %v1568
        %v1590 = vcombine.high %v1556, %v1568
        %v1592 = vunpack.c.l.s4 1983009808
        %v1593 = vunpack.c.0.s8 %v1592
        %v1594 = vlaneseq
        %v1595 = vshrl.u32 %v1594, 7
        %v1596 = vsub.s32 %v1593, %v1595
        %v1597 = vrot.slane %v1589, %v1596
        %v1599 = vunpack.c.l.s4 1983009808
        %v1600 = vunpack.c.0.s8 %v1599
        %v1601 = vlaneseq
        %v1602 = vshrl.u32 %v1601, 7
        %v1603 = vsub.s32 %v1600, %v1602
        %v1604 = vrot.slane %v1590, %v1603
        %v1605 = vcombine.low %v1581, %v1597
        %v1606 = vcombine.high %v1581, %v1597
        %v1608 = vunpack.c.l.s4 1934713408
        %v1609 = vunpack.c.0.s8 %v1608
        %v1610 = vlaneseq
        %v1611 = vshrl.u32 %v1610, 7
        %v1612 = vsub.s32 %v1609, %v1611
        %v1613 = vrot.slane %v1605, %v1612
        %v1615 = vunpack.c.l.s4 1934713408
        %v1616 = vunpack.c.0.s8 %v1615
        %v1617 = vlaneseq
        %v1618 = vshrl.u32 %v1617, 7
        %v1619 = vsub.s32 %v1616, %v1618
        %v1620 = vrot.slane %v1606, %v1619
        %v1621 = vcombine.low %v1588, %v1604
        %v1622 = vcombine.high %v1588, %v1604
        %v1624 = vunpack.c.l.s4 1934713408
        %v1625 = vunpack.c.0.s8 %v1624
        %v1626 = vlaneseq
        %v1627 = vshrl.u32 %v1626, 7
        %v1628 = vsub.s32 %v1625, %v1627
        %v1629 = vrot.slane %v1621, %v1628
        %v1631 = vunpack.c.l.s4 1934713408
        %v1632 = vunpack.c.0.s8 %v1631
        %v1633 = vlaneseq
        %v1634 = vshrl.u32 %v1633, 7
        %v1635 = vsub.s32 %v1632, %v1634
        %v1636 = vrot.slane %v1622, %v1635
        %v1637 = vcombine.high %v1613, 0.0
        %v1638 = vcombine.high %v1620, 0.0
        %v1639 = vcombine.high %v1629, 0.0
        %v1640 = vcombine.high %v1636, 0.0
        %v1641 = vcombine.low %v1238, %v1564
        %v1642 = vcombine.high %v1238, %v1564
        %v1644 = vunpack.c.l.s4 1983009808
        %v1645 = vunpack.c.0.s8 %v1644
        %v1646 = vlaneseq
        %v1647 = vshrl.u32 %v1646, 7
        %v1648 = vsub.s32 %v1645, %v1647
        %v1649 = vrot.slane %v1641, %v1648
        %v1651 = vunpack.c.l.s4 1983009808
        %v1652 = vunpack.c.0.s8 %v1651
        %v1653 = vlaneseq
        %v1654 = vshrl.u32 %v1653, 7
        %v1655 = vsub.s32 %v1652, %v1654
        %v1656 = vrot.slane %v1642, %v1655
        %v1657 = vcombine.low %v1558, %v1570
        %v1658 = vcombine.high %v1558, %v1570
        %v1660 = vunpack.c.l.s4 1983009808
        %v1661 = vunpack.c.0.s8 %v1660
        %v1662 = vlaneseq
        %v1663 = vshrl.u32 %v1662, 7
        %v1664 = vsub.s32 %v1661, %v1663
        %v1665 = vrot.slane %v1657, %v1664
        %v1667 = vunpack.c.l.s4 1983009808
        %v1668 = vunpack.c.0.s8 %v1667
        %v1669 = vlaneseq
        %v1670 = vshrl.u32 %v1669, 7
        %v1671 = vsub.s32 %v1668, %v1670
        %v1672 = vrot.slane %v1658, %v1671
        %v1673 = vcombine.low %v1649, %v1665
        %v1674 = vcombine.high %v1649, %v1665
        %v1676 = vunpack.c.l.s4 1934713408
        %v1677 = vunpack.c.0.s8 %v1676
        %v1678 = vlaneseq
        %v1679 = vshrl.u32 %v1678, 7
        %v1680 = vsub.s32 %v1677, %v1679
        %v1681 = vrot.slane %v1673, %v1680
        %v1683 = vunpack.c.l.s4 1934713408
        %v1684 = vunpack.c.0.s8 %v1683
        %v1685 = vlaneseq
        %v1686 = vshrl.u32 %v1685, 7
        %v1687 = vsub.s32 %v1684, %v1686
        %v1688 = vrot.slane %v1674, %v1687
        %v1689 = vcombine.low %v1656, %v1672
        %v1690 = vcombine.high %v1656, %v1672
        %v1692 = vunpack.c.l.s4 1934713408
        %v1693 = vunpack.c.0.s8 %v1692
        %v1694 = vlaneseq
        %v1695 = vshrl.u32 %v1694, 7
        %v1696 = vsub.s32 %v1693, %v1695
        %v1697 = vrot.slane %v1689, %v1696
        %v1699 = vunpack.c.l.s4 1934713408
        %v1700 = vunpack.c.0.s8 %v1699
        %v1701 = vlaneseq
        %v1702 = vshrl.u32 %v1701, 7
        %v1703 = vsub.s32 %v1700, %v1702
        %v1704 = vrot.slane %v1690, %v1703
        %v1705 = vcombine.high %v1681, 0.0
        %v1706 = vcombine.high %v1688, 0.0
        %v1707 = vcombine.high %v1697, 0.0
        %v1708 = vcombine.high %v1704, 0.0
        %v1709 = vcombine.low %v1301, %v1308
        %v1711 = vunpack.c.l.s4 1983009808
        %v1712 = vunpack.c.0.s8 %v1711
        %v1713 = vlaneseq
        %v1714 = vshrl.u32 %v1713, 7
        %v1715 = vsub.s32 %v1712, %v1714
        %v1716 = vrot.slane %v1709, %v1715
        %v1717 = vcombine.low %v1325, %v1326
        %v1719 = vunpack.c.l.s4 1983009808
        %v1720 = vunpack.c.0.s8 %v1719
        %v1721 = vlaneseq
        %v1722 = vshrl.u32 %v1721, 7
        %v1723 = vsub.s32 %v1720, %v1722
        %v1724 = vrot.slane %v1717, %v1723
        %v1725 = vcombine.low %v1317, %v1324
        %v1727 = vunpack.c.l.s4 1983009808
        %v1728 = vunpack.c.0.s8 %v1727
        %v1729 = vlaneseq
        %v1730 = vshrl.u32 %v1729, 7
        %v1731 = vsub.s32 %v1728, %v1730
        %v1732 = vrot.slane %v1725, %v1731
        %v1733 = vcombine.low %v1327, %v1328
        %v1735 = vunpack.c.l.s4 1983009808
        %v1736 = vunpack.c.0.s8 %v1735
        %v1737 = vlaneseq
        %v1738 = vshrl.u32 %v1737, 7
        %v1739 = vsub.s32 %v1736, %v1738
        %v1740 = vrot.slane %v1733, %v1739
        %v1741 = vcombine.low %v1716, %v1724
        %v1742 = vcombine.high %v1716, %v1724
        %v1744 = vunpack.c.l.s4 1934713408
        %v1745 = vunpack.c.0.s8 %v1744
        %v1746 = vlaneseq
        %v1747 = vshrl.u32 %v1746, 7
        %v1748 = vsub.s32 %v1745, %v1747
        %v1749 = vrot.slane %v1741, %v1748
        %v1751 = vunpack.c.l.s4 1934713408
        %v1752 = vunpack.c.0.s8 %v1751
        %v1753 = vlaneseq
        %v1754 = vshrl.u32 %v1753, 7
        %v1755 = vsub.s32 %v1752, %v1754
        %v1756 = vrot.slane %v1742, %v1755
        %v1757 = vcombine.low %v1732, %v1740
        %v1758 = vcombine.high %v1732, %v1740
        %v1760 = vunpack.c.l.s4 1934713408
        %v1761 = vunpack.c.0.s8 %v1760
        %v1762 = vlaneseq
        %v1763 = vshrl.u32 %v1762, 7
        %v1764 = vsub.s32 %v1761, %v1763
        %v1765 = vrot.slane %v1757, %v1764
        %v1767 = vunpack.c.l.s4 1934713408
        %v1768 = vunpack.c.0.s8 %v1767
        %v1769 = vlaneseq
        %v1770 = vshrl.u32 %v1769, 7
        %v1771 = vsub.s32 %v1768, %v1770
        %v1772 = vrot.slane %v1758, %v1771
        %v1773 = vcombine.low %v1749, %v1765
        %v1774 = vcombine.high %v1749, %v1765
        %v1775 = vcombine.low %v1756, %v1772
        %v1776 = vcombine.high %v1756, %v1772
        %v1777 = vcombine.low %v1369, %v1376
        %v1779 = vunpack.c.l.s4 1983009808
        %v1780 = vunpack.c.0.s8 %v1779
        %v1781 = vlaneseq
        %v1782 = vshrl.u32 %v1781, 7
        %v1783 = vsub.s32 %v1780, %v1782
        %v1784 = vrot.slane %v1777, %v1783
        %v1785 = vcombine.low %v1393, %v1394
        %v1787 = vunpack.c.l.s4 1983009808
        %v1788 = vunpack.c.0.s8 %v1787
        %v1789 = vlaneseq
        %v1790 = vshrl.u32 %v1789, 7
        %v1791 = vsub.s32 %v1788, %v1790
        %v1792 = vrot.slane %v1785, %v1791
        %v1793 = vcombine.low %v1385, %v1392
        %v1795 = vunpack.c.l.s4 1983009808
        %v1796 = vunpack.c.0.s8 %v1795
        %v1797 = vlaneseq
        %v1798 = vshrl.u32 %v1797, 7
        %v1799 = vsub.s32 %v1796, %v1798
        %v1800 = vrot.slane %v1793, %v1799
        %v1801 = vcombine.low %v1395, %v1396
        %v1803 = vunpack.c.l.s4 1983009808
        %v1804 = vunpack.c.0.s8 %v1803
        %v1805 = vlaneseq
        %v1806 = vshrl.u32 %v1805, 7
        %v1807 = vsub.s32 %v1804, %v1806
        %v1808 = vrot.slane %v1801, %v1807
        %v1809 = vcombine.low %v1784, %v1792
        %v1810 = vcombine.high %v1784, %v1792
        %v1812 = vunpack.c.l.s4 1934713408
        %v1813 = vunpack.c.0.s8 %v1812
        %v1814 = vlaneseq
        %v1815 = vshrl.u32 %v1814, 7
        %v1816 = vsub.s32 %v1813, %v1815
        %v1817 = vrot.slane %v1809, %v1816
        %v1819 = vunpack.c.l.s4 1934713408
        %v1820 = vunpack.c.0.s8 %v1819
        %v1821 = vlaneseq
        %v1822 = vshrl.u32 %v1821, 7
        %v1823 = vsub.s32 %v1820, %v1822
        %v1824 = vrot.slane %v1810, %v1823
        %v1825 = vcombine.low %v1800, %v1808
        %v1826 = vcombine.high %v1800, %v1808
        %v1828 = vunpack.c.l.s4 1934713408
        %v1829 = vunpack.c.0.s8 %v1828
        %v1830 = vlaneseq
        %v1831 = vshrl.u32 %v1830, 7
        %v1832 = vsub.s32 %v1829, %v1831
        %v1833 = vrot.slane %v1825, %v1832
        %v1835 = vunpack.c.l.s4 1934713408
        %v1836 = vunpack.c.0.s8 %v1835
        %v1837 = vlaneseq
        %v1838 = vshrl.u32 %v1837, 7
        %v1839 = vsub.s32 %v1836, %v1838
        %v1840 = vrot.slane %v1826, %v1839
        %v1841 = vcombine.low %v1817, %v1833
        %v1842 = vcombine.high %v1817, %v1833
        %v1843 = vcombine.low %v1824, %v1840
        %v1844 = vcombine.high %v1824, %v1840
        %v1845 = vpack.c.bf16 %v1841, %v1773
        %v1846 = vpack.c.bf16 %v1842, %v1774
        %v1847 = vpack.c.bf16 %v1843, %v1775
        %v1848 = vpack.c.bf16 %v1844, %v1776
        %v1849 = vcombine.low %v1457, %v1464
        %v1851 = vunpack.c.l.s4 1983009808
        %v1852 = vunpack.c.0.s8 %v1851
        %v1853 = vlaneseq
        %v1854 = vshrl.u32 %v1853, 7
        %v1855 = vsub.s32 %v1852, %v1854
        %v1856 = vrot.slane %v1849, %v1855
        %v1857 = vcombine.low %v1481, %v1482
        %v1859 = vunpack.c.l.s4 1983009808
        %v1860 = vunpack.c.0.s8 %v1859
        %v1861 = vlaneseq
        %v1862 = vshrl.u32 %v1861, 7
        %v1863 = vsub.s32 %v1860, %v1862
        %v1864 = vrot.slane %v1857, %v1863
        %v1865 = vcombine.low %v1473, %v1480
        %v1867 = vunpack.c.l.s4 1983009808
        %v1868 = vunpack.c.0.s8 %v1867
        %v1869 = vlaneseq
        %v1870 = vshrl.u32 %v1869, 7
        %v1871 = vsub.s32 %v1868, %v1870
        %v1872 = vrot.slane %v1865, %v1871
        %v1873 = vcombine.low %v1483, %v1484
        %v1875 = vunpack.c.l.s4 1983009808
        %v1876 = vunpack.c.0.s8 %v1875
        %v1877 = vlaneseq
        %v1878 = vshrl.u32 %v1877, 7
        %v1879 = vsub.s32 %v1876, %v1878
        %v1880 = vrot.slane %v1873, %v1879
        %v1881 = vcombine.low %v1856, %v1864
        %v1882 = vcombine.high %v1856, %v1864
        %v1884 = vunpack.c.l.s4 1934713408
        %v1885 = vunpack.c.0.s8 %v1884
        %v1886 = vlaneseq
        %v1887 = vshrl.u32 %v1886, 7
        %v1888 = vsub.s32 %v1885, %v1887
        %v1889 = vrot.slane %v1881, %v1888
        %v1891 = vunpack.c.l.s4 1934713408
        %v1892 = vunpack.c.0.s8 %v1891
        %v1893 = vlaneseq
        %v1894 = vshrl.u32 %v1893, 7
        %v1895 = vsub.s32 %v1892, %v1894
        %v1896 = vrot.slane %v1882, %v1895
        %v1897 = vcombine.low %v1872, %v1880
        %v1898 = vcombine.high %v1872, %v1880
        %v1900 = vunpack.c.l.s4 1934713408
        %v1901 = vunpack.c.0.s8 %v1900
        %v1902 = vlaneseq
        %v1903 = vshrl.u32 %v1902, 7
        %v1904 = vsub.s32 %v1901, %v1903
        %v1905 = vrot.slane %v1897, %v1904
        %v1907 = vunpack.c.l.s4 1934713408
        %v1908 = vunpack.c.0.s8 %v1907
        %v1909 = vlaneseq
        %v1910 = vshrl.u32 %v1909, 7
        %v1911 = vsub.s32 %v1908, %v1910
        %v1912 = vrot.slane %v1898, %v1911
        %v1913 = vcombine.low %v1889, %v1905
        %v1914 = vcombine.high %v1889, %v1905
        %v1915 = vcombine.low %v1896, %v1912
        %v1916 = vcombine.high %v1896, %v1912
        %v1917 = vcombine.low %v1525, %v1532
        %v1919 = vunpack.c.l.s4 1983009808
        %v1920 = vunpack.c.0.s8 %v1919
        %v1921 = vlaneseq
        %v1922 = vshrl.u32 %v1921, 7
        %v1923 = vsub.s32 %v1920, %v1922
        %v1924 = vrot.slane %v1917, %v1923
        %v1925 = vcombine.low %v1549, %v1550
        %v1927 = vunpack.c.l.s4 1983009808
        %v1928 = vunpack.c.0.s8 %v1927
        %v1929 = vlaneseq
        %v1930 = vshrl.u32 %v1929, 7
        %v1931 = vsub.s32 %v1928, %v1930
        %v1932 = vrot.slane %v1925, %v1931
        %v1933 = vcombine.low %v1541, %v1548
        %v1935 = vunpack.c.l.s4 1983009808
        %v1936 = vunpack.c.0.s8 %v1935
        %v1937 = vlaneseq
        %v1938 = vshrl.u32 %v1937, 7
        %v1939 = vsub.s32 %v1936, %v1938
        %v1940 = vrot.slane %v1933, %v1939
        %v1941 = vcombine.low %v1551, %v1552
        %v1943 = vunpack.c.l.s4 1983009808
        %v1944 = vunpack.c.0.s8 %v1943
        %v1945 = vlaneseq
        %v1946 = vshrl.u32 %v1945, 7
        %v1947 = vsub.s32 %v1944, %v1946
        %v1948 = vrot.slane %v1941, %v1947
        %v1949 = vcombine.low %v1924, %v1932
        %v1950 = vcombine.high %v1924, %v1932
        %v1952 = vunpack.c.l.s4 1934713408
        %v1953 = vunpack.c.0.s8 %v1952
        %v1954 = vlaneseq
        %v1955 = vshrl.u32 %v1954, 7
        %v1956 = vsub.s32 %v1953, %v1955
        %v1957 = vrot.slane %v1949, %v1956
        %v1959 = vunpack.c.l.s4 1934713408
        %v1960 = vunpack.c.0.s8 %v1959
        %v1961 = vlaneseq
        %v1962 = vshrl.u32 %v1961, 7
        %v1963 = vsub.s32 %v1960, %v1962
        %v1964 = vrot.slane %v1950, %v1963
        %v1965 = vcombine.low %v1940, %v1948
        %v1966 = vcombine.high %v1940, %v1948
        %v1968 = vunpack.c.l.s4 1934713408
        %v1969 = vunpack.c.0.s8 %v1968
        %v1970 = vlaneseq
        %v1971 = vshrl.u32 %v1970, 7
        %v1972 = vsub.s32 %v1969, %v1971
        %v1973 = vrot.slane %v1965, %v1972
        %v1975 = vunpack.c.l.s4 1934713408
        %v1976 = vunpack.c.0.s8 %v1975
        %v1977 = vlaneseq
        %v1978 = vshrl.u32 %v1977, 7
        %v1979 = vsub.s32 %v1976, %v1978
        %v1980 = vrot.slane %v1966, %v1979
        %v1981 = vcombine.low %v1957, %v1973
        %v1982 = vcombine.high %v1957, %v1973
        %v1983 = vcombine.low %v1964, %v1980
        %v1984 = vcombine.high %v1964, %v1980
        %v1985 = vpack.c.bf16 %v1981, %v1913
        %v1986 = vpack.c.bf16 %v1982, %v1914
        %v1987 = vpack.c.bf16 %v1983, %v1915
        %v1988 = vpack.c.bf16 %v1984, %v1916
        %v1989 = vcombine.low %v1613, %v1620
        %v1991 = vunpack.c.l.s4 1983009808
        %v1992 = vunpack.c.0.s8 %v1991
        %v1993 = vlaneseq
        %v1994 = vshrl.u32 %v1993, 7
        %v1995 = vsub.s32 %v1992, %v1994
        %v1996 = vrot.slane %v1989, %v1995
        %v1997 = vcombine.low %v1637, %v1638
        %v1999 = vunpack.c.l.s4 1983009808
        %v2000 = vunpack.c.0.s8 %v1999
        %v2001 = vlaneseq
        %v2002 = vshrl.u32 %v2001, 7
        %v2003 = vsub.s32 %v2000, %v2002
        %v2004 = vrot.slane %v1997, %v2003
        %v2005 = vcombine.low %v1629, %v1636
        %v2007 = vunpack.c.l.s4 1983009808
        %v2008 = vunpack.c.0.s8 %v2007
        %v2009 = vlaneseq
        %v2010 = vshrl.u32 %v2009, 7
        %v2011 = vsub.s32 %v2008, %v2010
        %v2012 = vrot.slane %v2005, %v2011
        %v2013 = vcombine.low %v1639, %v1640
        %v2015 = vunpack.c.l.s4 1983009808
        %v2016 = vunpack.c.0.s8 %v2015
        %v2017 = vlaneseq
        %v2018 = vshrl.u32 %v2017, 7
        %v2019 = vsub.s32 %v2016, %v2018
        %v2020 = vrot.slane %v2013, %v2019
        %v2021 = vcombine.low %v1996, %v2004
        %v2022 = vcombine.high %v1996, %v2004
        %v2024 = vunpack.c.l.s4 1934713408
        %v2025 = vunpack.c.0.s8 %v2024
        %v2026 = vlaneseq
        %v2027 = vshrl.u32 %v2026, 7
        %v2028 = vsub.s32 %v2025, %v2027
        %v2029 = vrot.slane %v2021, %v2028
        %v2031 = vunpack.c.l.s4 1934713408
        %v2032 = vunpack.c.0.s8 %v2031
        %v2033 = vlaneseq
        %v2034 = vshrl.u32 %v2033, 7
        %v2035 = vsub.s32 %v2032, %v2034
        %v2036 = vrot.slane %v2022, %v2035
        %v2037 = vcombine.low %v2012, %v2020
        %v2038 = vcombine.high %v2012, %v2020
        %v2040 = vunpack.c.l.s4 1934713408
        %v2041 = vunpack.c.0.s8 %v2040
        %v2042 = vlaneseq
        %v2043 = vshrl.u32 %v2042, 7
        %v2044 = vsub.s32 %v2041, %v2043
        %v2045 = vrot.slane %v2037, %v2044
        %v2047 = vunpack.c.l.s4 1934713408
        %v2048 = vunpack.c.0.s8 %v2047
        %v2049 = vlaneseq
        %v2050 = vshrl.u32 %v2049, 7
        %v2051 = vsub.s32 %v2048, %v2050
        %v2052 = vrot.slane %v2038, %v2051
        %v2053 = vcombine.low %v2029, %v2045
        %v2054 = vcombine.high %v2029, %v2045
        %v2055 = vcombine.low %v2036, %v2052
        %v2056 = vcombine.high %v2036, %v2052
        %v2057 = vcombine.low %v1681, %v1688
        %v2059 = vunpack.c.l.s4 1983009808
        %v2060 = vunpack.c.0.s8 %v2059
        %v2061 = vlaneseq
        %v2062 = vshrl.u32 %v2061, 7
        %v2063 = vsub.s32 %v2060, %v2062
        %v2064 = vrot.slane %v2057, %v2063
        %v2065 = vcombine.low %v1705, %v1706
        %v2067 = vunpack.c.l.s4 1983009808
        %v2068 = vunpack.c.0.s8 %v2067
        %v2069 = vlaneseq
        %v2070 = vshrl.u32 %v2069, 7
        %v2071 = vsub.s32 %v2068, %v2070
        %v2072 = vrot.slane %v2065, %v2071
        %v2073 = vcombine.low %v1697, %v1704
        %v2075 = vunpack.c.l.s4 1983009808
        %v2076 = vunpack.c.0.s8 %v2075
        %v2077 = vlaneseq
        %v2078 = vshrl.u32 %v2077, 7
        %v2079 = vsub.s32 %v2076, %v2078
        %v2080 = vrot.slane %v2073, %v2079
        %v2081 = vcombine.low %v1707, %v1708
        %v2083 = vunpack.c.l.s4 1983009808
        %v2084 = vunpack.c.0.s8 %v2083
        %v2085 = vlaneseq
        %v2086 = vshrl.u32 %v2085, 7
        %v2087 = vsub.s32 %v2084, %v2086
        %v2088 = vrot.slane %v2081, %v2087
        %v2089 = vcombine.low %v2064, %v2072
        %v2090 = vcombine.high %v2064, %v2072
        %v2092 = vunpack.c.l.s4 1934713408
        %v2093 = vunpack.c.0.s8 %v2092
        %v2094 = vlaneseq
        %v2095 = vshrl.u32 %v2094, 7
        %v2096 = vsub.s32 %v2093, %v2095
        %v2097 = vrot.slane %v2089, %v2096
        %v2099 = vunpack.c.l.s4 1934713408
        %v2100 = vunpack.c.0.s8 %v2099
        %v2101 = vlaneseq
        %v2102 = vshrl.u32 %v2101, 7
        %v2103 = vsub.s32 %v2100, %v2102
        %v2104 = vrot.slane %v2090, %v2103
        %v2105 = vcombine.low %v2080, %v2088
        %v2106 = vcombine.high %v2080, %v2088
        %v2108 = vunpack.c.l.s4 1934713408
        %v2109 = vunpack.c.0.s8 %v2108
        %v2110 = vlaneseq
        %v2111 = vshrl.u32 %v2110, 7
        %v2112 = vsub.s32 %v2109, %v2111
        %v2113 = vrot.slane %v2105, %v2112
        %v2115 = vunpack.c.l.s4 1934713408
        %v2116 = vunpack.c.0.s8 %v2115
        %v2117 = vlaneseq
        %v2118 = vshrl.u32 %v2117, 7
        %v2119 = vsub.s32 %v2116, %v2118
        %v2120 = vrot.slane %v2106, %v2119
        %v2121 = vcombine.low %v2097, %v2113
        %v2122 = vcombine.high %v2097, %v2113
        %v2123 = vcombine.low %v2104, %v2120
        %v2124 = vcombine.high %v2104, %v2120
        %v2125 = vpack.c.bf16 %v2121, %v2053
        %v2126 = vpack.c.bf16 %v2122, %v2054
        %v2127 = vpack.c.bf16 %v2123, %v2055
        %v2128 = vpack.c.bf16 %v2124, %v2056
        %vm2129 = vcmask 261120
        %v2131 = vsel %vm2129, %v1845, 0
        %v2134 = vsel %vm2129, %v1985, 0
        %2136 = vmatprep.subr.bf16.mxu0 0
        %2137 = vmatpush1.bf16.xpose.msra.mxu0 %v2134
        %2138 = vmatprep.subr.bf16.mxu0 0
        %2139 = vmatpush1.bf16.xpose.msra.mxu0 0
        %2140 = vmatprep.subr.bf16.mxu0 0
        %2141 = vmatpush1.bf16.xpose.msra.mxu0 0
        %2142 = vmatprep.subr.bf16.mxu0 0
        %2143 = vmatpush1.bf16.xpose.msra.mxu0 0
        %2144 = vmatprep.subr.bf16.mxu0 0
        %2145 = vmatpush1.bf16.xpose.msra.mxu0 0
        %2146 = vmatprep.subr.bf16.mxu0 0
        %2147 = vmatpush1.bf16.xpose.msra.mxu0 0
        %2148 = vmatprep.subr.bf16.mxu0 0
        %2149 = vmatpush1.bf16.xpose.msra.mxu0 0
        %2150 = vmatprep.subr.bf16.mxu0 0
        %2151 = vmatpush1.bf16.xpose.msra.mxu0 0
        %2152 = vmatprep.subr.bf16.mxu0 0
        %2153 = vmatpush1.bf16.xpose.msra.mxu0 0
        %2154 = vmatprep.subr.bf16.mxu0 0
        %2155 = vmatpush1.bf16.xpose.msra.mxu0 0
        %2156 = vmatprep.subr.bf16.mxu0 0
        %2157 = vmatpush1.bf16.xpose.msra.mxu0 0
        %2158 = vmatprep.subr.bf16.mxu0 0
        %2159 = vmatpush1.bf16.xpose.msra.mxu0 0
        %2160 = vmatprep.subr.bf16.mxu0 0
        %2161 = vmatpush1.bf16.xpose.msra.mxu0 0
        %2162 = vmatprep.subr.bf16.mxu0 0
        %2163 = vmatpush1.bf16.xpose.msra.mxu0 0
        %2164 = vmatprep.subr.bf16.mxu0 0
        %2165 = vmatpush1.bf16.xpose.msra.mxu0 0
        %2166 = vmatprep.subr.bf16.mxu0 0
        %2167 = vmatpush1.bf16.xpose.msra.mxu0 0
        %2168 = vmatprep.mubr.bf16.mxu0 0
        %2169 = vmatmul.mubr.bf16.gmra.mrb[0].mxu0 %v2131
        %v2170 = vpop.f32.mrb[0].mxu0
        %v2171 = vadd.f32 %v936, %v2170
        %v2172 = vpop.f32.mrb[0].mxu0
        %v2173 = vpop.f32.mrb[0].mxu0
        %v2174 = vadd.f32 %v937, %v2173
        %v2175 = vpop.f32.mrb[0].mxu0
        %2176 = vdwg.mxu0
        %v2178 = vsel %vm2129, %v1846, 0
        %v2181 = vsel %vm2129, %v1986, 0
        %2183 = vmatprep.subr.bf16.mxu0 0
        %2184 = vmatpush1.bf16.xpose.msra.mxu0 %v2181
        %2185 = vmatprep.subr.bf16.mxu0 0
        %2186 = vmatpush1.bf16.xpose.msra.mxu0 0
        %2187 = vmatprep.subr.bf16.mxu0 0
        %2188 = vmatpush1.bf16.xpose.msra.mxu0 0
        %2189 = vmatprep.subr.bf16.mxu0 0
        %2190 = vmatpush1.bf16.xpose.msra.mxu0 0
        %2191 = vmatprep.subr.bf16.mxu0 0
        %2192 = vmatpush1.bf16.xpose.msra.mxu0 0
        %2193 = vmatprep.subr.bf16.mxu0 0
        %2194 = vmatpush1.bf16.xpose.msra.mxu0 0
        %2195 = vmatprep.subr.bf16.mxu0 0
        %2196 = vmatpush1.bf16.xpose.msra.mxu0 0
        %2197 = vmatprep.subr.bf16.mxu0 0
        %2198 = vmatpush1.bf16.xpose.msra.mxu0 0
        %2199 = vmatprep.subr.bf16.mxu0 0
        %2200 = vmatpush1.bf16.xpose.msra.mxu0 0
        %2201 = vmatprep.subr.bf16.mxu0 0
        %2202 = vmatpush1.bf16.xpose.msra.mxu0 0
        %2203 = vmatprep.subr.bf16.mxu0 0
        %2204 = vmatpush1.bf16.xpose.msra.mxu0 0
        %2205 = vmatprep.subr.bf16.mxu0 0
        %2206 = vmatpush1.bf16.xpose.msra.mxu0 0
        %2207 = vmatprep.subr.bf16.mxu0 0
        %2208 = vmatpush1.bf16.xpose.msra.mxu0 0
        %2209 = vmatprep.subr.bf16.mxu0 0
        %2210 = vmatpush1.bf16.xpose.msra.mxu0 0
        %2211 = vmatprep.subr.bf16.mxu0 0
        %2212 = vmatpush1.bf16.xpose.msra.mxu0 0
        %2213 = vmatprep.subr.bf16.mxu0 0
        %2214 = vmatpush1.bf16.xpose.msra.mxu0 0
        %2215 = vmatprep.mubr.bf16.mxu0 0
        %2216 = vmatmul.mubr.bf16.gmra.mrb[0].mxu0 %v2178
        %v2217 = vpop.f32.mrb[0].mxu0
        %v2218 = vadd.f32 %v936, %v2217
        %v2219 = vpop.f32.mrb[0].mxu0
        %v2220 = vpop.f32.mrb[0].mxu0
        %v2221 = vadd.f32 %v937, %v2220
        %v2222 = vpop.f32.mrb[0].mxu0
        %2223 = vdwg.mxu0
        %v2225 = vsel %vm2129, %v1847, 0
        %v2228 = vsel %vm2129, %v1987, 0
        %2230 = vmatprep.subr.bf16.mxu0 0
        %2231 = vmatpush1.bf16.xpose.msra.mxu0 %v2228
        %2232 = vmatprep.subr.bf16.mxu0 0
        %2233 = vmatpush1.bf16.xpose.msra.mxu0 0
        %2234 = vmatprep.subr.bf16.mxu0 0
        %2235 = vmatpush1.bf16.xpose.msra.mxu0 0
        %2236 = vmatprep.subr.bf16.mxu0 0
        %2237 = vmatpush1.bf16.xpose.msra.mxu0 0
        %2238 = vmatprep.subr.bf16.mxu0 0
        %2239 = vmatpush1.bf16.xpose.msra.mxu0 0
        %2240 = vmatprep.subr.bf16.mxu0 0
        %2241 = vmatpush1.bf16.xpose.msra.mxu0 0
        %2242 = vmatprep.subr.bf16.mxu0 0
        %2243 = vmatpush1.bf16.xpose.msra.mxu0 0
        %2244 = vmatprep.subr.bf16.mxu0 0
        %2245 = vmatpush1.bf16.xpose.msra.mxu0 0
        %2246 = vmatprep.subr.bf16.mxu0 0
        %2247 = vmatpush1.bf16.xpose.msra.mxu0 0
        %2248 = vmatprep.subr.bf16.mxu0 0
        %2249 = vmatpush1.bf16.xpose.msra.mxu0 0
        %2250 = vmatprep.subr.bf16.mxu0 0
        %2251 = vmatpush1.bf16.xpose.msra.mxu0 0
        %2252 = vmatprep.subr.bf16.mxu0 0
        %2253 = vmatpush1.bf16.xpose.msra.mxu0 0
        %2254 = vmatprep.subr.bf16.mxu0 0
        %2255 = vmatpush1.bf16.xpose.msra.mxu0 0
        %2256 = vmatprep.subr.bf16.mxu0 0
        %2257 = vmatpush1.bf16.xpose.msra.mxu0 0
        %2258 = vmatprep.subr.bf16.mxu0 0
        %2259 = vmatpush1.bf16.xpose.msra.mxu0 0
        %2260 = vmatprep.subr.bf16.mxu0 0
        %2261 = vmatpush1.bf16.xpose.msra.mxu0 0
        %2262 = vmatprep.mubr.bf16.mxu0 0
        %2263 = vmatmul.mubr.bf16.gmra.mrb[0].mxu0 %v2225
        %v2264 = vpop.f32.mrb[0].mxu0
        %v2265 = vadd.f32 %v936, %v2264
        %v2266 = vpop.f32.mrb[0].mxu0
        %v2267 = vpop.f32.mrb[0].mxu0
        %v2268 = vadd.f32 %v937, %v2267
        %v2269 = vpop.f32.mrb[0].mxu0
        %2270 = vdwg.mxu0
        %v2272 = vsel %vm2129, %v1848, 0
        %v2275 = vsel %vm2129, %v1988, 0
        %2277 = vmatprep.subr.bf16.mxu0 0
        %2278 = vmatpush1.bf16.xpose.msra.mxu0 %v2275
        %2279 = vmatprep.subr.bf16.mxu0 0
        %2280 = vmatpush1.bf16.xpose.msra.mxu0 0
        %2281 = vmatprep.subr.bf16.mxu0 0
        %2282 = vmatpush1.bf16.xpose.msra.mxu0 0
        %2283 = vmatprep.subr.bf16.mxu0 0
        %2284 = vmatpush1.bf16.xpose.msra.mxu0 0
        %2285 = vmatprep.subr.bf16.mxu0 0
        %2286 = vmatpush1.bf16.xpose.msra.mxu0 0
        %2287 = vmatprep.subr.bf16.mxu0 0
        %2288 = vmatpush1.bf16.xpose.msra.mxu0 0
        %2289 = vmatprep.subr.bf16.mxu0 0
        %2290 = vmatpush1.bf16.xpose.msra.mxu0 0
        %2291 = vmatprep.subr.bf16.mxu0 0
        %2292 = vmatpush1.bf16.xpose.msra.mxu0 0
        %2293 = vmatprep.subr.bf16.mxu0 0
        %2294 = vmatpush1.bf16.xpose.msra.mxu0 0
        %2295 = vmatprep.subr.bf16.mxu0 0
        %2296 = vmatpush1.bf16.xpose.msra.mxu0 0
        %2297 = vmatprep.subr.bf16.mxu0 0
        %2298 = vmatpush1.bf16.xpose.msra.mxu0 0
        %2299 = vmatprep.subr.bf16.mxu0 0
        %2300 = vmatpush1.bf16.xpose.msra.mxu0 0
        %2301 = vmatprep.subr.bf16.mxu0 0
        %2302 = vmatpush1.bf16.xpose.msra.mxu0 0
        %2303 = vmatprep.subr.bf16.mxu0 0
        %2304 = vmatpush1.bf16.xpose.msra.mxu0 0
        %2305 = vmatprep.subr.bf16.mxu0 0
        %2306 = vmatpush1.bf16.xpose.msra.mxu0 0
        %2307 = vmatprep.subr.bf16.mxu0 0
        %2308 = vmatpush1.bf16.xpose.msra.mxu0 0
        %2309 = vmatprep.mubr.bf16.mxu0 0
        %2310 = vmatmul.mubr.bf16.gmra.mrb[0].mxu0 %v2272
        %v2311 = vpop.f32.mrb[0].mxu0
        %v2312 = vadd.f32 %v936, %v2311
        %v2313 = vpop.f32.mrb[0].mxu0
        %v2314 = vpop.f32.mrb[0].mxu0
        %v2315 = vadd.f32 %v937, %v2314
        %v2316 = vpop.f32.mrb[0].mxu0
        %2317 = vdwg.mxu0
        %vm2318 = vcmask 130048
        %v2319 = vsel %vm2318, %v2171, -inf
        %2320 = vmax.xlane.f32.xlu0 %v2319
        %v2321 = vpop.xlane.xlu0 %2320
        %v2322 = vsel %vm2318, %v2174, -inf
        %2323 = vmax.xlane.f32.xlu0 %v2322
        %v2324 = vpop.xlane.xlu0 %2323
        %v2325 = vsel %vm2318, %v2218, -inf
        %2326 = vmax.xlane.f32.xlu0 %v2325
        %v2327 = vpop.xlane.xlu0 %2326
        %v2328 = vsel %vm2318, %v2221, -inf
        %2329 = vmax.xlane.f32.xlu0 %v2328
        %v2330 = vpop.xlane.xlu0 %2329
        %v2331 = vsel %vm2318, %v2265, -inf
        %2332 = vmax.xlane.f32.xlu0 %v2331
        %v2333 = vpop.xlane.xlu0 %2332
        %v2334 = vsel %vm2318, %v2268, -inf
        %2335 = vmax.xlane.f32.xlu0 %v2334
        %v2336 = vpop.xlane.xlu0 %2335
        %v2337 = vsel %vm2318, %v2312, -inf
        %2338 = vmax.xlane.f32.xlu0 %v2337
        %v2339 = vpop.xlane.xlu0 %2338
        %v2340 = vsel %vm2318, %v2315, -inf
        %2341 = vmax.xlane.f32.xlu0 %v2340
        %v2342 = vpop.xlane.xlu0 %2341
        %v2343 = vsub.f32 %v2171, %v2321
        %v2344 = vsub.f32 %v2174, %v2324
        %v2345 = vsub.f32 %v2218, %v2327
        %v2346 = vsub.f32 %v2221, %v2330
        %v2347 = vsub.f32 %v2265, %v2333
        %v2348 = vsub.f32 %v2268, %v2336
        %v2349 = vsub.f32 %v2312, %v2339
        %v2350 = vsub.f32 %v2315, %v2342
        %v2351 = vmul.f32 %v2343, 1.442695
        %v2352 = vpow.pop %v2351
        %v2353 = vmul.f32 %v2344, 1.442695
        %v2354 = vpow.pop %v2353
        %v2355 = vmul.f32 %v2345, 1.442695
        %v2356 = vpow.pop %v2355
        %v2357 = vmul.f32 %v2346, 1.442695
        %v2358 = vpow.pop %v2357
        %v2359 = vmul.f32 %v2347, 1.442695
        %v2360 = vpow.pop %v2359
        %v2361 = vmul.f32 %v2348, 1.442695
        %v2362 = vpow.pop %v2361
        %v2363 = vmul.f32 %v2349, 1.442695
        %v2364 = vpow.pop %v2363
        %v2365 = vmul.f32 %v2350, 1.442695
        %v2366 = vpow.pop %v2365
        %v2367 = vsel %vm2318, %v2352, 0.0
        %2368 = vadd.xlane.f32.xlu0 %v2367
        %v2369 = vpop.xlane.xlu0 %2368
        %v2370 = vsel %vm2318, %v2354, 0.0
        %2371 = vadd.xlane.f32.xlu0 %v2370
        %v2372 = vpop.xlane.xlu0 %2371
        %v2373 = vsel %vm2318, %v2356, 0.0
        %2374 = vadd.xlane.f32.xlu0 %v2373
        %v2375 = vpop.xlane.xlu0 %2374
        %v2376 = vsel %vm2318, %v2358, 0.0
        %2377 = vadd.xlane.f32.xlu0 %v2376
        %v2378 = vpop.xlane.xlu0 %2377
        %v2379 = vsel %vm2318, %v2360, 0.0
        %2380 = vadd.xlane.f32.xlu0 %v2379
        %v2381 = vpop.xlane.xlu0 %2380
        %v2382 = vsel %vm2318, %v2362, 0.0
        %2383 = vadd.xlane.f32.xlu0 %v2382
        %v2384 = vpop.xlane.xlu0 %2383
        %v2385 = vsel %vm2318, %v2364, 0.0
        %2386 = vadd.xlane.f32.xlu0 %v2385
        %v2387 = vpop.xlane.xlu0 %2386
        %v2388 = vsel %vm2318, %v2366, 0.0
        %2389 = vadd.xlane.f32.xlu0 %v2388
        %v2390 = vpop.xlane.xlu0 %2389
        %v2391 = vrcp.pop %v2369
        %v2392 = vrcp.pop %v2372
        %v2393 = vrcp.pop %v2375
        %v2394 = vrcp.pop %v2378
        %v2395 = vrcp.pop %v2381
        %v2396 = vrcp.pop %v2384
        %v2397 = vrcp.pop %v2387
        %v2398 = vrcp.pop %v2390
        %v2399 = vmul.f32 %v2352, %v2391
        %v2400 = vmul.f32 %v2354, %v2392
        %v2401 = vmul.f32 %v2356, %v2393
        %v2402 = vmul.f32 %v2358, %v2394
        %v2403 = vmul.f32 %v2360, %v2395
        %v2404 = vmul.f32 %v2362, %v2396
        %v2405 = vmul.f32 %v2364, %v2397
        %v2406 = vmul.f32 %v2366, %v2398
        %v2407 = vpack.c.bf16 %v2400, %v2399
        %v2408 = vpack.c.bf16 %v2402, %v2401
        %v2409 = vpack.c.bf16 %v2404, %v2403
        %v2410 = vpack.c.bf16 %v2406, %v2405
        %v2412 = vsel %vm2318, %v2407, 0
        %2414 = vmatprep.subr.bf16.mxu0 0
        %2415 = vmatpush1.bf16.msra.mxu0 %v2125
        %2416 = vmatprep.subr.bf16.mxu0 0
        %2417 = vmatpush1.bf16.msra.mxu0 0
        %2418 = vmatprep.subr.bf16.mxu0 0
        %2419 = vmatpush1.bf16.msra.mxu0 0
        %2420 = vmatprep.subr.bf16.mxu0 0
        %2421 = vmatpush1.bf16.msra.mxu0 0
        %2422 = vmatprep.subr.bf16.mxu0 0
        %2423 = vmatpush1.bf16.msra.mxu0 0
        %2424 = vmatprep.subr.bf16.mxu0 0
        %2425 = vmatpush1.bf16.msra.mxu0 0
        %2426 = vmatprep.subr.bf16.mxu0 0
        %2427 = vmatpush1.bf16.msra.mxu0 0
        %2428 = vmatprep.subr.bf16.mxu0 0
        %2429 = vmatpush1.bf16.msra.mxu0 0
        %2430 = vmatprep.subr.bf16.mxu0 0
        %2431 = vmatpush1.bf16.msra.mxu0 0
        %2432 = vmatprep.subr.bf16.mxu0 0
        %2433 = vmatpush1.bf16.msra.mxu0 0
        %2434 = vmatprep.subr.bf16.mxu0 0
        %2435 = vmatpush1.bf16.msra.mxu0 0
        %2436 = vmatprep.subr.bf16.mxu0 0
        %2437 = vmatpush1.bf16.msra.mxu0 0
        %2438 = vmatprep.subr.bf16.mxu0 0
        %2439 = vmatpush1.bf16.msra.mxu0 0
        %2440 = vmatprep.subr.bf16.mxu0 0
        %2441 = vmatpush1.bf16.msra.mxu0 0
        %2442 = vmatprep.subr.bf16.mxu0 0
        %2443 = vmatpush1.bf16.msra.mxu0 0
        %2444 = vmatprep.subr.bf16.mxu0 0
        %2445 = vmatpush1.bf16.msra.mxu0 0
        %2446 = vmatprep.mubr.bf16.mxu0 0
        %2447 = vmatmul.mubr.bf16.gmra.mrb[0].mxu0 %v2412
        %v2448 = vpop.f32.mrb[0].mxu0
        %v2449 = vadd.f32 0.0, %v2448
        %v2450 = vpop.f32.mrb[0].mxu0
        %v2451 = vpop.f32.mrb[0].mxu0
        %v2452 = vadd.f32 0.0, %v2451
        %v2453 = vpop.f32.mrb[0].mxu0
        %2454 = vdwg.mxu0
        %v2456 = vsel %vm2318, %v2408, 0
        %2458 = vmatprep.subr.bf16.mxu0 0
        %2459 = vmatpush1.bf16.msra.mxu0 %v2126
        %2460 = vmatprep.subr.bf16.mxu0 0
        %2461 = vmatpush1.bf16.msra.mxu0 0
        %2462 = vmatprep.subr.bf16.mxu0 0
        %2463 = vmatpush1.bf16.msra.mxu0 0
        %2464 = vmatprep.subr.bf16.mxu0 0
        %2465 = vmatpush1.bf16.msra.mxu0 0
        %2466 = vmatprep.subr.bf16.mxu0 0
        %2467 = vmatpush1.bf16.msra.mxu0 0
        %2468 = vmatprep.subr.bf16.mxu0 0
        %2469 = vmatpush1.bf16.msra.mxu0 0
        %2470 = vmatprep.subr.bf16.mxu0 0
        %2471 = vmatpush1.bf16.msra.mxu0 0
        %2472 = vmatprep.subr.bf16.mxu0 0
        %2473 = vmatpush1.bf16.msra.mxu0 0
        %2474 = vmatprep.subr.bf16.mxu0 0
        %2475 = vmatpush1.bf16.msra.mxu0 0
        %2476 = vmatprep.subr.bf16.mxu0 0
        %2477 = vmatpush1.bf16.msra.mxu0 0
        %2478 = vmatprep.subr.bf16.mxu0 0
        %2479 = vmatpush1.bf16.msra.mxu0 0
        %2480 = vmatprep.subr.bf16.mxu0 0
        %2481 = vmatpush1.bf16.msra.mxu0 0
        %2482 = vmatprep.subr.bf16.mxu0 0
        %2483 = vmatpush1.bf16.msra.mxu0 0
        %2484 = vmatprep.subr.bf16.mxu0 0
        %2485 = vmatpush1.bf16.msra.mxu0 0
        %2486 = vmatprep.subr.bf16.mxu0 0
        %2487 = vmatpush1.bf16.msra.mxu0 0
        %2488 = vmatprep.subr.bf16.mxu0 0
        %2489 = vmatpush1.bf16.msra.mxu0 0
        %2490 = vmatprep.mubr.bf16.mxu0 0
        %2491 = vmatmul.mubr.bf16.gmra.mrb[0].mxu0 %v2456
        %v2492 = vpop.f32.mrb[0].mxu0
        %v2493 = vadd.f32 0.0, %v2492
        %v2494 = vpop.f32.mrb[0].mxu0
        %v2495 = vpop.f32.mrb[0].mxu0
        %v2496 = vadd.f32 0.0, %v2495
        %v2497 = vpop.f32.mrb[0].mxu0
        %2498 = vdwg.mxu0
        %v2500 = vsel %vm2318, %v2409, 0
        %2502 = vmatprep.subr.bf16.mxu0 0
        %2503 = vmatpush1.bf16.msra.mxu0 %v2127
        %2504 = vmatprep.subr.bf16.mxu0 0
        %2505 = vmatpush1.bf16.msra.mxu0 0
        %2506 = vmatprep.subr.bf16.mxu0 0
        %2507 = vmatpush1.bf16.msra.mxu0 0
        %2508 = vmatprep.subr.bf16.mxu0 0
        %2509 = vmatpush1.bf16.msra.mxu0 0
        %2510 = vmatprep.subr.bf16.mxu0 0
        %2511 = vmatpush1.bf16.msra.mxu0 0
        %2512 = vmatprep.subr.bf16.mxu0 0
        %2513 = vmatpush1.bf16.msra.mxu0 0
        %2514 = vmatprep.subr.bf16.mxu0 0
        %2515 = vmatpush1.bf16.msra.mxu0 0
        %2516 = vmatprep.subr.bf16.mxu0 0
        %2517 = vmatpush1.bf16.msra.mxu0 0
        %2518 = vmatprep.subr.bf16.mxu0 0
        %2519 = vmatpush1.bf16.msra.mxu0 0
        %2520 = vmatprep.subr.bf16.mxu0 0
        %2521 = vmatpush1.bf16.msra.mxu0 0
        %2522 = vmatprep.subr.bf16.mxu0 0
        %2523 = vmatpush1.bf16.msra.mxu0 0
        %2524 = vmatprep.subr.bf16.mxu0 0
        %2525 = vmatpush1.bf16.msra.mxu0 0
        %2526 = vmatprep.subr.bf16.mxu0 0
        %2527 = vmatpush1.bf16.msra.mxu0 0
        %2528 = vmatprep.subr.bf16.mxu0 0
        %2529 = vmatpush1.bf16.msra.mxu0 0
        %2530 = vmatprep.subr.bf16.mxu0 0
        %2531 = vmatpush1.bf16.msra.mxu0 0
        %2532 = vmatprep.subr.bf16.mxu0 0
        %2533 = vmatpush1.bf16.msra.mxu0 0
        %2534 = vmatprep.mubr.bf16.mxu0 0
        %2535 = vmatmul.mubr.bf16.gmra.mrb[0].mxu0 %v2500
        %v2536 = vpop.f32.mrb[0].mxu0
        %v2537 = vadd.f32 0.0, %v2536
        %v2538 = vpop.f32.mrb[0].mxu0
        %v2539 = vpop.f32.mrb[0].mxu0
        %v2540 = vadd.f32 0.0, %v2539
        %v2541 = vpop.f32.mrb[0].mxu0
        %2542 = vdwg.mxu0
        %v2544 = vsel %vm2318, %v2410, 0
        %2546 = vmatprep.subr.bf16.mxu0 0
        %2547 = vmatpush1.bf16.msra.mxu0 %v2128
        %2548 = vmatprep.subr.bf16.mxu0 0
        %2549 = vmatpush1.bf16.msra.mxu0 0
        %2550 = vmatprep.subr.bf16.mxu0 0
        %2551 = vmatpush1.bf16.msra.mxu0 0
        %2552 = vmatprep.subr.bf16.mxu0 0
        %2553 = vmatpush1.bf16.msra.mxu0 0
        %2554 = vmatprep.subr.bf16.mxu0 0
        %2555 = vmatpush1.bf16.msra.mxu0 0
        %2556 = vmatprep.subr.bf16.mxu0 0
        %2557 = vmatpush1.bf16.msra.mxu0 0
        %2558 = vmatprep.subr.bf16.mxu0 0
        %2559 = vmatpush1.bf16.msra.mxu0 0
        %2560 = vmatprep.subr.bf16.mxu0 0
        %2561 = vmatpush1.bf16.msra.mxu0 0
        %2562 = vmatprep.subr.bf16.mxu0 0
        %2563 = vmatpush1.bf16.msra.mxu0 0
        %2564 = vmatprep.subr.bf16.mxu0 0
        %2565 = vmatpush1.bf16.msra.mxu0 0
        %2566 = vmatprep.subr.bf16.mxu0 0
        %2567 = vmatpush1.bf16.msra.mxu0 0
        %2568 = vmatprep.subr.bf16.mxu0 0
        %2569 = vmatpush1.bf16.msra.mxu0 0
        %2570 = vmatprep.subr.bf16.mxu0 0
        %2571 = vmatpush1.bf16.msra.mxu0 0
        %2572 = vmatprep.subr.bf16.mxu0 0
        %2573 = vmatpush1.bf16.msra.mxu0 0
        %2574 = vmatprep.subr.bf16.mxu0 0
        %2575 = vmatpush1.bf16.msra.mxu0 0
        %2576 = vmatprep.subr.bf16.mxu0 0
        %2577 = vmatpush1.bf16.msra.mxu0 0
        %2578 = vmatprep.mubr.bf16.mxu0 0
        %2579 = vmatmul.mubr.bf16.gmra.mrb[0].mxu0 %v2544
        %v2580 = vpop.f32.mrb[0].mxu0
        %v2581 = vadd.f32 0.0, %v2580
        %v2582 = vpop.f32.mrb[0].mxu0
        %v2583 = vpop.f32.mrb[0].mxu0
        %v2584 = vadd.f32 0.0, %v2583
        %v2585 = vpop.f32.mrb[0].mxu0
        %2586 = vdwg.mxu0
        %v2587 = vcombine.low %v2449, %v2537
        %v2588 = vcombine.high %v2449, %v2537
        %v2590 = vunpack.c.l.s4 1983009808
        %v2591 = vunpack.c.0.s8 %v2590
        %v2592 = vlaneseq
        %v2593 = vshrl.u32 %v2592, 7
        %v2594 = vsub.s32 %v2591, %v2593
        %v2595 = vrot.slane %v2587, %v2594
        %v2597 = vunpack.c.l.s4 1983009808
        %v2598 = vunpack.c.0.s8 %v2597
        %v2599 = vlaneseq
        %v2600 = vshrl.u32 %v2599, 7
        %v2601 = vsub.s32 %v2598, %v2600
        %v2602 = vrot.slane %v2588, %v2601
        %v2603 = vcombine.low %v2493, %v2581
        %v2604 = vcombine.high %v2493, %v2581
        %v2606 = vunpack.c.l.s4 1983009808
        %v2607 = vunpack.c.0.s8 %v2606
        %v2608 = vlaneseq
        %v2609 = vshrl.u32 %v2608, 7
        %v2610 = vsub.s32 %v2607, %v2609
        %v2611 = vrot.slane %v2603, %v2610
        %v2613 = vunpack.c.l.s4 1983009808
        %v2614 = vunpack.c.0.s8 %v2613
        %v2615 = vlaneseq
        %v2616 = vshrl.u32 %v2615, 7
        %v2617 = vsub.s32 %v2614, %v2616
        %v2618 = vrot.slane %v2604, %v2617
        %v2619 = vcombine.low %v2595, %v2611
        %v2620 = vcombine.high %v2595, %v2611
        %v2622 = vunpack.c.l.s4 1934713408
        %v2623 = vunpack.c.0.s8 %v2622
        %v2624 = vlaneseq
        %v2625 = vshrl.u32 %v2624, 7
        %v2626 = vsub.s32 %v2623, %v2625
        %v2627 = vrot.slane %v2619, %v2626
        %v2629 = vunpack.c.l.s4 1934713408
        %v2630 = vunpack.c.0.s8 %v2629
        %v2631 = vlaneseq
        %v2632 = vshrl.u32 %v2631, 7
        %v2633 = vsub.s32 %v2630, %v2632
        %v2634 = vrot.slane %v2620, %v2633
        %v2635 = vcombine.low %v2602, %v2618
        %v2636 = vcombine.high %v2602, %v2618
        %v2638 = vunpack.c.l.s4 1934713408
        %v2639 = vunpack.c.0.s8 %v2638
        %v2640 = vlaneseq
        %v2641 = vshrl.u32 %v2640, 7
        %v2642 = vsub.s32 %v2639, %v2641
        %v2643 = vrot.slane %v2635, %v2642
        %v2645 = vunpack.c.l.s4 1934713408
        %v2646 = vunpack.c.0.s8 %v2645
        %v2647 = vlaneseq
        %v2648 = vshrl.u32 %v2647, 7
        %v2649 = vsub.s32 %v2646, %v2648
        %v2650 = vrot.slane %v2636, %v2649
        %v2651 = vcombine.high %v2627, 0.0
        %v2652 = vcombine.high %v2634, 0.0
        %v2653 = vcombine.high %v2643, 0.0
        %v2654 = vcombine.high %v2650, 0.0
        %v2655 = vcombine.low %v2452, %v2540
        %v2656 = vcombine.high %v2452, %v2540
        %v2658 = vunpack.c.l.s4 1983009808
        %v2659 = vunpack.c.0.s8 %v2658
        %v2660 = vlaneseq
        %v2661 = vshrl.u32 %v2660, 7
        %v2662 = vsub.s32 %v2659, %v2661
        %v2663 = vrot.slane %v2655, %v2662
        %v2665 = vunpack.c.l.s4 1983009808
        %v2666 = vunpack.c.0.s8 %v2665
        %v2667 = vlaneseq
        %v2668 = vshrl.u32 %v2667, 7
        %v2669 = vsub.s32 %v2666, %v2668
        %v2670 = vrot.slane %v2656, %v2669
        %v2671 = vcombine.low %v2496, %v2584
        %v2672 = vcombine.high %v2496, %v2584
        %v2674 = vunpack.c.l.s4 1983009808
        %v2675 = vunpack.c.0.s8 %v2674
        %v2676 = vlaneseq
        %v2677 = vshrl.u32 %v2676, 7
        %v2678 = vsub.s32 %v2675, %v2677
        %v2679 = vrot.slane %v2671, %v2678
        %v2681 = vunpack.c.l.s4 1983009808
        %v2682 = vunpack.c.0.s8 %v2681
        %v2683 = vlaneseq
        %v2684 = vshrl.u32 %v2683, 7
        %v2685 = vsub.s32 %v2682, %v2684
        %v2686 = vrot.slane %v2672, %v2685
        %v2687 = vcombine.low %v2663, %v2679
        %v2688 = vcombine.high %v2663, %v2679
        %v2690 = vunpack.c.l.s4 1934713408
        %v2691 = vunpack.c.0.s8 %v2690
        %v2692 = vlaneseq
        %v2693 = vshrl.u32 %v2692, 7
        %v2694 = vsub.s32 %v2691, %v2693
        %v2695 = vrot.slane %v2687, %v2694
        %v2697 = vunpack.c.l.s4 1934713408
        %v2698 = vunpack.c.0.s8 %v2697
        %v2699 = vlaneseq
        %v2700 = vshrl.u32 %v2699, 7
        %v2701 = vsub.s32 %v2698, %v2700
        %v2702 = vrot.slane %v2688, %v2701
        %v2703 = vcombine.low %v2670, %v2686
        %v2704 = vcombine.high %v2670, %v2686
        %v2706 = vunpack.c.l.s4 1934713408
        %v2707 = vunpack.c.0.s8 %v2706
        %v2708 = vlaneseq
        %v2709 = vshrl.u32 %v2708, 7
        %v2710 = vsub.s32 %v2707, %v2709
        %v2711 = vrot.slane %v2703, %v2710
        %v2713 = vunpack.c.l.s4 1934713408
        %v2714 = vunpack.c.0.s8 %v2713
        %v2715 = vlaneseq
        %v2716 = vshrl.u32 %v2715, 7
        %v2717 = vsub.s32 %v2714, %v2716
        %v2718 = vrot.slane %v2704, %v2717
        %v2719 = vcombine.high %v2695, 0.0
        %v2720 = vcombine.high %v2702, 0.0
        %v2721 = vcombine.high %v2711, 0.0
        %v2722 = vcombine.high %v2718, 0.0
        %v2723 = vcombine.low %v2627, %v2634
        %v2725 = vunpack.c.l.s4 1983009808
        %v2726 = vunpack.c.0.s8 %v2725
        %v2727 = vlaneseq
        %v2728 = vshrl.u32 %v2727, 7
        %v2729 = vsub.s32 %v2726, %v2728
        %v2730 = vrot.slane %v2723, %v2729
        %v2731 = vcombine.low %v2651, %v2652
        %v2733 = vunpack.c.l.s4 1983009808
        %v2734 = vunpack.c.0.s8 %v2733
        %v2735 = vlaneseq
        %v2736 = vshrl.u32 %v2735, 7
        %v2737 = vsub.s32 %v2734, %v2736
        %v2738 = vrot.slane %v2731, %v2737
        %v2739 = vcombine.low %v2643, %v2650
        %v2741 = vunpack.c.l.s4 1983009808
        %v2742 = vunpack.c.0.s8 %v2741
        %v2743 = vlaneseq
        %v2744 = vshrl.u32 %v2743, 7
        %v2745 = vsub.s32 %v2742, %v2744
        %v2746 = vrot.slane %v2739, %v2745
        %v2747 = vcombine.low %v2653, %v2654
        %v2749 = vunpack.c.l.s4 1983009808
        %v2750 = vunpack.c.0.s8 %v2749
        %v2751 = vlaneseq
        %v2752 = vshrl.u32 %v2751, 7
        %v2753 = vsub.s32 %v2750, %v2752
        %v2754 = vrot.slane %v2747, %v2753
        %v2755 = vcombine.low %v2730, %v2738
        %v2756 = vcombine.high %v2730, %v2738
        %v2758 = vunpack.c.l.s4 1934713408
        %v2759 = vunpack.c.0.s8 %v2758
        %v2760 = vlaneseq
        %v2761 = vshrl.u32 %v2760, 7
        %v2762 = vsub.s32 %v2759, %v2761
        %v2763 = vrot.slane %v2755, %v2762
        %v2765 = vunpack.c.l.s4 1934713408
        %v2766 = vunpack.c.0.s8 %v2765
        %v2767 = vlaneseq
        %v2768 = vshrl.u32 %v2767, 7
        %v2769 = vsub.s32 %v2766, %v2768
        %v2770 = vrot.slane %v2756, %v2769
        %v2771 = vcombine.low %v2746, %v2754
        %v2772 = vcombine.high %v2746, %v2754
        %v2774 = vunpack.c.l.s4 1934713408
        %v2775 = vunpack.c.0.s8 %v2774
        %v2776 = vlaneseq
        %v2777 = vshrl.u32 %v2776, 7
        %v2778 = vsub.s32 %v2775, %v2777
        %v2779 = vrot.slane %v2771, %v2778
        %v2781 = vunpack.c.l.s4 1934713408
        %v2782 = vunpack.c.0.s8 %v2781
        %v2783 = vlaneseq
        %v2784 = vshrl.u32 %v2783, 7
        %v2785 = vsub.s32 %v2782, %v2784
        %v2786 = vrot.slane %v2772, %v2785
        %v2787 = vcombine.low %v2763, %v2779
        %v2788 = vcombine.high %v2763, %v2779
        %v2789 = vcombine.low %v2770, %v2786
        %v2790 = vcombine.high %v2770, %v2786
        %v2791 = vcombine.low %v2695, %v2702
        %v2793 = vunpack.c.l.s4 1983009808
        %v2794 = vunpack.c.0.s8 %v2793
        %v2795 = vlaneseq
        %v2796 = vshrl.u32 %v2795, 7
        %v2797 = vsub.s32 %v2794, %v2796
        %v2798 = vrot.slane %v2791, %v2797
        %v2799 = vcombine.low %v2719, %v2720
        %v2801 = vunpack.c.l.s4 1983009808
        %v2802 = vunpack.c.0.s8 %v2801
        %v2803 = vlaneseq
        %v2804 = vshrl.u32 %v2803, 7
        %v2805 = vsub.s32 %v2802, %v2804
        %v2806 = vrot.slane %v2799, %v2805
        %v2807 = vcombine.low %v2711, %v2718
        %v2809 = vunpack.c.l.s4 1983009808
        %v2810 = vunpack.c.0.s8 %v2809
        %v2811 = vlaneseq
        %v2812 = vshrl.u32 %v2811, 7
        %v2813 = vsub.s32 %v2810, %v2812
        %v2814 = vrot.slane %v2807, %v2813
        %v2815 = vcombine.low %v2721, %v2722
        %v2817 = vunpack.c.l.s4 1983009808
        %v2818 = vunpack.c.0.s8 %v2817
        %v2819 = vlaneseq
        %v2820 = vshrl.u32 %v2819, 7
        %v2821 = vsub.s32 %v2818, %v2820
        %v2822 = vrot.slane %v2815, %v2821
        %v2823 = vcombine.low %v2798, %v2806
        %v2824 = vcombine.high %v2798, %v2806
        %v2826 = vunpack.c.l.s4 1934713408
        %v2827 = vunpack.c.0.s8 %v2826
        %v2828 = vlaneseq
        %v2829 = vshrl.u32 %v2828, 7
        %v2830 = vsub.s32 %v2827, %v2829
        %v2831 = vrot.slane %v2823, %v2830
        %v2833 = vunpack.c.l.s4 1934713408
        %v2834 = vunpack.c.0.s8 %v2833
        %v2835 = vlaneseq
        %v2836 = vshrl.u32 %v2835, 7
        %v2837 = vsub.s32 %v2834, %v2836
        %v2838 = vrot.slane %v2824, %v2837
        %v2839 = vcombine.low %v2814, %v2822
        %v2840 = vcombine.high %v2814, %v2822
        %v2842 = vunpack.c.l.s4 1934713408
        %v2843 = vunpack.c.0.s8 %v2842
        %v2844 = vlaneseq
        %v2845 = vshrl.u32 %v2844, 7
        %v2846 = vsub.s32 %v2843, %v2845
        %v2847 = vrot.slane %v2839, %v2846
        %v2849 = vunpack.c.l.s4 1934713408
        %v2850 = vunpack.c.0.s8 %v2849
        %v2851 = vlaneseq
        %v2852 = vshrl.u32 %v2851, 7
        %v2853 = vsub.s32 %v2850, %v2852
        %v2854 = vrot.slane %v2840, %v2853
        %v2855 = vcombine.low %v2831, %v2847
        %v2856 = vcombine.high %v2831, %v2847
        %v2857 = vcombine.low %v2838, %v2854
        %v2858 = vcombine.high %v2838, %v2854
        %2861 = vrot.lane.b32.xlu0 %v2788, 32
        %v2862 = vpop.permute.xlu0 %2861
        %2863 = vrot.lane.b32.xlu0 %v2856, 32
        %v2864 = vpop.permute.xlu0 %2863
        %2869 = vrot.lane.b32.xlu0 %v2789, 64
        %v2870 = vpop.permute.xlu0 %2869
        %2871 = vrot.lane.b32.xlu0 %v2857, 64
        %v2872 = vpop.permute.xlu0 %2871
        %2877 = vrot.lane.b32.xlu0 %v2790, 96
        %v2878 = vpop.permute.xlu0 %2877
        %2879 = vrot.lane.b32.xlu0 %v2858, 96
        %v2880 = vpop.permute.xlu0 %2879
        %v2883 = vsel %vm2129, %v2787, %v2862
        %v2884 = vsel %vm2129, %v2855, %v2864
        %vm2885 = vcmask 523264
        %v2886 = vsel %vm2885, %v2883, %v2870
        %v2887 = vsel %vm2885, %v2884, %v2872
        %vm2888 = vcmask 785408
        %v2889 = vsel %vm2888, %v2886, %v2878
        %v2890 = vsel %vm2888, %v2887, %v2880
        %v2891 = vpack.c.bf16 %v2890, %v2889
        %v2892 = vld [vmem:[%s885] sm:$0xf]
        %v2893 = vld [vmem:[%s885 + $0x4] sm:$0xf]
        %v2894 = vld [vmem:[%s885 + $0x8] sm:$0xf]
        %v2895 = vld [vmem:[%s885 + $0xc] sm:$0xf]
        %v2896 = vld [vmem:[%s885 + $0x10] sm:$0xf]
        %v2897 = vld [vmem:[%s885 + $0x14] sm:$0xf]
        %v2898 = vld [vmem:[%s885 + $0x18] sm:$0xf]
        %v2899 = vld [vmem:[%s885 + $0x1c] sm:$0xf]
        %v2900 = vld [vmem:[%s885 + $0x20] sm:$0xf]
        %v2901 = vld [vmem:[%s885 + $0x24] sm:$0xf]
        %v2902 = vld [vmem:[%s885 + $0x28] sm:$0xf]
        %v2903 = vld [vmem:[%s885 + $0x2c] sm:$0xf]
        %v2904 = vld [vmem:[%s885 + $0x30] sm:$0xf]
        %v2905 = vld [vmem:[%s885 + $0x34] sm:$0xf]
        %v2906 = vld [vmem:[%s885 + $0x38] sm:$0xf]
        %v2907 = vld [vmem:[%s885 + $0x3c] sm:$0xf]
        %v2908 = vld [vmem:[%s888] sm:$0x1]
        %v2910 = vlaneseq
        %v2911 = vshrl.u32 %v2910, 7
        %v2912 = vsub.s32 0, %v2911
        %v2913 = vrot.slane %v2908, %v2912
        %v2931 = vunpack.c.l.b16 %v2892
        %v2932 = vunpack.c.l.b16 %v2893
        %v2933 = vunpack.c.l.b16 %v2894
        %v2934 = vunpack.c.l.b16 %v2895
        %v2935 = vunpack.c.l.b16 %v2896
        %v2936 = vunpack.c.l.b16 %v2897
        %v2937 = vunpack.c.l.b16 %v2898
        %v2938 = vunpack.c.l.b16 %v2899
        %v2939 = vunpack.c.l.b16 %v2900
        %v2940 = vunpack.c.l.b16 %v2901
        %v2941 = vunpack.c.l.b16 %v2902
        %v2942 = vunpack.c.l.b16 %v2903
        %v2943 = vunpack.c.l.b16 %v2904
        %v2944 = vunpack.c.l.b16 %v2905
        %v2945 = vunpack.c.l.b16 %v2906
        %v2946 = vunpack.c.l.b16 %v2907
        %v2947 = vpack.c.b16 %v2932, %v2931
        %v2948 = vpack.c.b16 %v2934, %v2933
        %v2949 = vpack.c.b16 %v2936, %v2935
        %v2950 = vpack.c.b16 %v2938, %v2937
        %v2951 = vpack.c.b16 %v2940, %v2939
        %v2952 = vpack.c.b16 %v2942, %v2941
        %v2953 = vpack.c.b16 %v2944, %v2943
        %v2954 = vpack.c.b16 %v2946, %v2945
        %2963 = vmatprep.subr.bf16.mxu0 0
        %2964 = vmatpush1.bf16.msra.mxu0 %v2947
        %2965 = vmatprep.subr.bf16.mxu0 0
        %2966 = vmatpush1.bf16.msra.mxu0 %v2948
        %2967 = vmatprep.subr.bf16.mxu0 0
        %2968 = vmatpush1.bf16.msra.mxu0 %v2949
        %2969 = vmatprep.subr.bf16.mxu0 0
        %2970 = vmatpush1.bf16.msra.mxu0 %v2950
        %2971 = vmatprep.subr.bf16.mxu0 0
        %2972 = vmatpush1.bf16.msra.mxu0 %v2951
        %2973 = vmatprep.subr.bf16.mxu0 0
        %2974 = vmatpush1.bf16.msra.mxu0 %v2952
        %2975 = vmatprep.subr.bf16.mxu0 0
        %2976 = vmatpush1.bf16.msra.mxu0 %v2953
        %2977 = vmatprep.subr.bf16.mxu0 0
        %2978 = vmatpush1.bf16.msra.mxu0 %v2954
        %2979 = vmatprep.subr.bf16.mxu0 0
        %2980 = vmatpush1.bf16.msra.mxu0 0
        %2981 = vmatprep.subr.bf16.mxu0 0
        %2982 = vmatpush1.bf16.msra.mxu0 0
        %2983 = vmatprep.subr.bf16.mxu0 0
        %2984 = vmatpush1.bf16.msra.mxu0 0
        %2985 = vmatprep.subr.bf16.mxu0 0
        %2986 = vmatpush1.bf16.msra.mxu0 0
        %2987 = vmatprep.subr.bf16.mxu0 0
        %2988 = vmatpush1.bf16.msra.mxu0 0
        %2989 = vmatprep.subr.bf16.mxu0 0
        %2990 = vmatpush1.bf16.msra.mxu0 0
        %2991 = vmatprep.subr.bf16.mxu0 0
        %2992 = vmatpush1.bf16.msra.mxu0 0
        %2993 = vmatprep.subr.bf16.mxu0 0
        %2994 = vmatpush1.bf16.msra.mxu0 0
        %2995 = vmatprep.mubr.bf16.mxu0 0
        %2996 = vmatmul.mubr.bf16.gmra.mrb[0].mxu0 %v2891
        %v2997 = vpop.f32.mrb[0].mxu0
        %v2998 = vadd.f32 %v2913, %v2997
        %v2999 = vpop.f32.mrb[0].mxu0
        %v3000 = vpop.f32.mrb[0].mxu0
        %v3001 = vadd.f32 %v2913, %v3000
        %v3002 = vpop.f32.mrb[0].mxu0
        %3003 = vdwg.mxu0
        %v3004 = vadd.f32 %v934, %v2998
        %v3005 = vadd.f32 %v935, %v3001
        %v3006 = vld [vmem:[%s734] sm:$0x1]
        %v3007 = vld [vmem:[%s742] sm:$0x1]
        %3008 = vadd.xlane.f32.xlu0 %v3004
        %v3009 = vpop.xlane.xlu0 %3008
        %3010 = vadd.xlane.f32.xlu0 %v3005
        %v3011 = vpop.xlane.xlu0 %3010
        %v3012 = vmul.f32 %v3009, %v944
        %v3013 = vmul.f32 %v3011, %v944
        %v3014 = vsub.f32 %v3004, %v3012
        %v3015 = vsub.f32 %v3005, %v3013
        %v3016 = vmul.f32 %v3014, %v3014
        %v3017 = vmul.f32 %v3015, %v3015
        %3018 = vadd.xlane.f32.xlu0 %v3016
        %v3019 = vpop.xlane.xlu0 %3018
        %3020 = vadd.xlane.f32.xlu0 %v3017
        %v3021 = vpop.xlane.xlu0 %3020
        %v3022 = vmul.f32 %v3019, %v944
        %v3023 = vmul.f32 %v3021, %v944
        %v3024 = vadd.f32 %v3022, 1e-05
        %v3025 = vadd.f32 %v3023, 1e-05
        %v3026 = vrsqrt.pop %v3024
        %v3027 = vrsqrt.pop %v3025
        %v3028 = vmul.f32 %v3014, %v3026
        %v3029 = vmul.f32 %v3015, %v3027
        %v3031 = vlaneseq
        %v3032 = vshrl.u32 %v3031, 7
        %v3033 = vsub.s32 0, %v3032
        %v3034 = vrot.slane %v3006, %v3033
        %v3036 = vmul.f32 %v3028, %v3034
        %v3037 = vmul.f32 %v3029, %v3034
        %v3039 = vlaneseq
        %v3040 = vshrl.u32 %v3039, 7
        %v3041 = vsub.s32 0, %v3040
        %v3042 = vrot.slane %v3007, %v3041
        %v3044 = vadd.f32 %v3036, %v3042
        %v3045 = vadd.f32 %v3037, %v3042
        %v3046 = vpack.c.bf16 %v3045, %v3044
        %v3047 = vld [vmem:[%s751] sm:$0xff]
        %v3048 = vld [vmem:[%s751 + $0x8] sm:$0xff]
        %v3049 = vld [vmem:[%s751 + $0x10] sm:$0xff]
        %v3050 = vld [vmem:[%s751 + $0x18] sm:$0xff]
        %v3051 = vld [vmem:[%s751 + $0x20] sm:$0xff]
        %v3052 = vld [vmem:[%s751 + $0x28] sm:$0xff]
        %v3053 = vld [vmem:[%s751 + $0x30] sm:$0xff]
        %v3054 = vld [vmem:[%s751 + $0x38] sm:$0xff]
        %v3055 = vld [vmem:[%s751 + $0x40] sm:$0xff]
        %v3056 = vld [vmem:[%s751 + $0x48] sm:$0xff]
        %v3057 = vld [vmem:[%s751 + $0x50] sm:$0xff]
        %v3058 = vld [vmem:[%s751 + $0x58] sm:$0xff]
        %v3059 = vld [vmem:[%s751 + $0x60] sm:$0xff]
        %v3060 = vld [vmem:[%s751 + $0x68] sm:$0xff]
        %v3061 = vld [vmem:[%s751 + $0x70] sm:$0xff]
        %v3062 = vld [vmem:[%s751 + $0x78] sm:$0xff]
        %v3063 = vld [vmem:[%s751 + $0x80] sm:$0xff]
        %v3064 = vld [vmem:[%s751 + $0x88] sm:$0xff]
        %v3065 = vld [vmem:[%s751 + $0x90] sm:$0xff]
        %v3066 = vld [vmem:[%s751 + $0x98] sm:$0xff]
        %v3067 = vld [vmem:[%s751 + $0xa0] sm:$0xff]
        %v3068 = vld [vmem:[%s751 + $0xa8] sm:$0xff]
        %v3069 = vld [vmem:[%s751 + $0xb0] sm:$0xff]
        %v3070 = vld [vmem:[%s751 + $0xb8] sm:$0xff]
        %v3071 = vld [vmem:[%s751 + $0xc0] sm:$0xff]
        %v3072 = vld [vmem:[%s751 + $0xc8] sm:$0xff]
        %v3073 = vld [vmem:[%s751 + $0xd0] sm:$0xff]
        %v3074 = vld [vmem:[%s751 + $0xd8] sm:$0xff]
        %v3075 = vld [vmem:[%s751 + $0xe0] sm:$0xff]
        %v3076 = vld [vmem:[%s751 + $0xe8] sm:$0xff]
        %v3077 = vld [vmem:[%s751 + $0xf0] sm:$0xff]
        %v3078 = vld [vmem:[%s751 + $0xf8] sm:$0xff]
        %v3079 = vld [vmem:[%s751 + $0x100] sm:$0xff]
        %v3080 = vld [vmem:[%s751 + $0x108] sm:$0xff]
        %v3081 = vld [vmem:[%s751 + $0x110] sm:$0xff]
        %v3082 = vld [vmem:[%s751 + $0x118] sm:$0xff]
        %v3083 = vld [vmem:[%s751 + $0x120] sm:$0xff]
        %v3084 = vld [vmem:[%s751 + $0x128] sm:$0xff]
        %v3085 = vld [vmem:[%s751 + $0x130] sm:$0xff]
        %v3086 = vld [vmem:[%s751 + $0x138] sm:$0xff]
        %v3087 = vld [vmem:[%s751 + $0x140] sm:$0xff]
        %v3088 = vld [vmem:[%s751 + $0x148] sm:$0xff]
        %v3089 = vld [vmem:[%s751 + $0x150] sm:$0xff]
        %v3090 = vld [vmem:[%s751 + $0x158] sm:$0xff]
        %v3091 = vld [vmem:[%s751 + $0x160] sm:$0xff]
        %v3092 = vld [vmem:[%s751 + $0x168] sm:$0xff]
        %v3093 = vld [vmem:[%s751 + $0x170] sm:$0xff]
        %v3094 = vld [vmem:[%s751 + $0x178] sm:$0xff]
        %v3095 = vld [vmem:[%s751 + $0x180] sm:$0xff]
        %v3096 = vld [vmem:[%s751 + $0x188] sm:$0xff]
        %v3097 = vld [vmem:[%s751 + $0x190] sm:$0xff]
        %v3098 = vld [vmem:[%s751 + $0x198] sm:$0xff]
        %v3099 = vld [vmem:[%s751 + $0x1a0] sm:$0xff]
        %v3100 = vld [vmem:[%s751 + $0x1a8] sm:$0xff]
        %v3101 = vld [vmem:[%s751 + $0x1b0] sm:$0xff]
        %v3102 = vld [vmem:[%s751 + $0x1b8] sm:$0xff]
        %v3103 = vld [vmem:[%s751 + $0x1c0] sm:$0xff]
        %v3104 = vld [vmem:[%s751 + $0x1c8] sm:$0xff]
        %v3105 = vld [vmem:[%s751 + $0x1d0] sm:$0xff]
        %v3106 = vld [vmem:[%s751 + $0x1d8] sm:$0xff]
        %v3107 = vld [vmem:[%s751 + $0x1e0] sm:$0xff]
        %v3108 = vld [vmem:[%s751 + $0x1e8] sm:$0xff]
        %v3109 = vld [vmem:[%s751 + $0x1f0] sm:$0xff]
        %v3110 = vld [vmem:[%s751 + $0x1f8] sm:$0xff]
        %v3111 = vld [vmem:[%s892] sm:$0xff]
        %v3113 = vlaneseq
        %v3114 = vshrl.u32 %v3113, 7
        %v3115 = vsub.s32 0, %v3114
        %v3116 = vrot.slane %v3111, %v3115
        %v3117 = vlaneseq
        %v3118 = vshrl.u32 %v3117, 7
        %v3119 = vsub.s32 1, %v3118
        %v3120 = vrot.slane %v3111, %v3119
        %v3121 = vlaneseq
        %v3122 = vshrl.u32 %v3121, 7
        %v3123 = vsub.s32 2, %v3122
        %v3124 = vrot.slane %v3111, %v3123
        %v3125 = vlaneseq
        %v3126 = vshrl.u32 %v3125, 7
        %v3127 = vsub.s32 3, %v3126
        %v3128 = vrot.slane %v3111, %v3127
        %v3129 = vlaneseq
        %v3130 = vshrl.u32 %v3129, 7
        %v3131 = vsub.s32 4, %v3130
        %v3132 = vrot.slane %v3111, %v3131
        %v3133 = vlaneseq
        %v3134 = vshrl.u32 %v3133, 7
        %v3135 = vsub.s32 5, %v3134
        %v3136 = vrot.slane %v3111, %v3135
        %v3137 = vlaneseq
        %v3138 = vshrl.u32 %v3137, 7
        %v3139 = vsub.s32 6, %v3138
        %v3140 = vrot.slane %v3111, %v3139
        %v3141 = vlaneseq
        %v3142 = vshrl.u32 %v3141, 7
        %v3143 = vsub.s32 7, %v3142
        %v3144 = vrot.slane %v3111, %v3143
        %v3217 = vunpack.c.l.b16 %v3047
        %v3218 = vunpack.c.h.b16 %v3047
        %v3219 = vunpack.c.l.b16 %v3048
        %v3220 = vunpack.c.h.b16 %v3048
        %v3221 = vunpack.c.l.b16 %v3049
        %v3222 = vunpack.c.h.b16 %v3049
        %v3223 = vunpack.c.l.b16 %v3050
        %v3224 = vunpack.c.h.b16 %v3050
        %v3225 = vunpack.c.l.b16 %v3051
        %v3226 = vunpack.c.h.b16 %v3051
        %v3227 = vunpack.c.l.b16 %v3052
        %v3228 = vunpack.c.h.b16 %v3052
        %v3229 = vunpack.c.l.b16 %v3053
        %v3230 = vunpack.c.h.b16 %v3053
        %v3231 = vunpack.c.l.b16 %v3054
        %v3232 = vunpack.c.h.b16 %v3054
        %v3233 = vunpack.c.l.b16 %v3055
        %v3234 = vunpack.c.h.b16 %v3055
        %v3235 = vunpack.c.l.b16 %v3056
        %v3236 = vunpack.c.h.b16 %v3056
        %v3237 = vunpack.c.l.b16 %v3057
        %v3238 = vunpack.c.h.b16 %v3057
        %v3239 = vunpack.c.l.b16 %v3058
        %v3240 = vunpack.c.h.b16 %v3058
        %v3241 = vunpack.c.l.b16 %v3059
        %v3242 = vunpack.c.h.b16 %v3059
        %v3243 = vunpack.c.l.b16 %v3060
        %v3244 = vunpack.c.h.b16 %v3060
        %v3245 = vunpack.c.l.b16 %v3061
        %v3246 = vunpack.c.h.b16 %v3061
        %v3247 = vunpack.c.l.b16 %v3062
        %v3248 = vunpack.c.h.b16 %v3062
        %v3249 = vunpack.c.l.b16 %v3063
        %v3250 = vunpack.c.h.b16 %v3063
        %v3251 = vunpack.c.l.b16 %v3064
        %v3252 = vunpack.c.h.b16 %v3064
        %v3253 = vunpack.c.l.b16 %v3065
        %v3254 = vunpack.c.h.b16 %v3065
        %v3255 = vunpack.c.l.b16 %v3066
        %v3256 = vunpack.c.h.b16 %v3066
        %v3257 = vunpack.c.l.b16 %v3067
        %v3258 = vunpack.c.h.b16 %v3067
        %v3259 = vunpack.c.l.b16 %v3068
        %v3260 = vunpack.c.h.b16 %v3068
        %v3261 = vunpack.c.l.b16 %v3069
        %v3262 = vunpack.c.h.b16 %v3069
        %v3263 = vunpack.c.l.b16 %v3070
        %v3264 = vunpack.c.h.b16 %v3070
        %v3265 = vunpack.c.l.b16 %v3071
        %v3266 = vunpack.c.h.b16 %v3071
        %v3267 = vunpack.c.l.b16 %v3072
        %v3268 = vunpack.c.h.b16 %v3072
        %v3269 = vunpack.c.l.b16 %v3073
        %v3270 = vunpack.c.h.b16 %v3073
        %v3271 = vunpack.c.l.b16 %v3074
        %v3272 = vunpack.c.h.b16 %v3074
        %v3273 = vunpack.c.l.b16 %v3075
        %v3274 = vunpack.c.h.b16 %v3075
        %v3275 = vunpack.c.l.b16 %v3076
        %v3276 = vunpack.c.h.b16 %v3076
        %v3277 = vunpack.c.l.b16 %v3077
        %v3278 = vunpack.c.h.b16 %v3077
        %v3279 = vunpack.c.l.b16 %v3078
        %v3280 = vunpack.c.h.b16 %v3078
        %v3281 = vunpack.c.l.b16 %v3079
        %v3282 = vunpack.c.h.b16 %v3079
        %v3283 = vunpack.c.l.b16 %v3080
        %v3284 = vunpack.c.h.b16 %v3080
        %v3285 = vunpack.c.l.b16 %v3081
        %v3286 = vunpack.c.h.b16 %v3081
        %v3287 = vunpack.c.l.b16 %v3082
        %v3288 = vunpack.c.h.b16 %v3082
        %v3289 = vunpack.c.l.b16 %v3083
        %v3290 = vunpack.c.h.b16 %v3083
        %v3291 = vunpack.c.l.b16 %v3084
        %v3292 = vunpack.c.h.b16 %v3084
        %v3293 = vunpack.c.l.b16 %v3085
        %v3294 = vunpack.c.h.b16 %v3085
        %v3295 = vunpack.c.l.b16 %v3086
        %v3296 = vunpack.c.h.b16 %v3086
        %v3297 = vunpack.c.l.b16 %v3087
        %v3298 = vunpack.c.h.b16 %v3087
        %v3299 = vunpack.c.l.b16 %v3088
        %v3300 = vunpack.c.h.b16 %v3088
        %v3301 = vunpack.c.l.b16 %v3089
        %v3302 = vunpack.c.h.b16 %v3089
        %v3303 = vunpack.c.l.b16 %v3090
        %v3304 = vunpack.c.h.b16 %v3090
        %v3305 = vunpack.c.l.b16 %v3091
        %v3306 = vunpack.c.h.b16 %v3091
        %v3307 = vunpack.c.l.b16 %v3092
        %v3308 = vunpack.c.h.b16 %v3092
        %v3309 = vunpack.c.l.b16 %v3093
        %v3310 = vunpack.c.h.b16 %v3093
        %v3311 = vunpack.c.l.b16 %v3094
        %v3312 = vunpack.c.h.b16 %v3094
        %v3313 = vunpack.c.l.b16 %v3095
        %v3314 = vunpack.c.h.b16 %v3095
        %v3315 = vunpack.c.l.b16 %v3096
        %v3316 = vunpack.c.h.b16 %v3096
        %v3317 = vunpack.c.l.b16 %v3097
        %v3318 = vunpack.c.h.b16 %v3097
        %v3319 = vunpack.c.l.b16 %v3098
        %v3320 = vunpack.c.h.b16 %v3098
        %v3321 = vunpack.c.l.b16 %v3099
        %v3322 = vunpack.c.h.b16 %v3099
        %v3323 = vunpack.c.l.b16 %v3100
        %v3324 = vunpack.c.h.b16 %v3100
        %v3325 = vunpack.c.l.b16 %v3101
        %v3326 = vunpack.c.h.b16 %v3101
        %v3327 = vunpack.c.l.b16 %v3102
        %v3328 = vunpack.c.h.b16 %v3102
        %v3329 = vunpack.c.l.b16 %v3103
        %v3330 = vunpack.c.h.b16 %v3103
        %v3331 = vunpack.c.l.b16 %v3104
        %v3332 = vunpack.c.h.b16 %v3104
        %v3333 = vunpack.c.l.b16 %v3105
        %v3334 = vunpack.c.h.b16 %v3105
        %v3335 = vunpack.c.l.b16 %v3106
        %v3336 = vunpack.c.h.b16 %v3106
        %v3337 = vunpack.c.l.b16 %v3107
        %v3338 = vunpack.c.h.b16 %v3107
        %v3339 = vunpack.c.l.b16 %v3108
        %v3340 = vunpack.c.h.b16 %v3108
        %v3341 = vunpack.c.l.b16 %v3109
        %v3342 = vunpack.c.h.b16 %v3109
        %v3343 = vunpack.c.l.b16 %v3110
        %v3344 = vunpack.c.h.b16 %v3110
        %v3345 = vpack.c.b16 %v3225, %v3217
        %v3346 = vpack.c.b16 %v3226, %v3218
        %v3347 = vpack.c.b16 %v3227, %v3219
        %v3348 = vpack.c.b16 %v3228, %v3220
        %v3349 = vpack.c.b16 %v3229, %v3221
        %v3350 = vpack.c.b16 %v3230, %v3222
        %v3351 = vpack.c.b16 %v3231, %v3223
        %v3352 = vpack.c.b16 %v3232, %v3224
        %v3353 = vpack.c.b16 %v3241, %v3233
        %v3354 = vpack.c.b16 %v3242, %v3234
        %v3355 = vpack.c.b16 %v3243, %v3235
        %v3356 = vpack.c.b16 %v3244, %v3236
        %v3357 = vpack.c.b16 %v3245, %v3237
        %v3358 = vpack.c.b16 %v3246, %v3238
        %v3359 = vpack.c.b16 %v3247, %v3239
        %v3360 = vpack.c.b16 %v3248, %v3240
        %v3361 = vpack.c.b16 %v3257, %v3249
        %v3362 = vpack.c.b16 %v3258, %v3250
        %v3363 = vpack.c.b16 %v3259, %v3251
        %v3364 = vpack.c.b16 %v3260, %v3252
        %v3365 = vpack.c.b16 %v3261, %v3253
        %v3366 = vpack.c.b16 %v3262, %v3254
        %v3367 = vpack.c.b16 %v3263, %v3255
        %v3368 = vpack.c.b16 %v3264, %v3256
        %v3369 = vpack.c.b16 %v3273, %v3265
        %v3370 = vpack.c.b16 %v3274, %v3266
        %v3371 = vpack.c.b16 %v3275, %v3267
        %v3372 = vpack.c.b16 %v3276, %v3268
        %v3373 = vpack.c.b16 %v3277, %v3269
        %v3374 = vpack.c.b16 %v3278, %v3270
        %v3375 = vpack.c.b16 %v3279, %v3271
        %v3376 = vpack.c.b16 %v3280, %v3272
        %v3377 = vpack.c.b16 %v3289, %v3281
        %v3378 = vpack.c.b16 %v3290, %v3282
        %v3379 = vpack.c.b16 %v3291, %v3283
        %v3380 = vpack.c.b16 %v3292, %v3284
        %v3381 = vpack.c.b16 %v3293, %v3285
        %v3382 = vpack.c.b16 %v3294, %v3286
        %v3383 = vpack.c.b16 %v3295, %v3287
        %v3384 = vpack.c.b16 %v3296, %v3288
        %v3385 = vpack.c.b16 %v3305, %v3297
        %v3386 = vpack.c.b16 %v3306, %v3298
        %v3387 = vpack.c.b16 %v3307, %v3299
        %v3388 = vpack.c.b16 %v3308, %v3300
        %v3389 = vpack.c.b16 %v3309, %v3301
        %v3390 = vpack.c.b16 %v3310, %v3302
        %v3391 = vpack.c.b16 %v3311, %v3303
        %v3392 = vpack.c.b16 %v3312, %v3304
        %v3393 = vpack.c.b16 %v3321, %v3313
        %v3394 = vpack.c.b16 %v3322, %v3314
        %v3395 = vpack.c.b16 %v3323, %v3315
        %v3396 = vpack.c.b16 %v3324, %v3316
        %v3397 = vpack.c.b16 %v3325, %v3317
        %v3398 = vpack.c.b16 %v3326, %v3318
        %v3399 = vpack.c.b16 %v3327, %v3319
        %v3400 = vpack.c.b16 %v3328, %v3320
        %v3401 = vpack.c.b16 %v3337, %v3329
        %v3402 = vpack.c.b16 %v3338, %v3330
        %v3403 = vpack.c.b16 %v3339, %v3331
        %v3404 = vpack.c.b16 %v3340, %v3332
        %v3405 = vpack.c.b16 %v3341, %v3333
        %v3406 = vpack.c.b16 %v3342, %v3334
        %v3407 = vpack.c.b16 %v3343, %v3335
        %v3408 = vpack.c.b16 %v3344, %v3336
        %3473 = vmatprep.subr.bf16.mxu0 %v3346
        %3474 = vmatpush1.bf16.msra.mxu0 %v3345
        %3475 = vmatprep.subr.bf16.mxu0 %v3354
        %3476 = vmatpush1.bf16.msra.mxu0 %v3353
        %3477 = vmatprep.subr.bf16.mxu0 %v3362
        %3478 = vmatpush1.bf16.msra.mxu0 %v3361
        %3479 = vmatprep.subr.bf16.mxu0 %v3370
        %3480 = vmatpush1.bf16.msra.mxu0 %v3369
        %3481 = vmatprep.subr.bf16.mxu0 %v3378
        %3482 = vmatpush1.bf16.msra.mxu0 %v3377
        %3483 = vmatprep.subr.bf16.mxu0 %v3386
        %3484 = vmatpush1.bf16.msra.mxu0 %v3385
        %3485 = vmatprep.subr.bf16.mxu0 %v3394
        %3486 = vmatpush1.bf16.msra.mxu0 %v3393
        %3487 = vmatprep.subr.bf16.mxu0 %v3402
        %3488 = vmatpush1.bf16.msra.mxu0 %v3401
        %3489 = vmatprep.subr.bf16.mxu0 0
        %3490 = vmatpush1.bf16.msra.mxu0 0
        %3491 = vmatprep.subr.bf16.mxu0 0
        %3492 = vmatpush1.bf16.msra.mxu0 0
        %3493 = vmatprep.subr.bf16.mxu0 0
        %3494 = vmatpush1.bf16.msra.mxu0 0
        %3495 = vmatprep.subr.bf16.mxu0 0
        %3496 = vmatpush1.bf16.msra.mxu0 0
        %3497 = vmatprep.subr.bf16.mxu0 0
        %3498 = vmatpush1.bf16.msra.mxu0 0
        %3499 = vmatprep.subr.bf16.mxu0 0
        %3500 = vmatpush1.bf16.msra.mxu0 0
        %3501 = vmatprep.subr.bf16.mxu0 0
        %3502 = vmatpush1.bf16.msra.mxu0 0
        %3503 = vmatprep.subr.bf16.mxu0 0
        %3504 = vmatpush1.bf16.msra.mxu0 0
        %3505 = vmatprep.mubr.bf16.mxu0 0
        %3506 = vmatmul.mubr.bf16.gmra.mrb[0].mxu0 %v3046
        %v3507 = vpop.f32.mrb[0].mxu0
        %v3508 = vadd.f32 %v3116, %v3507
        %v3509 = vpop.f32.mrb[0].mxu0
        %v3510 = vadd.f32 %v3120, %v3509
        %v3511 = vpop.f32.mrb[0].mxu0
        %v3512 = vadd.f32 %v3116, %v3511
        %v3513 = vpop.f32.mrb[0].mxu0
        %v3514 = vadd.f32 %v3120, %v3513
        %3515 = vdwg.mxu0
        %3516 = vmatprep.subr.bf16.mxu0 %v3348
        %3517 = vmatpush1.bf16.msra.mxu0 %v3347
        %3518 = vmatprep.subr.bf16.mxu0 %v3356
        %3519 = vmatpush1.bf16.msra.mxu0 %v3355
        %3520 = vmatprep.subr.bf16.mxu0 %v3364
        %3521 = vmatpush1.bf16.msra.mxu0 %v3363
        %3522 = vmatprep.subr.bf16.mxu0 %v3372
        %3523 = vmatpush1.bf16.msra.mxu0 %v3371
        %3524 = vmatprep.subr.bf16.mxu0 %v3380
        %3525 = vmatpush1.bf16.msra.mxu0 %v3379
        %3526 = vmatprep.subr.bf16.mxu0 %v3388
        %3527 = vmatpush1.bf16.msra.mxu0 %v3387
        %3528 = vmatprep.subr.bf16.mxu0 %v3396
        %3529 = vmatpush1.bf16.msra.mxu0 %v3395
        %3530 = vmatprep.subr.bf16.mxu0 %v3404
        %3531 = vmatpush1.bf16.msra.mxu0 %v3403
        %3532 = vmatprep.subr.bf16.mxu0 0
        %3533 = vmatpush1.bf16.msra.mxu0 0
        %3534 = vmatprep.subr.bf16.mxu0 0
        %3535 = vmatpush1.bf16.msra.mxu0 0
        %3536 = vmatprep.subr.bf16.mxu0 0
        %3537 = vmatpush1.bf16.msra.mxu0 0
        %3538 = vmatprep.subr.bf16.mxu0 0
        %3539 = vmatpush1.bf16.msra.mxu0 0
        %3540 = vmatprep.subr.bf16.mxu0 0
        %3541 = vmatpush1.bf16.msra.mxu0 0
        %3542 = vmatprep.subr.bf16.mxu0 0
        %3543 = vmatpush1.bf16.msra.mxu0 0
        %3544 = vmatprep.subr.bf16.mxu0 0
        %3545 = vmatpush1.bf16.msra.mxu0 0
        %3546 = vmatprep.subr.bf16.mxu0 0
        %3547 = vmatpush1.bf16.msra.mxu0 0
        %3548 = vmatprep.mubr.bf16.mxu0 0
        %3549 = vmatmul.mubr.bf16.gmra.mrb[0].mxu0 %v3046
        %v3550 = vpop.f32.mrb[0].mxu0
        %v3551 = vadd.f32 %v3124, %v3550
        %v3552 = vpop.f32.mrb[0].mxu0
        %v3553 = vadd.f32 %v3128, %v3552
        %v3554 = vpop.f32.mrb[0].mxu0
        %v3555 = vadd.f32 %v3124, %v3554
        %v3556 = vpop.f32.mrb[0].mxu0
        %v3557 = vadd.f32 %v3128, %v3556
        %3558 = vdwg.mxu0
        %3559 = vmatprep.subr.bf16.mxu0 %v3350
        %3560 = vmatpush1.bf16.msra.mxu0 %v3349
        %3561 = vmatprep.subr.bf16.mxu0 %v3358
        %3562 = vmatpush1.bf16.msra.mxu0 %v3357
        %3563 = vmatprep.subr.bf16.mxu0 %v3366
        %3564 = vmatpush1.bf16.msra.mxu0 %v3365
        %3565 = vmatprep.subr.bf16.mxu0 %v3374
        %3566 = vmatpush1.bf16.msra.mxu0 %v3373
        %3567 = vmatprep.subr.bf16.mxu0 %v3382
        %3568 = vmatpush1.bf16.msra.mxu0 %v3381
        %3569 = vmatprep.subr.bf16.mxu0 %v3390
        %3570 = vmatpush1.bf16.msra.mxu0 %v3389
        %3571 = vmatprep.subr.bf16.mxu0 %v3398
        %3572 = vmatpush1.bf16.msra.mxu0 %v3397
        %3573 = vmatprep.subr.bf16.mxu0 %v3406
        %3574 = vmatpush1.bf16.msra.mxu0 %v3405
        %3575 = vmatprep.subr.bf16.mxu0 0
        %3576 = vmatpush1.bf16.msra.mxu0 0
        %3577 = vmatprep.subr.bf16.mxu0 0
        %3578 = vmatpush1.bf16.msra.mxu0 0
        %3579 = vmatprep.subr.bf16.mxu0 0
        %3580 = vmatpush1.bf16.msra.mxu0 0
        %3581 = vmatprep.subr.bf16.mxu0 0
        %3582 = vmatpush1.bf16.msra.mxu0 0
        %3583 = vmatprep.subr.bf16.mxu0 0
        %3584 = vmatpush1.bf16.msra.mxu0 0
        %3585 = vmatprep.subr.bf16.mxu0 0
        %3586 = vmatpush1.bf16.msra.mxu0 0
        %3587 = vmatprep.subr.bf16.mxu0 0
        %3588 = vmatpush1.bf16.msra.mxu0 0
        %3589 = vmatprep.subr.bf16.mxu0 0
        %3590 = vmatpush1.bf16.msra.mxu0 0
        %3591 = vmatprep.mubr.bf16.mxu0 0
        %3592 = vmatmul.mubr.bf16.gmra.mrb[0].mxu0 %v3046
        %v3593 = vpop.f32.mrb[0].mxu0
        %v3594 = vadd.f32 %v3132, %v3593
        %v3595 = vpop.f32.mrb[0].mxu0
        %v3596 = vadd.f32 %v3136, %v3595
        %v3597 = vpop.f32.mrb[0].mxu0
        %v3598 = vadd.f32 %v3132, %v3597
        %v3599 = vpop.f32.mrb[0].mxu0
        %v3600 = vadd.f32 %v3136, %v3599
        %3601 = vdwg.mxu0
        %3602 = vmatprep.subr.bf16.mxu0 %v3352
        %3603 = vmatpush1.bf16.msra.mxu0 %v3351
        %3604 = vmatprep.subr.bf16.mxu0 %v3360
        %3605 = vmatpush1.bf16.msra.mxu0 %v3359
        %3606 = vmatprep.subr.bf16.mxu0 %v3368
        %3607 = vmatpush1.bf16.msra.mxu0 %v3367
        %3608 = vmatprep.subr.bf16.mxu0 %v3376
        %3609 = vmatpush1.bf16.msra.mxu0 %v3375
        %3610 = vmatprep.subr.bf16.mxu0 %v3384
        %3611 = vmatpush1.bf16.msra.mxu0 %v3383
        %3612 = vmatprep.subr.bf16.mxu0 %v3392
        %3613 = vmatpush1.bf16.msra.mxu0 %v3391
        %3614 = vmatprep.subr.bf16.mxu0 %v3400
        %3615 = vmatpush1.bf16.msra.mxu0 %v3399
        %3616 = vmatprep.subr.bf16.mxu0 %v3408
        %3617 = vmatpush1.bf16.msra.mxu0 %v3407
        %3618 = vmatprep.subr.bf16.mxu0 0
        %3619 = vmatpush1.bf16.msra.mxu0 0
        %3620 = vmatprep.subr.bf16.mxu0 0
        %3621 = vmatpush1.bf16.msra.mxu0 0
        %3622 = vmatprep.subr.bf16.mxu0 0
        %3623 = vmatpush1.bf16.msra.mxu0 0
        %3624 = vmatprep.subr.bf16.mxu0 0
        %3625 = vmatpush1.bf16.msra.mxu0 0
        %3626 = vmatprep.subr.bf16.mxu0 0
        %3627 = vmatpush1.bf16.msra.mxu0 0
        %3628 = vmatprep.subr.bf16.mxu0 0
        %3629 = vmatpush1.bf16.msra.mxu0 0
        %3630 = vmatprep.subr.bf16.mxu0 0
        %3631 = vmatpush1.bf16.msra.mxu0 0
        %3632 = vmatprep.subr.bf16.mxu0 0
        %3633 = vmatpush1.bf16.msra.mxu0 0
        %3634 = vmatprep.mubr.bf16.mxu0 0
        %3635 = vmatmul.mubr.bf16.gmra.mrb[0].mxu0 %v3046
        %v3636 = vpop.f32.mrb[0].mxu0
        %v3637 = vadd.f32 %v3140, %v3636
        %v3638 = vpop.f32.mrb[0].mxu0
        %v3639 = vadd.f32 %v3144, %v3638
        %v3640 = vpop.f32.mrb[0].mxu0
        %v3641 = vadd.f32 %v3140, %v3640
        %v3642 = vpop.f32.mrb[0].mxu0
        %v3643 = vadd.f32 %v3144, %v3642
        %3644 = vdwg.mxu0
        %v3645 = vmul.f32 %v3594, %v3594
        %v3646 = vmul.f32 %v3596, %v3596
        %v3647 = vmul.f32 %v3637, %v3637
        %v3648 = vmul.f32 %v3639, %v3639
        %v3649 = vmul.f32 %v3598, %v3598
        %v3650 = vmul.f32 %v3600, %v3600
        %v3651 = vmul.f32 %v3641, %v3641
        %v3652 = vmul.f32 %v3643, %v3643
        %v3653 = vmul.f32 %v3594, %v3645
        %v3654 = vmul.f32 %v3596, %v3646
        %v3655 = vmul.f32 %v3637, %v3647
        %v3656 = vmul.f32 %v3639, %v3648
        %v3657 = vmul.f32 %v3598, %v3649
        %v3658 = vmul.f32 %v3600, %v3650
        %v3659 = vmul.f32 %v3641, %v3651
        %v3660 = vmul.f32 %v3643, %v3652
        %v3661 = vmul.f32 %v3653, 0.044715
        %v3662 = vmul.f32 %v3654, 0.044715
        %v3663 = vmul.f32 %v3655, 0.044715
        %v3664 = vmul.f32 %v3656, 0.044715
        %v3665 = vmul.f32 %v3657, 0.044715
        %v3666 = vmul.f32 %v3658, 0.044715
        %v3667 = vmul.f32 %v3659, 0.044715
        %v3668 = vmul.f32 %v3660, 0.044715
        %v3669 = vadd.f32 %v3594, %v3661
        %v3670 = vadd.f32 %v3596, %v3662
        %v3671 = vadd.f32 %v3637, %v3663
        %v3672 = vadd.f32 %v3639, %v3664
        %v3673 = vadd.f32 %v3598, %v3665
        %v3674 = vadd.f32 %v3600, %v3666
        %v3675 = vadd.f32 %v3641, %v3667
        %v3676 = vadd.f32 %v3643, %v3668
        %v3677 = vmul.f32 %v3669, 0.7978846
        %v3678 = vmul.f32 %v3670, 0.7978846
        %v3679 = vmul.f32 %v3671, 0.7978846
        %v3680 = vmul.f32 %v3672, 0.7978846
        %v3681 = vmul.f32 %v3673, 0.7978846
        %v3682 = vmul.f32 %v3674, 0.7978846
        %v3683 = vmul.f32 %v3675, 0.7978846
        %v3684 = vmul.f32 %v3676, 0.7978846
        %v3685 = vtanh.pop %v3677
        %v3686 = vtanh.pop %v3678
        %v3687 = vtanh.pop %v3679
        %v3688 = vtanh.pop %v3680
        %v3689 = vtanh.pop %v3681
        %v3690 = vtanh.pop %v3682
        %v3691 = vtanh.pop %v3683
        %v3692 = vtanh.pop %v3684
        %v3693 = vadd.f32 %v3685, 1.0
        %v3694 = vadd.f32 %v3686, 1.0
        %v3695 = vadd.f32 %v3687, 1.0
        %v3696 = vadd.f32 %v3688, 1.0
        %v3697 = vadd.f32 %v3689, 1.0
        %v3698 = vadd.f32 %v3690, 1.0
        %v3699 = vadd.f32 %v3691, 1.0
        %v3700 = vadd.f32 %v3692, 1.0
        %v3701 = vmul.f32 %v3693, 0.5
        %v3702 = vmul.f32 %v3694, 0.5
        %v3703 = vmul.f32 %v3695, 0.5
        %v3704 = vmul.f32 %v3696, 0.5
        %v3705 = vmul.f32 %v3697, 0.5
        %v3706 = vmul.f32 %v3698, 0.5
        %v3707 = vmul.f32 %v3699, 0.5
        %v3708 = vmul.f32 %v3700, 0.5
        %v3709 = vmul.f32 %v3594, %v3701
        %v3710 = vmul.f32 %v3596, %v3702
        %v3711 = vmul.f32 %v3637, %v3703
        %v3712 = vmul.f32 %v3639, %v3704
        %v3713 = vmul.f32 %v3598, %v3705
        %v3714 = vmul.f32 %v3600, %v3706
        %v3715 = vmul.f32 %v3641, %v3707
        %v3716 = vmul.f32 %v3643, %v3708
        %v3717 = vmul.f32 %v3508, %v3709
        %v3718 = vmul.f32 %v3510, %v3710
        %v3719 = vmul.f32 %v3551, %v3711
        %v3720 = vmul.f32 %v3553, %v3712
        %v3721 = vmul.f32 %v3512, %v3713
        %v3722 = vmul.f32 %v3514, %v3714
        %v3723 = vmul.f32 %v3555, %v3715
        %v3724 = vmul.f32 %v3557, %v3716
        %v3725 = vpack.c.bf16 %v3721, %v3717
        %v3726 = vpack.c.bf16 %v3722, %v3718
        %v3727 = vpack.c.bf16 %v3723, %v3719
        %v3728 = vpack.c.bf16 %v3724, %v3720
        %v3729 = vld [vmem:[%s897] sm:$0xf]
        %v3730 = vld [vmem:[%s897 + $0x4] sm:$0xf]
        %v3731 = vld [vmem:[%s897 + $0x8] sm:$0xf]
        %v3732 = vld [vmem:[%s897 + $0xc] sm:$0xf]
        %v3733 = vld [vmem:[%s897 + $0x10] sm:$0xf]
        %v3734 = vld [vmem:[%s897 + $0x14] sm:$0xf]
        %v3735 = vld [vmem:[%s897 + $0x18] sm:$0xf]
        %v3736 = vld [vmem:[%s897 + $0x1c] sm:$0xf]
        %v3737 = vld [vmem:[%s897 + $0x20] sm:$0xf]
        %v3738 = vld [vmem:[%s897 + $0x24] sm:$0xf]
        %v3739 = vld [vmem:[%s897 + $0x28] sm:$0xf]
        %v3740 = vld [vmem:[%s897 + $0x2c] sm:$0xf]
        %v3741 = vld [vmem:[%s897 + $0x30] sm:$0xf]
        %v3742 = vld [vmem:[%s897 + $0x34] sm:$0xf]
        %v3743 = vld [vmem:[%s897 + $0x38] sm:$0xf]
        %v3744 = vld [vmem:[%s897 + $0x3c] sm:$0xf]
        %v3745 = vld [vmem:[%s897 + $0x40] sm:$0xf]
        %v3746 = vld [vmem:[%s897 + $0x44] sm:$0xf]
        %v3747 = vld [vmem:[%s897 + $0x48] sm:$0xf]
        %v3748 = vld [vmem:[%s897 + $0x4c] sm:$0xf]
        %v3749 = vld [vmem:[%s897 + $0x50] sm:$0xf]
        %v3750 = vld [vmem:[%s897 + $0x54] sm:$0xf]
        %v3751 = vld [vmem:[%s897 + $0x58] sm:$0xf]
        %v3752 = vld [vmem:[%s897 + $0x5c] sm:$0xf]
        %v3753 = vld [vmem:[%s897 + $0x60] sm:$0xf]
        %v3754 = vld [vmem:[%s897 + $0x64] sm:$0xf]
        %v3755 = vld [vmem:[%s897 + $0x68] sm:$0xf]
        %v3756 = vld [vmem:[%s897 + $0x6c] sm:$0xf]
        %v3757 = vld [vmem:[%s897 + $0x70] sm:$0xf]
        %v3758 = vld [vmem:[%s897 + $0x74] sm:$0xf]
        %v3759 = vld [vmem:[%s897 + $0x78] sm:$0xf]
        %v3760 = vld [vmem:[%s897 + $0x7c] sm:$0xf]
        %v3761 = vld [vmem:[%s897 + $0x80] sm:$0xf]
        %v3762 = vld [vmem:[%s897 + $0x84] sm:$0xf]
        %v3763 = vld [vmem:[%s897 + $0x88] sm:$0xf]
        %v3764 = vld [vmem:[%s897 + $0x8c] sm:$0xf]
        %v3765 = vld [vmem:[%s897 + $0x90] sm:$0xf]
        %v3766 = vld [vmem:[%s897 + $0x94] sm:$0xf]
        %v3767 = vld [vmem:[%s897 + $0x98] sm:$0xf]
        %v3768 = vld [vmem:[%s897 + $0x9c] sm:$0xf]
        %v3769 = vld [vmem:[%s897 + $0xa0] sm:$0xf]
        %v3770 = vld [vmem:[%s897 + $0xa4] sm:$0xf]
        %v3771 = vld [vmem:[%s897 + $0xa8] sm:$0xf]
        %v3772 = vld [vmem:[%s897 + $0xac] sm:$0xf]
        %v3773 = vld [vmem:[%s897 + $0xb0] sm:$0xf]
        %v3774 = vld [vmem:[%s897 + $0xb4] sm:$0xf]
        %v3775 = vld [vmem:[%s897 + $0xb8] sm:$0xf]
        %v3776 = vld [vmem:[%s897 + $0xbc] sm:$0xf]
        %v3777 = vld [vmem:[%s897 + $0xc0] sm:$0xf]
        %v3778 = vld [vmem:[%s897 + $0xc4] sm:$0xf]
        %v3779 = vld [vmem:[%s897 + $0xc8] sm:$0xf]
        %v3780 = vld [vmem:[%s897 + $0xcc] sm:$0xf]
        %v3781 = vld [vmem:[%s897 + $0xd0] sm:$0xf]
        %v3782 = vld [vmem:[%s897 + $0xd4] sm:$0xf]
        %v3783 = vld [vmem:[%s897 + $0xd8] sm:$0xf]
        %v3784 = vld [vmem:[%s897 + $0xdc] sm:$0xf]
        %v3785 = vld [vmem:[%s897 + $0xe0] sm:$0xf]
        %v3786 = vld [vmem:[%s897 + $0xe4] sm:$0xf]
        %v3787 = vld [vmem:[%s897 + $0xe8] sm:$0xf]
        %v3788 = vld [vmem:[%s897 + $0xec] sm:$0xf]
        %v3789 = vld [vmem:[%s897 + $0xf0] sm:$0xf]
        %v3790 = vld [vmem:[%s897 + $0xf4] sm:$0xf]
        %v3791 = vld [vmem:[%s897 + $0xf8] sm:$0xf]
        %v3792 = vld [vmem:[%s897 + $0xfc] sm:$0xf]
        %v3793 = vld [vmem:[%s759] sm:$0x1]
        %v3795 = vlaneseq
        %v3796 = vshrl.u32 %v3795, 7
        %v3797 = vsub.s32 0, %v3796
        %v3798 = vrot.slane %v3793, %v3797
        %v3864 = vunpack.c.l.b16 %v3729
        %v3865 = vunpack.c.l.b16 %v3730
        %v3866 = vunpack.c.l.b16 %v3731
        %v3867 = vunpack.c.l.b16 %v3732
        %v3868 = vunpack.c.l.b16 %v3733
        %v3869 = vunpack.c.l.b16 %v3734
        %v3870 = vunpack.c.l.b16 %v3735
        %v3871 = vunpack.c.l.b16 %v3736
        %v3872 = vunpack.c.l.b16 %v3737
        %v3873 = vunpack.c.l.b16 %v3738
        %v3874 = vunpack.c.l.b16 %v3739
        %v3875 = vunpack.c.l.b16 %v3740
        %v3876 = vunpack.c.l.b16 %v3741
        %v3877 = vunpack.c.l.b16 %v3742
        %v3878 = vunpack.c.l.b16 %v3743
        %v3879 = vunpack.c.l.b16 %v3744
        %v3880 = vunpack.c.l.b16 %v3745
        %v3881 = vunpack.c.l.b16 %v3746
        %v3882 = vunpack.c.l.b16 %v3747
        %v3883 = vunpack.c.l.b16 %v3748
        %v3884 = vunpack.c.l.b16 %v3749
        %v3885 = vunpack.c.l.b16 %v3750
        %v3886 = vunpack.c.l.b16 %v3751
        %v3887 = vunpack.c.l.b16 %v3752
        %v3888 = vunpack.c.l.b16 %v3753
        %v3889 = vunpack.c.l.b16 %v3754
        %v3890 = vunpack.c.l.b16 %v3755
        %v3891 = vunpack.c.l.b16 %v3756
        %v3892 = vunpack.c.l.b16 %v3757
        %v3893 = vunpack.c.l.b16 %v3758
        %v3894 = vunpack.c.l.b16 %v3759
        %v3895 = vunpack.c.l.b16 %v3760
        %v3896 = vunpack.c.l.b16 %v3761
        %v3897 = vunpack.c.l.b16 %v3762
        %v3898 = vunpack.c.l.b16 %v3763
        %v3899 = vunpack.c.l.b16 %v3764
        %v3900 = vunpack.c.l.b16 %v3765
        %v3901 = vunpack.c.l.b16 %v3766
        %v3902 = vunpack.c.l.b16 %v3767
        %v3903 = vunpack.c.l.b16 %v3768
        %v3904 = vunpack.c.l.b16 %v3769
        %v3905 = vunpack.c.l.b16 %v3770
        %v3906 = vunpack.c.l.b16 %v3771
        %v3907 = vunpack.c.l.b16 %v3772
        %v3908 = vunpack.c.l.b16 %v3773
        %v3909 = vunpack.c.l.b16 %v3774
        %v3910 = vunpack.c.l.b16 %v3775
        %v3911 = vunpack.c.l.b16 %v3776
        %v3912 = vunpack.c.l.b16 %v3777
        %v3913 = vunpack.c.l.b16 %v3778
        %v3914 = vunpack.c.l.b16 %v3779
        %v3915 = vunpack.c.l.b16 %v3780
        %v3916 = vunpack.c.l.b16 %v3781
        %v3917 = vunpack.c.l.b16 %v3782
        %v3918 = vunpack.c.l.b16 %v3783
        %v3919 = vunpack.c.l.b16 %v3784
        %v3920 = vunpack.c.l.b16 %v3785
        %v3921 = vunpack.c.l.b16 %v3786
        %v3922 = vunpack.c.l.b16 %v3787
        %v3923 = vunpack.c.l.b16 %v3788
        %v3924 = vunpack.c.l.b16 %v3789
        %v3925 = vunpack.c.l.b16 %v3790
        %v3926 = vunpack.c.l.b16 %v3791
        %v3927 = vunpack.c.l.b16 %v3792
        %v3928 = vpack.c.b16 %v3865, %v3864
        %v3929 = vpack.c.b16 %v3867, %v3866
        %v3930 = vpack.c.b16 %v3869, %v3868
        %v3931 = vpack.c.b16 %v3871, %v3870
        %v3932 = vpack.c.b16 %v3873, %v3872
        %v3933 = vpack.c.b16 %v3875, %v3874
        %v3934 = vpack.c.b16 %v3877, %v3876
        %v3935 = vpack.c.b16 %v3879, %v3878
        %v3936 = vpack.c.b16 %v3881, %v3880
        %v3937 = vpack.c.b16 %v3883, %v3882
        %v3938 = vpack.c.b16 %v3885, %v3884
        %v3939 = vpack.c.b16 %v3887, %v3886
        %v3940 = vpack.c.b16 %v3889, %v3888
        %v3941 = vpack.c.b16 %v3891, %v3890
        %v3942 = vpack.c.b16 %v3893, %v3892
        %v3943 = vpack.c.b16 %v3895, %v3894
        %v3944 = vpack.c.b16 %v3897, %v3896
        %v3945 = vpack.c.b16 %v3899, %v3898
        %v3946 = vpack.c.b16 %v3901, %v3900
        %v3947 = vpack.c.b16 %v3903, %v3902
        %v3948 = vpack.c.b16 %v3905, %v3904
        %v3949 = vpack.c.b16 %v3907, %v3906
        %v3950 = vpack.c.b16 %v3909, %v3908
        %v3951 = vpack.c.b16 %v3911, %v3910
        %v3952 = vpack.c.b16 %v3913, %v3912
        %v3953 = vpack.c.b16 %v3915, %v3914
        %v3954 = vpack.c.b16 %v3917, %v3916
        %v3955 = vpack.c.b16 %v3919, %v3918
        %v3956 = vpack.c.b16 %v3921, %v3920
        %v3957 = vpack.c.b16 %v3923, %v3922
        %v3958 = vpack.c.b16 %v3925, %v3924
        %v3959 = vpack.c.b16 %v3927, %v3926
        %3992 = vmatprep.subr.bf16.mxu0 0
        %3993 = vmatpush1.bf16.msra.mxu0 %v3928
        %3994 = vmatprep.subr.bf16.mxu0 0
        %3995 = vmatpush1.bf16.msra.mxu0 %v3929
        %3996 = vmatprep.subr.bf16.mxu0 0
        %3997 = vmatpush1.bf16.msra.mxu0 %v3930
        %3998 = vmatprep.subr.bf16.mxu0 0
        %3999 = vmatpush1.bf16.msra.mxu0 %v3931
        %4000 = vmatprep.subr.bf16.mxu0 0
        %4001 = vmatpush1.bf16.msra.mxu0 %v3932
        %4002 = vmatprep.subr.bf16.mxu0 0
        %4003 = vmatpush1.bf16.msra.mxu0 %v3933
        %4004 = vmatprep.subr.bf16.mxu0 0
        %4005 = vmatpush1.bf16.msra.mxu0 %v3934
        %4006 = vmatprep.subr.bf16.mxu0 0
        %4007 = vmatpush1.bf16.msra.mxu0 %v3935
        %4008 = vmatprep.subr.bf16.mxu0 0
        %4009 = vmatpush1.bf16.msra.mxu0 %v3936
        %4010 = vmatprep.subr.bf16.mxu0 0
        %4011 = vmatpush1.bf16.msra.mxu0 %v3937
        %4012 = vmatprep.subr.bf16.mxu0 0
        %4013 = vmatpush1.bf16.msra.mxu0 %v3938
        %4014 = vmatprep.subr.bf16.mxu0 0
        %4015 = vmatpush1.bf16.msra.mxu0 %v3939
        %4016 = vmatprep.subr.bf16.mxu0 0
        %4017 = vmatpush1.bf16.msra.mxu0 %v3940
        %4018 = vmatprep.subr.bf16.mxu0 0
        %4019 = vmatpush1.bf16.msra.mxu0 %v3941
        %4020 = vmatprep.subr.bf16.mxu0 0
        %4021 = vmatpush1.bf16.msra.mxu0 %v3942
        %4022 = vmatprep.subr.bf16.mxu0 0
        %4023 = vmatpush1.bf16.msra.mxu0 %v3943
        %4024 = vmatprep.mubr.bf16.mxu0 %v3726
        %4025 = vmatmul.mubr.bf16.gmra.mrb[0].mxu0 %v3725
        %v4026 = vpop.f32.mrb[0].mxu0
        %v4027 = vadd.f32 %v3798, %v4026
        %v4028 = vpop.f32.mrb[0].mxu0
        %v4029 = vpop.f32.mrb[0].mxu0
        %v4030 = vadd.f32 %v3798, %v4029
        %v4031 = vpop.f32.mrb[0].mxu0
        %4032 = vdwg.mxu0
        %4033 = vmatprep.subr.bf16.mxu0 0
        %4034 = vmatpush1.bf16.msra.mxu0 %v3944
        %4035 = vmatprep.subr.bf16.mxu0 0
        %4036 = vmatpush1.bf16.msra.mxu0 %v3945
        %4037 = vmatprep.subr.bf16.mxu0 0
        %4038 = vmatpush1.bf16.msra.mxu0 %v3946
        %4039 = vmatprep.subr.bf16.mxu0 0
        %4040 = vmatpush1.bf16.msra.mxu0 %v3947
        %4041 = vmatprep.subr.bf16.mxu0 0
        %4042 = vmatpush1.bf16.msra.mxu0 %v3948
        %4043 = vmatprep.subr.bf16.mxu0 0
        %4044 = vmatpush1.bf16.msra.mxu0 %v3949
        %4045 = vmatprep.subr.bf16.mxu0 0
        %4046 = vmatpush1.bf16.msra.mxu0 %v3950
        %4047 = vmatprep.subr.bf16.mxu0 0
        %4048 = vmatpush1.bf16.msra.mxu0 %v3951
        %4049 = vmatprep.subr.bf16.mxu0 0
        %4050 = vmatpush1.bf16.msra.mxu0 %v3952
        %4051 = vmatprep.subr.bf16.mxu0 0
        %4052 = vmatpush1.bf16.msra.mxu0 %v3953
        %4053 = vmatprep.subr.bf16.mxu0 0
        %4054 = vmatpush1.bf16.msra.mxu0 %v3954
        %4055 = vmatprep.subr.bf16.mxu0 0
        %4056 = vmatpush1.bf16.msra.mxu0 %v3955
        %4057 = vmatprep.subr.bf16.mxu0 0
        %4058 = vmatpush1.bf16.msra.mxu0 %v3956
        %4059 = vmatprep.subr.bf16.mxu0 0
        %4060 = vmatpush1.bf16.msra.mxu0 %v3957
        %4061 = vmatprep.subr.bf16.mxu0 0
        %4062 = vmatpush1.bf16.msra.mxu0 %v3958
        %4063 = vmatprep.subr.bf16.mxu0 0
        %4064 = vmatpush1.bf16.msra.mxu0 %v3959
        %4065 = vmatprep.mubr.bf16.mxu0 %v3728
        %4066 = vmatmul.mubr.bf16.gmra.mrb[0].mxu0 %v3727
        %v4067 = vpop.f32.mrb[0].mxu0
        %v4068 = vadd.f32 %v4027, %v4067
        %v4069 = vpop.f32.mrb[0].mxu0
        %v4070 = vpop.f32.mrb[0].mxu0
        %v4071 = vadd.f32 %v4030, %v4070
        %v4072 = vpop.f32.mrb[0].mxu0
        %4073 = vdwg.mxu0
        %v4074 = vadd.f32 %v3004, %v4068
        %v4075 = vadd.f32 %v3005, %v4071
        %4076 = vst [vmem:[#allocation2] sm:$0xff] %v4074
        %4077 = vst [vmem:[#allocation2 + $0x8] sm:$0xff] %v4075
        %p4078 = scmp.eq.s32.totalorder %s45, 1
        // Predicated region
        $region125: #{vima_gato_policy_forward.1} parent=83 // pred_check
          %p4079 = pneg %p4078
        $region126: #{vima_gato_policy_forward.1} parent=83 // pred_check_branch
          %4081 = sbr.rel (%p4079) target = $region128
        $region127: #{vima_gato_policy_forward.1} parent=83 // pred_region
          %v4082 = vld [vmem:[#allocation15] sm:$0x1]
          %v4083 = vld [vmem:[#allocation17] sm:$0x1]
          %4084 = vadd.xlane.f32.xlu0 %v4074
          %v4085 = vpop.xlane.xlu0 %4084
          %4086 = vadd.xlane.f32.xlu0 %v4075
          %v4087 = vpop.xlane.xlu0 %4086
          %v4088 = vmul.f32 %v4085, %v944
          %v4089 = vmul.f32 %v4087, %v944
          %v4090 = vsub.f32 %v4074, %v4088
          %v4091 = vsub.f32 %v4075, %v4089
          %v4092 = vmul.f32 %v4090, %v4090
          %v4093 = vmul.f32 %v4091, %v4091
          %4094 = vadd.xlane.f32.xlu0 %v4092
          %v4095 = vpop.xlane.xlu0 %4094
          %4096 = vadd.xlane.f32.xlu0 %v4093
          %v4097 = vpop.xlane.xlu0 %4096
          %v4098 = vmul.f32 %v4095, %v944
          %v4099 = vmul.f32 %v4097, %v944
          %v4100 = vadd.f32 %v4098, 1e-05
          %v4101 = vadd.f32 %v4099, 1e-05
          %v4102 = vrsqrt.pop %v4100
          %v4103 = vrsqrt.pop %v4101
          %v4104 = vmul.f32 %v4090, %v4102
          %v4105 = vmul.f32 %v4091, %v4103
          %v4107 = vlaneseq
          %v4108 = vshrl.u32 %v4107, 7
          %v4109 = vsub.s32 0, %v4108
          %v4110 = vrot.slane %v4082, %v4109
          %v4112 = vmul.f32 %v4104, %v4110
          %v4113 = vmul.f32 %v4105, %v4110
          %v4115 = vlaneseq
          %v4116 = vshrl.u32 %v4115, 7
          %v4117 = vsub.s32 0, %v4116
          %v4118 = vrot.slane %v4083, %v4117
          %v4120 = vadd.f32 %v4112, %v4118
          %v4121 = vadd.f32 %v4113, %v4118
          %4122 = vst [vmem:[%s902] sm:$0xff] %v4120
          %4123 = vst [vmem:[%s902 + $0x8] sm:$0xff] %v4121
        $region128: #{vima_gato_policy_forward.1} parent=83 // pred_fallthru
          _
        %p4124 = scmp.lt.s32.totalorder %s44, 1
        %s4125 = scalar_select %p4124, %s44, 1
        %s4126 = smul.addr %s4125, 2
        %s4127 = smul.addr %s4126, 8
        %s4128 = scalar_lea.vmem %s16, %s4127
        // Predicated region
        $region129: #{vima_gato_policy_forward.1} parent=83 // pred_check
          %p4129 = pneg %p476
        $region130: #{vima_gato_policy_forward.1} parent=83 // pred_check_branch
          %4131 = sbr.rel (%p4129) target = $region132
        $region131: #{vima_gato_policy_forward.1} parent=83 // pred_region
          _
        $region132: #{vima_gato_policy_forward.1} parent=83 // pred_fallthru
          _
      $region84: #{vima_gato_policy_forward.1} parent=5 // pred_fallthru
        _
      %p4132 = scmp.le.s32.totalorder 2, %s35
      // Predicated region
      $region133: #{vima_gato_policy_forward.1} parent=5 // pred_check
        %p4133 = pneg %p4132
      $region134: #{vima_gato_policy_forward.1} parent=5 // pred_check_branch
        %4135 = sbr.rel (%p4133) target = $region136
      $region135: #{vima_gato_policy_forward.1} parent=5 // pred_region
        %s4136 = ssub.s32 %s35, 2
        // Predicated region
        $region137: #{vima_gato_policy_forward.1} parent=135 // pred_check
          %p4137 = pneg %p482
        $region138: #{vima_gato_policy_forward.1} parent=135 // pred_check_branch
          %4139 = sbr.rel (%p4137) target = $region140
        $region139: #{vima_gato_policy_forward.1} parent=135 // pred_region
          %p4140 = scmp.lt.s32.totalorder %s46, 1
          %s4141 = scalar_select %p4140, %s46, 1
          %s4142 = smul.addr %s4141, 2
          %s4143 = smul.addr %s4142, 8
          %s4144 = scalar_lea.vmem %s16, %s4143
        $region140: #{vima_gato_policy_forward.1} parent=135 // pred_fallthru
          _
      $region136: #{vima_gato_policy_forward.1} parent=5 // pred_fallthru
        _
    $region6: #{vima_gato_policy_forward.1} parent=1 // loop_footer
      %s39 = sadd.s32 1, %s35
    $region7: #{vima_gato_policy_forward.1} parent=1 // loop_footer_branch
      %34 = sbr.rel target = $region3
    $region8: #{vima_gato_policy_forward.1} parent=1 // loop_exit
      _
    %4145 = vsyncpa [#allocation5], 1
    %s4146 = scalar_lea.sflag [#allocation5], 1
    %4147 = vsyncpa %s4146, 1
    %4148 = vsyncpa [#allocation7], 1
    %s4149 = scalar_lea.sflag [#allocation7], 1
    %4150 = vsyncpa %s4149, 1
    %4151 = vsyncpa [#allocation10], 1
    %s4152 = scalar_lea.sflag [#allocation10], 1
    %4153 = vsyncpa %s4152, 1
    %4154 = vsyncpa [#allocation13], 1
    %s4155 = scalar_lea.sflag [#allocation13], 1
    %4156 = vsyncpa %s4155, 1
    %4157 = vsyncpa [#allocation16], 1

</llo_original>
